<compile_context>
chip_gen: v7x
topology: tpu7x:2x2x1
jax: 0.10.0
libtpu: 0.0.40
codegen_flags: <defaults>
</compile_context>

<pallas_src>
import functools
import math

import jax
import jax.numpy as jnp
from jax.experimental import pallas as pl
from jax.experimental.pallas import tpu as pltpu


def _round_up(x, m):
    return ((x + m - 1) // m) * m


# ----------------------------- Pallas kernel -------------------------------

def _fused_siren_kernel(x_ref, *refs, num_layers, sine_flags):
    """Fused SIREN MLP over one batch tile (batch on the lane axis).

    x_ref:  (Din0_pad, tm)   input activations, batch on lanes (zero-padded
                             feature rows contribute nothing).
    refs:   w0, b0, w1, b1, ..., wL-1, bL-1, o_ref
       w_l: (Dout_l, Din_l)  weight with omega already folded in
       b_l: (Dout_l, 1)      bias   with omega already folded in
    o_ref:  (Dout_last, tm)  output tile, lane-dense
    """
    o_ref = refs[-1]
    param_refs = refs[:-1]

    h = x_ref[...]                                      # (Din0_pad, tm) f32

    for l in range(num_layers):
        w = param_refs[2 * l][...]                      # (dout, din)
        b = param_refs[2 * l + 1][...]                  # (dout, 1)
        # All layers go through the MXU: the VALU/EUP slots carry the sin()
        # range-reduction/polynomial and are the likely binding slots, while
        # the vector-extended (MXU push) slot has plenty of slack even for
        # the tiny first (K=8 padded) and last (M=1) layers.
        z = jnp.dot(w, h, preferred_element_type=jnp.float32) + b
        h = jnp.sin(z) if sine_flags[l] else z

    o_ref[...] = h.astype(o_ref.dtype)


# ------------------------------ wrapper -------------------------------------

def fold_siren_params(params):
    """One-time preprocessing: fold omega into W/b, pad first-layer K to 8."""
    packed = []
    for idx, layer in enumerate(params):
        w = (layer["w"] * layer["omega"]).astype(jnp.float32)   # (Dout, Din)
        b = (layer["b"] * layer["omega"]).astype(jnp.float32).reshape(-1, 1)
        if idx == 0:
            din = w.shape[1]
            din_pad = _round_up(din, 8)
            if din_pad != din:
                # Zero columns contribute nothing; gives the MXU a clean K dim.
                w = jnp.pad(w, ((0, 0), (0, din_pad - din)))
        packed.append((w, b, bool(layer["sine"])))
    return packed


def siren_forward(packed_params, coords, *, tm=1024):
    """coords: (N, in_features) float32 -> (N, out_features) float32."""
    N, in_features = coords.shape
    out_features = packed_params[-1][0].shape[0]
    din0_pad = packed_params[0][0].shape[1]
    num_layers = len(packed_params)
    sine_flags = tuple(s for (_, _, s) in packed_params)
    layer_dims = tuple((w.shape[1], w.shape[0]) for (w, _, _) in packed_params)

    # ---- tile choice ---------------------------------------------------
    # Prefer big tiles (fewer grid steps => less per-step fixed overhead),
    # but guarantee >= 2 blocks when N allows so both v7x TensorCores work.
    tm_eff = tm
    if N >= 256:
        tm_eff = min(tm_eff, _round_up(-(-N // 2), 128))
    tm_eff = max(128, min(tm_eff, _round_up(N, 128)))
    n_blocks = pl.cdiv(N, tm_eff)
    n_pad = n_blocks * tm_eff

    # ---- batch-on-lane input: transpose + batch/feature pad in one pass --
    x_t = jnp.zeros((din0_pad, n_pad), jnp.float32)
    x_t = x_t.at[:in_features, :N].set(coords.astype(jnp.float32).T)

    in_specs = [pl.BlockSpec((din0_pad, tm_eff), lambda i: (0, i))]
    flat_params = []
    for (w, b, _) in packed_params:
        dout, din = w.shape
        # Full-array blocks with constant index_map -> DMA'd once, VMEM-resident.
        in_specs.append(pl.BlockSpec((dout, din), lambda i: (0, 0)))
        in_specs.append(pl.BlockSpec((dout, 1), lambda i: (0, 0)))
        flat_params += [w, b]

    out_specs = pl.BlockSpec((out_features, tm_eff), lambda i: (0, i))

    flops = 2 * n_pad * sum(din * dout for din, dout in layer_dims)
    transcendentals = n_pad * sum(
        dout for (din, dout), s in zip(layer_dims, sine_flags) if s)
    bytes_accessed = 4 * (x_t.size + n_pad * out_features
                          + sum(w.size + b.size for (w, b, _) in packed_params))

    kernel = functools.partial(
        _fused_siren_kernel, num_layers=num_layers, sine_flags=sine_flags)

    out_t = pl.pallas_call(
        kernel,
        out_shape=jax.ShapeDtypeStruct((out_features, n_pad), jnp.float32),
        grid_spec=pltpu.PrefetchScalarGridSpec(
            num_scalar_prefetch=0,
            grid=(n_blocks,),
            in_specs=in_specs,
            out_specs=out_specs,
        ),
        compiler_params=pltpu.CompilerParams(
            dimension_semantics=("parallel",),
        ),
        cost_estimate=pl.CostEstimate(
            flops=int(flops),
            transcendentals=int(transcendentals),
            bytes_accessed=int(bytes_accessed),
        ),
    )(x_t, *flat_params)

    # Back to (N, out_features); drop batch padding (tail columns are garbage
    # by design -- this is a pure per-point map, nothing reduces over batch).
    return out_t[:, :N].T


# ------------------------- parameter initialization -------------------------

def init_siren_params(key, in_features, hidden_features, hidden_layers,
                      out_features, outermost_linear=False,
                      first_omega_0=30.0, hidden_omega_0=30.0):
    """Matches the PyTorch SIREN init ranges. Weights stored as (Dout, Din)."""
    params = []

    def linear_init(k, din, dout, w_bound):
        kw, kb = jax.random.split(k)
        w = jax.random.uniform(kw, (dout, din), jnp.float32, -w_bound, w_bound)
        # PyTorch nn.Linear default bias init: U(-1/sqrt(din), 1/sqrt(din))
        b_bound = 1.0 / math.sqrt(din)
        b = jax.random.uniform(kb, (dout,), jnp.float32, -b_bound, b_bound)
        return w, b

    keys = jax.random.split(key, hidden_layers + 2)

    # first layer
    w, b = linear_init(keys[0], in_features, hidden_features, 1.0 / in_features)
    params.append(dict(w=w, b=b, omega=first_omega_0, sine=True))

    # hidden layers
    hid_bound = math.sqrt(6.0 / hidden_features) / hidden_omega_0
    for i in range(hidden_layers):
        w, b = linear_init(keys[1 + i], hidden_features, hidden_features,
                           hid_bound)
        params.append(dict(w=w, b=b, omega=hidden_omega_0, sine=True))

    # output layer
    w, b = linear_init(keys[-1], hidden_features, out_features, hid_bound)
    params.append(dict(w=w, b=b,
                       omega=(1.0 if outermost_linear else hidden_omega_0),
                       sine=not outermost_linear))
    return params


# ------------------------ pure-JAX reference check --------------------------

def siren_reference(params, coords):
    x = coords
    for layer in params:
        z = layer["omega"] * (x @ layer["w"].T + layer["b"])
        x = jnp.sin(z) if layer["sine"] else z
    return x


# --------------------------------- main -------------------------------------

if __name__ == "__main__":
    key = jax.random.PRNGKey(0)
    k_params, k_coords = jax.random.split(key)

    in_features = 2
    hidden_features = 32
    hidden_layers = 2
    out_features = 1

    params = init_siren_params(
        k_params, in_features, hidden_features, hidden_layers, out_features,
        outermost_linear=False, first_omega_0=30.0, hidden_omega_0=30.0,
    )
    packed = fold_siren_params(params)   # one-time: fold omega, pad K, reshape b

    # Case 1: N divisible by the chosen tile (tile clamp gives 2 blocks).
    N = 1024
    coords = jax.random.uniform(k_coords, (N, in_features), jnp.float32,
                                -1.0, 1.0)
    out = jax.block_until_ready(siren_forward(packed, coords, tm=1024))
    ref = siren_reference(params, coords)
    assert out.shape == (N, out_features)
    assert jnp.allclose(out, ref, atol=1e-4, rtol=1e-4)

    # Case 2: ragged N exercises the padded last block.
    N2 = 777
    coords2 = jax.random.uniform(jax.random.PRNGKey(1), (N2, in_features),
                                 jnp.float32, -1.0, 1.0)
    out2 = jax.block_until_ready(siren_forward(packed, coords2, tm=1024))
    ref2 = siren_reference(params, coords2)
    assert out2.shape == (N2, out_features)
    assert jnp.allclose(out2, ref2, atol=1e-4, rtol=1e-4)

    # TODO(synk): forward_with_activations (intermediate-activation dump) is a
    # debugging utility and is not implemented as a kernel.

    print("KERNEL_OK")
</pallas_src>

<mosaic_0001>
module attributes {stable_mosaic.version = 11 : i64} {
  func.func @_fused_siren_kernel(%arg0: i32, %arg1: memref<8x512xf32, #tpu.memory_space<vmem>>, %arg2: memref<32x8xf32, #tpu.memory_space<vmem>>, %arg3: memref<32x1xf32, #tpu.memory_space<vmem>>, %arg4: memref<32x32xf32, #tpu.memory_space<vmem>>, %arg5: memref<32x1xf32, #tpu.memory_space<vmem>>, %arg6: memref<32x32xf32, #tpu.memory_space<vmem>>, %arg7: memref<32x1xf32, #tpu.memory_space<vmem>>, %arg8: memref<1x32xf32, #tpu.memory_space<vmem>>, %arg9: memref<1x1xf32, #tpu.memory_space<vmem>>, %arg10: memref<1x512xf32, #tpu.memory_space<vmem>>) attributes {dimension_semantics = [#tpu.dimension_semantics<parallel>], iteration_bounds = array<i64: 2>, scalar_prefetch = 0 : i64, scratch_operands = 0 : i64, tpu.core_type = #tpu.core_type<tc>, window_params = [{transform_indices = @transform_0, window_bounds = array<i64: 8, 512>}, {pipeline_mode = #tpu.pipeline_mode<synchronous>, transform_indices = @transform_1, window_bounds = array<i64: 32, 8>}, {pipeline_mode = #tpu.pipeline_mode<synchronous>, transform_indices = @transform_2, window_bounds = array<i64: 32, 1>}, {pipeline_mode = #tpu.pipeline_mode<synchronous>, transform_indices = @transform_3, window_bounds = array<i64: 32, 32>}, {pipeline_mode = #tpu.pipeline_mode<synchronous>, transform_indices = @transform_4, window_bounds = array<i64: 32, 1>}, {pipeline_mode = #tpu.pipeline_mode<synchronous>, transform_indices = @transform_5, window_bounds = array<i64: 32, 32>}, {pipeline_mode = #tpu.pipeline_mode<synchronous>, transform_indices = @transform_6, window_bounds = array<i64: 32, 1>}, {pipeline_mode = #tpu.pipeline_mode<synchronous>, transform_indices = @transform_7, window_bounds = array<i64: 1, 32>}, {pipeline_mode = #tpu.pipeline_mode<synchronous>, transform_indices = @transform_8, window_bounds = array<i64: 1, 1>}, {transform_indices = @transform_9, window_bounds = array<i64: 1, 512>}]} {
    %c0 = arith.constant 0 : index
    %c0_0 = arith.constant 0 : index
    %0 = vector.load %arg1[%c0, %c0_0] : memref<8x512xf32, #tpu.memory_space<vmem>>, vector<8x512xf32>
    %c0_1 = arith.constant 0 : index
    %c0_2 = arith.constant 0 : index
    %1 = vector.load %arg2[%c0_1, %c0_2] : memref<32x8xf32, #tpu.memory_space<vmem>>, vector<32x8xf32>
    %c0_3 = arith.constant 0 : index
    %c0_4 = arith.constant 0 : index
    %2 = vector.load %arg3[%c0_3, %c0_4] : memref<32x1xf32, #tpu.memory_space<vmem>>, vector<32x1xf32>
    %cst = arith.constant dense<0.000000e+00> : vector<32x512xf32>
    %3 = tpu.matmul %1, %0, %cst {dimension_numbers = #tpu.dot_dimension_numbers<[1], [0], [0], [1], [0, 0, 1, 1], [], []>} : vector<32x8xf32>, vector<8x512xf32>, vector<32x512xf32> -> vector<32x512xf32>
    %4 = vector.broadcast %2 : vector<32x1xf32> to vector<32x512xf32>
    %5 = arith.addf %3, %4 : vector<32x512xf32>
    %6 = math.sin %5 : vector<32x512xf32>
    %c0_5 = arith.constant 0 : index
    %c0_6 = arith.constant 0 : index
    %7 = vector.load %arg4[%c0_5, %c0_6] : memref<32x32xf32, #tpu.memory_space<vmem>>, vector<32x32xf32>
    %c0_7 = arith.constant 0 : index
    %c0_8 = arith.constant 0 : index
    %8 = vector.load %arg5[%c0_7, %c0_8] : memref<32x1xf32, #tpu.memory_space<vmem>>, vector<32x1xf32>
    %cst_9 = arith.constant dense<0.000000e+00> : vector<32x512xf32>
    %9 = tpu.matmul %7, %6, %cst_9 {dimension_numbers = #tpu.dot_dimension_numbers<[1], [0], [0], [1], [0, 0, 1, 1], [], []>} : vector<32x32xf32>, vector<32x512xf32>, vector<32x512xf32> -> vector<32x512xf32>
    %10 = vector.broadcast %8 : vector<32x1xf32> to vector<32x512xf32>
    %11 = arith.addf %9, %10 : vector<32x512xf32>
    %12 = math.sin %11 : vector<32x512xf32>
    %c0_10 = arith.constant 0 : index
    %c0_11 = arith.constant 0 : index
    %13 = vector.load %arg6[%c0_10, %c0_11] : memref<32x32xf32, #tpu.memory_space<vmem>>, vector<32x32xf32>
    %c0_12 = arith.constant 0 : index
    %c0_13 = arith.constant 0 : index
    %14 = vector.load %arg7[%c0_12, %c0_13] : memref<32x1xf32, #tpu.memory_space<vmem>>, vector<32x1xf32>
    %cst_14 = arith.constant dense<0.000000e+00> : vector<32x512xf32>
    %15 = tpu.matmul %13, %12, %cst_14 {dimension_numbers = #tpu.dot_dimension_numbers<[1], [0], [0], [1], [0, 0, 1, 1], [], []>} : vector<32x32xf32>, vector<32x512xf32>, vector<32x512xf32> -> vector<32x512xf32>
    %16 = vector.broadcast %14 : vector<32x1xf32> to vector<32x512xf32>
    %17 = arith.addf %15, %16 : vector<32x512xf32>
    %18 = math.sin %17 : vector<32x512xf32>
    %c0_15 = arith.constant 0 : index
    %c0_16 = arith.constant 0 : index
    %19 = vector.load %arg8[%c0_15, %c0_16] : memref<1x32xf32, #tpu.memory_space<vmem>>, vector<1x32xf32>
    %c0_17 = arith.constant 0 : index
    %c0_18 = arith.constant 0 : index
    %20 = vector.load %arg9[%c0_17, %c0_18] : memref<1x1xf32, #tpu.memory_space<vmem>>, vector<1x1xf32>
    %cst_19 = arith.constant dense<0.000000e+00> : vector<1x512xf32>
    %21 = tpu.matmul %19, %18, %cst_19 {dimension_numbers = #tpu.dot_dimension_numbers<[1], [0], [0], [1], [0, 0, 1, 1], [], []>} : vector<1x32xf32>, vector<32x512xf32>, vector<1x512xf32> -> vector<1x512xf32>
    %22 = vector.broadcast %20 : vector<1x1xf32> to vector<1x512xf32>
    %23 = arith.addf %21, %22 : vector<1x512xf32>
    %24 = math.sin %23 : vector<1x512xf32>
    %c0_20 = arith.constant 0 : index
    %c0_21 = arith.constant 0 : index
    %25 = vector.load %arg10[%c0_20, %c0_21] : memref<1x512xf32, #tpu.memory_space<vmem>>, vector<1x512xf32>
    tpu.vector_store %arg10[%c0_20, %c0_21], %24 {strides = array<i32>} : memref<1x512xf32, #tpu.memory_space<vmem>>, vector<1x512xf32>,
    return
  }
  func.func @transform_0(%arg0: i32) -> (i32, i32) {
    %c0_i32 = arith.constant 0 : i32
    %c0_i32_0 = arith.constant 0 : i32
    return %c0_i32, %arg0 : i32, i32
  }
  func.func @transform_1(%arg0: i32) -> (i32, i32) {
    %c0_i32 = arith.constant 0 : i32
    %c0_i32_0 = arith.constant 0 : i32
    %c0_i32_1 = arith.constant 0 : i32
    return %c0_i32, %c0_i32_0 : i32, i32
  }
  func.func @transform_2(%arg0: i32) -> (i32, i32) {
    %c0_i32 = arith.constant 0 : i32
    %c0_i32_0 = arith.constant 0 : i32
    %c0_i32_1 = arith.constant 0 : i32
    return %c0_i32, %c0_i32_0 : i32, i32
  }
  func.func @transform_3(%arg0: i32) -> (i32, i32) {
    %c0_i32 = arith.constant 0 : i32
    %c0_i32_0 = arith.constant 0 : i32
    %c0_i32_1 = arith.constant 0 : i32
    return %c0_i32, %c0_i32_0 : i32, i32
  }
  func.func @transform_4(%arg0: i32) -> (i32, i32) {
    %c0_i32 = arith.constant 0 : i32
    %c0_i32_0 = arith.constant 0 : i32
    %c0_i32_1 = arith.constant 0 : i32
    return %c0_i32, %c0_i32_0 : i32, i32
  }
  func.func @transform_5(%arg0: i32) -> (i32, i32) {
    %c0_i32 = arith.constant 0 : i32
    %c0_i32_0 = arith.constant 0 : i32
    %c0_i32_1 = arith.constant 0 : i32
    return %c0_i32, %c0_i32_0 : i32, i32
  }
  func.func @transform_6(%arg0: i32) -> (i32, i32) {
    %c0_i32 = arith.constant 0 : i32
    %c0_i32_0 = arith.constant 0 : i32
    %c0_i32_1 = arith.constant 0 : i32
    return %c0_i32, %c0_i32_0 : i32, i32
  }
  func.func @transform_7(%arg0: i32) -> (i32, i32) {
    %c0_i32 = arith.constant 0 : i32
    %c0_i32_0 = arith.constant 0 : i32
    %c0_i32_1 = arith.constant 0 : i32
    return %c0_i32, %c0_i32_0 : i32, i32
  }
  func.func @transform_8(%arg0: i32) -> (i32, i32) {
    %c0_i32 = arith.constant 0 : i32
    %c0_i32_0 = arith.constant 0 : i32
    %c0_i32_1 = arith.constant 0 : i32
    return %c0_i32, %c0_i32_0 : i32, i32
  }
  func.func @transform_9(%arg0: i32) -> (i32, i32) {
    %c0_i32 = arith.constant 0 : i32
    %c0_i32_0 = arith.constant 0 : i32
    return %c0_i32, %arg0 : i32, i32
  }
}

</mosaic_0001>

<llo_original>
// kernel: tpu_custom_call.1
$region0: #{tpu_custom_call.1}
  #allocation0 [shape = 'u32[]', space=smem, size = 0x4, offset = 0x4, fixed_abs, tag = 'smem constant byte address 0x4 - core index']
  #allocation1 [shape = 'u32[144,128]{1,0:T(1,128)}', space=vmem, size = 0x12000, scoped, tag = 'internal scratch']
  #allocation2 [shape = 'f32[1,1]{1,0:T(1,128)S(1)}', space=vmem, size = 0x200, scoped, tag = 'scoped memory for tpu_custom_call.1']
  %s0 = inlined_call_operand.vmem [shape: f32[8,1024], index: 0, kind: input, shape index: {}]
  %s1 = inlined_call_operand.vmem [shape: f32[32,8], index: 1, kind: input, shape index: {}]
  %s2 = inlined_call_operand.vmem [shape: f32[32,1], index: 2, kind: input, shape index: {}]
  %s3 = inlined_call_operand.vmem [shape: f32[32,32], index: 3, kind: input, shape index: {}]
  %s4 = inlined_call_operand.vmem [shape: f32[32,1], index: 4, kind: input, shape index: {}]
  %s5 = inlined_call_operand.vmem [shape: f32[32,32], index: 5, kind: input, shape index: {}]
  %s6 = inlined_call_operand.vmem [shape: f32[32,1], index: 6, kind: input, shape index: {}]
  %s7 = inlined_call_operand.vmem [shape: f32[1,32], index: 7, kind: input, shape index: {}]
  %s8 = inlined_call_operand.<no memory space> [shape: f32[1,1], index: 8, kind: input, shape index: {}]
  %s9 = inlined_call_operand.hbm [shape: f32[1,1024], index: 9, kind: output, shape index: {}]
  %s10 = sld [smem:[#allocation0]]
  $region69: #{tpu_custom_call.1} parent=0
    _
  %s12 = ssub.s32 1, %s10
  %s13 = scalar_select 0, %s12, %s10
  %v14 = vstv %s8
  %15 = vst [vmem:[#allocation2] sm:$0x1] %v14
  $region1: #{tpu_custom_call.1} parent=0
    #allocation3 [shape = 'u8[4096]{0}', space=vmem, size = 0x1000, scoped, tag = 'output window, operand 0']
    #allocation4 [shape = 's32[2]{0}', space=sflag, size = 0x8, scoped, tag = 'scoped memory for tpu_custom_call.1']
    %16 = vsyncpa [#allocation4], 0
    %s17 = scalar_lea.sflag [#allocation4], 1
    %18 = vsyncpa %s17, 0
    loop: start=0, step=1, limit=4
    $region2: #{tpu_custom_call.1} parent=1 // loop_pre_header
      _
    $region3: #{tpu_custom_call.1} parent=1 // loop_header
      %s20 = sphi 0, %s24
      %p21 = scmp.ge.s32.totalorder %s20, 4
      %s30 = sphi 0, %s32
      %s33 = sphi 0, %s30
      %s34 = sphi 0, %s33
      %s50 = sphi 0, %s34
      %s54 = sphi 0, %s54
      %s56 = sphi 0, %s54
      %s57 = sphi 0, %s56
      %s71 = sphi 0, %s57
      %s75 = sphi 0, %s75
      %s77 = sphi 0, %s75
      %s78 = sphi 0, %s77
      %s92 = sphi 0, %s78
      %s96 = sphi 0, %s96
      %s98 = sphi 0, %s96
      %s99 = sphi 0, %s98
      %s113 = sphi 0, %s99
      %s117 = sphi 0, %s117
      %s119 = sphi 0, %s117
      %s120 = sphi 0, %s119
      %s134 = sphi 0, %s120
      %s138 = sphi 0, %s138
      %s140 = sphi 0, %s138
      %s141 = sphi 0, %s140
      %s155 = sphi 0, %s141
      %s159 = sphi 0, %s159
      %s161 = sphi 0, %s159
      %s162 = sphi 0, %s161
      %s176 = sphi 0, %s162
      %s180 = sphi 0, %s180
      %s182 = sphi 0, %s180
      %s183 = sphi 0, %s182
      %s197 = sphi 0, %s183
      %s201 = sphi 0, %s201
      %s203 = sphi 0, %s201
      %s204 = sphi 0, %s203
      %s218 = sphi 0, %s204
      %s224 = sphi 0, %s226
      %s227 = sphi 0, %s224
      %s228 = sphi 0, %s227
      %s244 = sphi 0, %s228
    $region4: #{tpu_custom_call.1} parent=1 // loop_header_branch
      %23 = sbr.rel (%p21) target = $region8
    $region5: #{tpu_custom_call.1} parent=1 // loop_body
      %s25 = ssub.s32 %s20, 1
      %s26 = ssub.s32 %s20, 2
      %s27 = sadd.s32 %s20, 1
      %s28 = ssub.s32 %s20, %s27
      %p29 = scmp.eq.s32.totalorder %s28, 0
      %s31 = sadd.s32 %s30, 1
      %s32 = scalar_select %p29, %s30, %s31
      %p35 = pneg %p29
      %p36 = scmp.eq.s32.totalorder %s20, 1
      %p37 = por %p35, %p36
      %p38 = scmp.ne.s32.totalorder %s30, %s33
      %p39 = scmp.eq.s32.totalorder %s20, 0
      %p40 = por %p38, %p39
      %p41 = scmp.ne.s32.totalorder %s30, %s33
      %p42 = scmp.eq.s32.totalorder %s25, 1
      %p43 = por %p41, %p42
      %p44 = scmp.ne.s32.totalorder %s33, %s34
      %p45 = scmp.eq.s32.totalorder %s25, 0
      %p46 = por %p44, %p45
      %p47 = scmp.ne.s32.totalorder %s33, %s34
      %p48 = scmp.eq.s32.totalorder %s26, 1
      %p49 = por %p47, %p48
      %p51 = scmp.ne.s32.totalorder %s34, %s50
      %p52 = scmp.eq.s32.totalorder %s26, 0
      %p53 = por %p51, %p52
      %s55 = sadd.s32 %s54, 1
      %p58 = scmp.eq.s32.totalorder %s20, 1
      %p59 = scmp.ne.s32.totalorder %s54, %s56
      %p60 = scmp.eq.s32.totalorder %s20, 0
      %p61 = por %p59, %p60
      %p62 = scmp.ne.s32.totalorder %s54, %s56
      %p63 = scmp.eq.s32.totalorder %s25, 1
      %p64 = por %p62, %p63
      %p65 = scmp.ne.s32.totalorder %s56, %s57
      %p66 = scmp.eq.s32.totalorder %s25, 0
      %p67 = por %p65, %p66
      %p68 = scmp.ne.s32.totalorder %s56, %s57
      %p69 = scmp.eq.s32.totalorder %s26, 1
      %p70 = por %p68, %p69
      %p72 = scmp.ne.s32.totalorder %s57, %s71
      %p73 = scmp.eq.s32.totalorder %s26, 0
      %p74 = por %p72, %p73
      %s76 = sadd.s32 %s75, 1
      %p79 = scmp.eq.s32.totalorder %s20, 1
      %p80 = scmp.ne.s32.totalorder %s75, %s77
      %p81 = scmp.eq.s32.totalorder %s20, 0
      %p82 = por %p80, %p81
      %p83 = scmp.ne.s32.totalorder %s75, %s77
      %p84 = scmp.eq.s32.totalorder %s25, 1
      %p85 = por %p83, %p84
      %p86 = scmp.ne.s32.totalorder %s77, %s78
      %p87 = scmp.eq.s32.totalorder %s25, 0
      %p88 = por %p86, %p87
      %p89 = scmp.ne.s32.totalorder %s77, %s78
      %p90 = scmp.eq.s32.totalorder %s26, 1
      %p91 = por %p89, %p90
      %p93 = scmp.ne.s32.totalorder %s78, %s92
      %p94 = scmp.eq.s32.totalorder %s26, 0
      %p95 = por %p93, %p94
      %s97 = sadd.s32 %s96, 1
      %p100 = scmp.eq.s32.totalorder %s20, 1
      %p101 = scmp.ne.s32.totalorder %s96, %s98
      %p102 = scmp.eq.s32.totalorder %s20, 0
      %p103 = por %p101, %p102
      %p104 = scmp.ne.s32.totalorder %s96, %s98
      %p105 = scmp.eq.s32.totalorder %s25, 1
      %p106 = por %p104, %p105
      %p107 = scmp.ne.s32.totalorder %s98, %s99
      %p108 = scmp.eq.s32.totalorder %s25, 0
      %p109 = por %p107, %p108
      %p110 = scmp.ne.s32.totalorder %s98, %s99
      %p111 = scmp.eq.s32.totalorder %s26, 1
      %p112 = por %p110, %p111
      %p114 = scmp.ne.s32.totalorder %s99, %s113
      %p115 = scmp.eq.s32.totalorder %s26, 0
      %p116 = por %p114, %p115
      %s118 = sadd.s32 %s117, 1
      %p121 = scmp.eq.s32.totalorder %s20, 1
      %p122 = scmp.ne.s32.totalorder %s117, %s119
      %p123 = scmp.eq.s32.totalorder %s20, 0
      %p124 = por %p122, %p123
      %p125 = scmp.ne.s32.totalorder %s117, %s119
      %p126 = scmp.eq.s32.totalorder %s25, 1
      %p127 = por %p125, %p126
      %p128 = scmp.ne.s32.totalorder %s119, %s120
      %p129 = scmp.eq.s32.totalorder %s25, 0
      %p130 = por %p128, %p129
      %p131 = scmp.ne.s32.totalorder %s119, %s120
      %p132 = scmp.eq.s32.totalorder %s26, 1
      %p133 = por %p131, %p132
      %p135 = scmp.ne.s32.totalorder %s120, %s134
      %p136 = scmp.eq.s32.totalorder %s26, 0
      %p137 = por %p135, %p136
      %s139 = sadd.s32 %s138, 1
      %p142 = scmp.eq.s32.totalorder %s20, 1
      %p143 = scmp.ne.s32.totalorder %s138, %s140
      %p144 = scmp.eq.s32.totalorder %s20, 0
      %p145 = por %p143, %p144
      %p146 = scmp.ne.s32.totalorder %s138, %s140
      %p147 = scmp.eq.s32.totalorder %s25, 1
      %p148 = por %p146, %p147
      %p149 = scmp.ne.s32.totalorder %s140, %s141
      %p150 = scmp.eq.s32.totalorder %s25, 0
      %p151 = por %p149, %p150
      %p152 = scmp.ne.s32.totalorder %s140, %s141
      %p153 = scmp.eq.s32.totalorder %s26, 1
      %p154 = por %p152, %p153
      %p156 = scmp.ne.s32.totalorder %s141, %s155
      %p157 = scmp.eq.s32.totalorder %s26, 0
      %p158 = por %p156, %p157
      %s160 = sadd.s32 %s159, 1
      %p163 = scmp.eq.s32.totalorder %s20, 1
      %p164 = scmp.ne.s32.totalorder %s159, %s161
      %p165 = scmp.eq.s32.totalorder %s20, 0
      %p166 = por %p164, %p165
      %p167 = scmp.ne.s32.totalorder %s159, %s161
      %p168 = scmp.eq.s32.totalorder %s25, 1
      %p169 = por %p167, %p168
      %p170 = scmp.ne.s32.totalorder %s161, %s162
      %p171 = scmp.eq.s32.totalorder %s25, 0
      %p172 = por %p170, %p171
      %p173 = scmp.ne.s32.totalorder %s161, %s162
      %p174 = scmp.eq.s32.totalorder %s26, 1
      %p175 = por %p173, %p174
      %p177 = scmp.ne.s32.totalorder %s162, %s176
      %p178 = scmp.eq.s32.totalorder %s26, 0
      %p179 = por %p177, %p178
      %s181 = sadd.s32 %s180, 1
      %p184 = scmp.eq.s32.totalorder %s20, 1
      %p185 = scmp.ne.s32.totalorder %s180, %s182
      %p186 = scmp.eq.s32.totalorder %s20, 0
      %p187 = por %p185, %p186
      %p188 = scmp.ne.s32.totalorder %s180, %s182
      %p189 = scmp.eq.s32.totalorder %s25, 1
      %p190 = por %p188, %p189
      %p191 = scmp.ne.s32.totalorder %s182, %s183
      %p192 = scmp.eq.s32.totalorder %s25, 0
      %p193 = por %p191, %p192
      %p194 = scmp.ne.s32.totalorder %s182, %s183
      %p195 = scmp.eq.s32.totalorder %s26, 1
      %p196 = por %p194, %p195
      %p198 = scmp.ne.s32.totalorder %s183, %s197
      %p199 = scmp.eq.s32.totalorder %s26, 0
      %p200 = por %p198, %p199
      %s202 = sadd.s32 %s201, 1
      %p205 = scmp.eq.s32.totalorder %s20, 1
      %p206 = scmp.ne.s32.totalorder %s201, %s203
      %p207 = scmp.eq.s32.totalorder %s20, 0
      %p208 = por %p206, %p207
      %p209 = scmp.ne.s32.totalorder %s201, %s203
      %p210 = scmp.eq.s32.totalorder %s25, 1
      %p211 = por %p209, %p210
      %p212 = scmp.ne.s32.totalorder %s203, %s204
      %p213 = scmp.eq.s32.totalorder %s25, 0
      %p214 = por %p212, %p213
      %p215 = scmp.ne.s32.totalorder %s203, %s204
      %p216 = scmp.eq.s32.totalorder %s26, 1
      %p217 = por %p215, %p216
      %p219 = scmp.ne.s32.totalorder %s204, %s218
      %p220 = scmp.eq.s32.totalorder %s26, 0
      %p221 = por %p219, %p220
      %s222 = ssub.s32 %s20, %s27
      %p223 = scmp.eq.s32.totalorder %s222, 0
      %s225 = sadd.s32 %s224, 1
      %s226 = scalar_select %p223, %s224, %s225
      %p229 = pneg %p223
      %p230 = scmp.eq.s32.totalorder %s20, 1
      %p231 = por %p229, %p230
      %p232 = scmp.ne.s32.totalorder %s224, %s227
      %p233 = scmp.eq.s32.totalorder %s20, 0
      %p234 = por %p232, %p233
      %p235 = scmp.ne.s32.totalorder %s224, %s227
      %p236 = scmp.eq.s32.totalorder %s25, 1
      %p237 = por %p235, %p236
      %p238 = scmp.ne.s32.totalorder %s227, %s228
      %p239 = scmp.eq.s32.totalorder %s25, 0
      %p240 = por %p238, %p239
      %p241 = scmp.ne.s32.totalorder %s227, %s228
      %p242 = scmp.eq.s32.totalorder %s26, 1
      %p243 = por %p241, %p242
      %p245 = scmp.ne.s32.totalorder %s228, %s244
      %p246 = scmp.eq.s32.totalorder %s26, 0
      %p247 = por %p245, %p246
      %p248 = scmp.le.s32.totalorder 1, %s20
      %p249 = scmp.lt.s32.totalorder %s20, 3
      %p250 = pnand %p248, %p249
      %p251 = pneg %p250
      // Predicated region
      $region9: #{tpu_custom_call.1} parent=5 // pred_check
        _
      $region10: #{tpu_custom_call.1} parent=5 // pred_check_branch
        %253 = sbr.rel (%p250) target = $region12
      $region11: #{tpu_custom_call.1} parent=5 // pred_region
        %s254 = ssub.s32 %s20, 1
        // Predicated region
        $region13: #{tpu_custom_call.1} parent=11 // pred_check
          %p255 = pneg %p67
        $region14: #{tpu_custom_call.1} parent=11 // pred_check_branch
          %257 = sbr.rel (%p255) target = $region16
        $region15: #{tpu_custom_call.1} parent=11 // pred_region
          _
        $region16: #{tpu_custom_call.1} parent=11 // pred_fallthru
          _
        // Predicated region
        $region17: #{tpu_custom_call.1} parent=11 // pred_check
          %p258 = pneg %p88
        $region18: #{tpu_custom_call.1} parent=11 // pred_check_branch
          %260 = sbr.rel (%p258) target = $region20
        $region19: #{tpu_custom_call.1} parent=11 // pred_region
          _
        $region20: #{tpu_custom_call.1} parent=11 // pred_fallthru
          _
        // Predicated region
        $region21: #{tpu_custom_call.1} parent=11 // pred_check
          %p261 = pneg %p109
        $region22: #{tpu_custom_call.1} parent=11 // pred_check_branch
          %263 = sbr.rel (%p261) target = $region24
        $region23: #{tpu_custom_call.1} parent=11 // pred_region
          _
        $region24: #{tpu_custom_call.1} parent=11 // pred_fallthru
          _
        // Predicated region
        $region25: #{tpu_custom_call.1} parent=11 // pred_check
          %p264 = pneg %p130
        $region26: #{tpu_custom_call.1} parent=11 // pred_check_branch
          %266 = sbr.rel (%p264) target = $region28
        $region27: #{tpu_custom_call.1} parent=11 // pred_region
          _
        $region28: #{tpu_custom_call.1} parent=11 // pred_fallthru
          _
        // Predicated region
        $region29: #{tpu_custom_call.1} parent=11 // pred_check
          %p267 = pneg %p151
        $region30: #{tpu_custom_call.1} parent=11 // pred_check_branch
          %269 = sbr.rel (%p267) target = $region32
        $region31: #{tpu_custom_call.1} parent=11 // pred_region
          _
        $region32: #{tpu_custom_call.1} parent=11 // pred_fallthru
          _
        // Predicated region
        $region33: #{tpu_custom_call.1} parent=11 // pred_check
          %p270 = pneg %p172
        $region34: #{tpu_custom_call.1} parent=11 // pred_check_branch
          %272 = sbr.rel (%p270) target = $region36
        $region35: #{tpu_custom_call.1} parent=11 // pred_region
          _
        $region36: #{tpu_custom_call.1} parent=11 // pred_fallthru
          _
        // Predicated region
        $region37: #{tpu_custom_call.1} parent=11 // pred_check
          %p273 = pneg %p193
        $region38: #{tpu_custom_call.1} parent=11 // pred_check_branch
          %275 = sbr.rel (%p273) target = $region40
        $region39: #{tpu_custom_call.1} parent=11 // pred_region
          _
        $region40: #{tpu_custom_call.1} parent=11 // pred_fallthru
          _
        // Predicated region
        $region41: #{tpu_custom_call.1} parent=11 // pred_check
          %p276 = pneg %p214
        $region42: #{tpu_custom_call.1} parent=11 // pred_check_branch
          %278 = sbr.rel (%p276) target = $region44
        $region43: #{tpu_custom_call.1} parent=11 // pred_region
          _
        $region44: #{tpu_custom_call.1} parent=11 // pred_fallthru
          _
      $region12: #{tpu_custom_call.1} parent=5 // pred_fallthru
        _
      %p279 = scmp.lt.s32.totalorder %s20, 2
      // Predicated region
      $region45: #{tpu_custom_call.1} parent=5 // pred_check
        %p280 = pneg %p279
      $region46: #{tpu_custom_call.1} parent=5 // pred_check_branch
        %282 = sbr.rel (%p280) target = $region48
      $region47: #{tpu_custom_call.1} parent=5 // pred_region
        // Predicated region
        $region49: #{tpu_custom_call.1} parent=47 // pred_check
          %p283 = pneg %p40
        $region50: #{tpu_custom_call.1} parent=47 // pred_check_branch
          %285 = sbr.rel (%p283) target = $region52
        $region51: #{tpu_custom_call.1} parent=47 // pred_region
          %s286 = smul.u32 4, %s20
          %p287 = scmp.lt.s32.totalorder %s286, 7
          %s288 = scalar_select %p287, %s286, 7
          %s289 = smul.addr %s288, 8
          %s290 = scalar_lea.vmem %s0, %s289
          %s291 = smul.u32 4, %s20
        $region52: #{tpu_custom_call.1} parent=47 // pred_fallthru
          _
      $region48: #{tpu_custom_call.1} parent=5 // pred_fallthru
        _
      %p292 = scmp.le.s32.totalorder 1, %s20
      %p293 = scmp.lt.s32.totalorder %s20, 3
      %p294 = pnand %p292, %p293
      %p295 = pneg %p294
      // Predicated region
      $region53: #{tpu_custom_call.1} parent=5 // pred_check
        _
      $region54: #{tpu_custom_call.1} parent=5 // pred_check_branch
        %297 = sbr.rel (%p294) target = $region56
      $region55: #{tpu_custom_call.1} parent=5 // pred_region
        %s298 = ssub.s32 %s20, 1
        %s299 = smul.u32 4, %s25
        %p300 = scmp.lt.s32.totalorder %s299, 7
        %s301 = scalar_select %p300, %s299, 7
        %s302 = smul.addr %s301, 8
        %s303 = scalar_lea.vmem %s0, %s302
        %p304 = pneg %p46
        %p305 = pneg %p43
        %p306 = pneg %p67
        %p307 = pneg %p64
        %p308 = pneg %p88
        %p309 = pneg %p85
        %p310 = pneg %p109
        %p311 = pneg %p106
        %p312 = pneg %p130
        %p313 = pneg %p127
        %p314 = pneg %p151
        %p315 = pneg %p148
        %p316 = pneg %p172
        %p317 = pneg %p169
        %p318 = pneg %p193
        %p319 = pneg %p190
        %p320 = pneg %p214
        %p321 = pneg %p211
        %p322 = pneg %p240
        %p323 = pneg %p237
        %s324 = sand.u32 %s227, 1
        %s325 = scalar_lea.sflag [#allocation4], %s324
        %s326 = sand.u32 %s227, 1
        %s327 = smul.addr %s326, 4
        %s328 = scalar_lea.vmem [#allocation3], %s327
        %s329 = smul.u32 4, %s25
        %p330 = scmp.lt.s32.totalorder %s329, 7
        %s331 = scalar_select %p330, %s329, 7
        %s332 = smul.addr %s331, 8
        %s333 = scalar_lea.vmem %s0, %s332
        %s334 = smul.u32 4, %s25
        %s335 = smul.u32 4, %s25
        %v336 = vld [vmem:[%s333] sm:$0xff]
        %v337 = vld [vmem:[%s333 + $0x8] sm:$0xff]
        %v338 = vld [vmem:[%s333 + $0x10] sm:$0xff]
        %v339 = vld [vmem:[%s333 + $0x18] sm:$0xff]
        %v340 = vld [vmem:[%s1] sm:$0xff]
        %v341 = vld [vmem:[%s1 + $0x8] sm:$0xff]
        %v342 = vld [vmem:[%s1 + $0x10] sm:$0xff]
        %v343 = vld [vmem:[%s1 + $0x18] sm:$0xff]
        %v344 = vld [vmem:[%s2] sm:$0xff]
        %v345 = vld [vmem:[%s2 + $0x8] sm:$0xff]
        %v346 = vld [vmem:[%s2 + $0x10] sm:$0xff]
        %v347 = vld [vmem:[%s2 + $0x18] sm:$0xff]
        %349 = vset.pattern.permute.xlu0 0
        %350 = vperm.xlu0 %349, %v344
        %v351 = vpop.permute.xlu0 %350
        %354 = vset.pattern.permute.xlu0 0
        %355 = vperm.xlu0 %354, %v345
        %v356 = vpop.permute.xlu0 %355
        %359 = vset.pattern.permute.xlu0 0
        %360 = vperm.xlu0 %359, %v346
        %v361 = vpop.permute.xlu0 %360
        %364 = vset.pattern.permute.xlu0 0
        %365 = vperm.xlu0 %364, %v347
        %v366 = vpop.permute.xlu0 %365
        %vm368 = vcmask 64512
        %v370 = vsel %vm368, %v340, 0
        %v373 = vsel %vm368, %v341, 0
        %v376 = vsel %vm368, %v342, 0
        %v379 = vsel %vm368, %v343, 0
        %381 = vmatprep.subr.mxu0 %v337
        %382 = vmatpush1.msra.mxu0 %v336
        %383 = vmatprep.subr.mxu0 0.0
        %384 = vmatpush1.msra.mxu0 0.0
        %385 = vmatprep.subr.mxu0 0.0
        %386 = vmatpush1.msra.mxu0 0.0
        %387 = vmatprep.subr.mxu0 0.0
        %388 = vmatpush1.msra.mxu0 0.0
        %389 = vmatprep.subr.mxu0 0.0
        %390 = vmatpush1.msra.mxu0 0.0
        %391 = vmatprep.subr.mxu0 0.0
        %392 = vmatpush1.msra.mxu0 0.0
        %393 = vmatprep.subr.mxu0 0.0
        %394 = vmatpush1.msra.mxu0 0.0
        %395 = vmatprep.subr.mxu0 0.0
        %396 = vmatpush1.msra.mxu0 0.0
        %397 = vmatprep.subr.mxu0 0.0
        %398 = vmatpush1.msra.mxu0 0.0
        %399 = vmatprep.subr.mxu0 0.0
        %400 = vmatpush1.msra.mxu0 0.0
        %401 = vmatprep.subr.mxu0 0.0
        %402 = vmatpush1.msra.mxu0 0.0
        %403 = vmatprep.subr.mxu0 0.0
        %404 = vmatpush1.msra.mxu0 0.0
        %405 = vmatprep.subr.mxu0 0.0
        %406 = vmatpush1.msra.mxu0 0.0
        %407 = vmatprep.subr.mxu0 0.0
        %408 = vmatpush1.msra.mxu0 0.0
        %409 = vmatprep.subr.mxu0 0.0
        %410 = vmatpush1.msra.mxu0 0.0
        %411 = vmatprep.subr.mxu0 0.0
        %412 = vmatpush1.msra.mxu0 0.0
        %413 = vmatprep.subr.mxu0 0.0
        %414 = vmatpush1.msra.mxu0 0.0
        %415 = vmatprep.subr.mxu0 0.0
        %416 = vmatpush1.msra.mxu0 0.0
        %417 = vmatprep.subr.mxu0 0.0
        %418 = vmatpush1.msra.mxu0 0.0
        %419 = vmatprep.subr.mxu0 0.0
        %420 = vmatpush1.msra.mxu0 0.0
        %421 = vmatprep.subr.mxu0 0.0
        %422 = vmatpush1.msra.mxu0 0.0
        %423 = vmatprep.subr.mxu0 0.0
        %424 = vmatpush1.msra.mxu0 0.0
        %425 = vmatprep.subr.mxu0 0.0
        %426 = vmatpush1.msra.mxu0 0.0
        %427 = vmatprep.subr.mxu0 0.0
        %428 = vmatpush1.msra.mxu0 0.0
        %429 = vmatprep.subr.mxu0 0.0
        %430 = vmatpush1.msra.mxu0 0.0
        %431 = vmatprep.subr.mxu0 0.0
        %432 = vmatpush1.msra.mxu0 0.0
        %433 = vmatprep.subr.mxu0 0.0
        %434 = vmatpush1.msra.mxu0 0.0
        %435 = vmatprep.subr.mxu0 0.0
        %436 = vmatpush1.msra.mxu0 0.0
        %437 = vmatprep.subr.mxu0 0.0
        %438 = vmatpush1.msra.mxu0 0.0
        %439 = vmatprep.subr.mxu0 0.0
        %440 = vmatpush1.msra.mxu0 0.0
        %441 = vmatprep.subr.mxu0 0.0
        %442 = vmatpush1.msra.mxu0 0.0
        %443 = vmatprep.subr.mxu0 0.0
        %444 = vmatpush1.msra.mxu0 0.0
        %445 = vmatprep.mubr.f32.mxu0 0.0
        %446 = vmatmul.mubr.f32.gmra.mrb[0].mxu0 %v370
        %v447 = vpop.f32.mrb[0].mxu0
        %v448 = vadd.f32 %v351, %v447
        %v449 = vpop.f32.mrb[0].mxu0
        %v450 = vadd.f32 %v351, %v449
        %451 = vmatprep.mubr.f32.mxu0 0.0
        %452 = vmatmul.mubr.f32.gmra.mrb[0].mxu0 %v373
        %v453 = vpop.f32.mrb[0].mxu0
        %v454 = vadd.f32 %v356, %v453
        %v455 = vpop.f32.mrb[0].mxu0
        %v456 = vadd.f32 %v356, %v455
        %457 = vmatprep.mubr.f32.mxu0 0.0
        %458 = vmatmul.mubr.f32.gmra.mrb[0].mxu0 %v376
        %v459 = vpop.f32.mrb[0].mxu0
        %v460 = vadd.f32 %v361, %v459
        %v461 = vpop.f32.mrb[0].mxu0
        %v462 = vadd.f32 %v361, %v461
        %463 = vmatprep.mubr.f32.mxu0 0.0
        %464 = vmatmul.mubr.f32.gmra.mrb[0].mxu0 %v379
        %v465 = vpop.f32.mrb[0].mxu0
        %v466 = vadd.f32 %v366, %v465
        %v467 = vpop.f32.mrb[0].mxu0
        %v468 = vadd.f32 %v366, %v467
        %469 = vdwg.mxu0
        %470 = vmatprep.subr.mxu0 %v339
        %471 = vmatpush1.msra.mxu0 %v338
        %472 = vmatprep.subr.mxu0 0.0
        %473 = vmatpush1.msra.mxu0 0.0
        %474 = vmatprep.subr.mxu0 0.0
        %475 = vmatpush1.msra.mxu0 0.0
        %476 = vmatprep.subr.mxu0 0.0
        %477 = vmatpush1.msra.mxu0 0.0
        %478 = vmatprep.subr.mxu0 0.0
        %479 = vmatpush1.msra.mxu0 0.0
        %480 = vmatprep.subr.mxu0 0.0
        %481 = vmatpush1.msra.mxu0 0.0
        %482 = vmatprep.subr.mxu0 0.0
        %483 = vmatpush1.msra.mxu0 0.0
        %484 = vmatprep.subr.mxu0 0.0
        %485 = vmatpush1.msra.mxu0 0.0
        %486 = vmatprep.subr.mxu0 0.0
        %487 = vmatpush1.msra.mxu0 0.0
        %488 = vmatprep.subr.mxu0 0.0
        %489 = vmatpush1.msra.mxu0 0.0
        %490 = vmatprep.subr.mxu0 0.0
        %491 = vmatpush1.msra.mxu0 0.0
        %492 = vmatprep.subr.mxu0 0.0
        %493 = vmatpush1.msra.mxu0 0.0
        %494 = vmatprep.subr.mxu0 0.0
        %495 = vmatpush1.msra.mxu0 0.0
        %496 = vmatprep.subr.mxu0 0.0
        %497 = vmatpush1.msra.mxu0 0.0
        %498 = vmatprep.subr.mxu0 0.0
        %499 = vmatpush1.msra.mxu0 0.0
        %500 = vmatprep.subr.mxu0 0.0
        %501 = vmatpush1.msra.mxu0 0.0
        %502 = vmatprep.subr.mxu0 0.0
        %503 = vmatpush1.msra.mxu0 0.0
        %504 = vmatprep.subr.mxu0 0.0
        %505 = vmatpush1.msra.mxu0 0.0
        %506 = vmatprep.subr.mxu0 0.0
        %507 = vmatpush1.msra.mxu0 0.0
        %508 = vmatprep.subr.mxu0 0.0
        %509 = vmatpush1.msra.mxu0 0.0
        %510 = vmatprep.subr.mxu0 0.0
        %511 = vmatpush1.msra.mxu0 0.0
        %512 = vmatprep.subr.mxu0 0.0
        %513 = vmatpush1.msra.mxu0 0.0
        %514 = vmatprep.subr.mxu0 0.0
        %515 = vmatpush1.msra.mxu0 0.0
        %516 = vmatprep.subr.mxu0 0.0
        %517 = vmatpush1.msra.mxu0 0.0
        %518 = vmatprep.subr.mxu0 0.0
        %519 = vmatpush1.msra.mxu0 0.0
        %520 = vmatprep.subr.mxu0 0.0
        %521 = vmatpush1.msra.mxu0 0.0
        %522 = vmatprep.subr.mxu0 0.0
        %523 = vmatpush1.msra.mxu0 0.0
        %524 = vmatprep.subr.mxu0 0.0
        %525 = vmatpush1.msra.mxu0 0.0
        %526 = vmatprep.subr.mxu0 0.0
        %527 = vmatpush1.msra.mxu0 0.0
        %528 = vmatprep.subr.mxu0 0.0
        %529 = vmatpush1.msra.mxu0 0.0
        %530 = vmatprep.subr.mxu0 0.0
        %531 = vmatpush1.msra.mxu0 0.0
        %532 = vmatprep.subr.mxu0 0.0
        %533 = vmatpush1.msra.mxu0 0.0
        %534 = vmatprep.mubr.f32.mxu0 0.0
        %535 = vmatmul.mubr.f32.gmra.mrb[0].mxu0 %v370
        %v536 = vpop.f32.mrb[0].mxu0
        %v537 = vadd.f32 %v351, %v536
        %v538 = vpop.f32.mrb[0].mxu0
        %v539 = vadd.f32 %v351, %v538
        %540 = vmatprep.mubr.f32.mxu0 0.0
        %541 = vmatmul.mubr.f32.gmra.mrb[0].mxu0 %v373
        %v542 = vpop.f32.mrb[0].mxu0
        %v543 = vadd.f32 %v356, %v542
        %v544 = vpop.f32.mrb[0].mxu0
        %v545 = vadd.f32 %v356, %v544
        %546 = vmatprep.mubr.f32.mxu0 0.0
        %547 = vmatmul.mubr.f32.gmra.mrb[0].mxu0 %v376
        %v548 = vpop.f32.mrb[0].mxu0
        %v549 = vadd.f32 %v361, %v548
        %v550 = vpop.f32.mrb[0].mxu0
        %v551 = vadd.f32 %v361, %v550
        %552 = vmatprep.mubr.f32.mxu0 0.0
        %553 = vmatmul.mubr.f32.gmra.mrb[0].mxu0 %v379
        %v554 = vpop.f32.mrb[0].mxu0
        %v555 = vadd.f32 %v366, %v554
        %v556 = vpop.f32.mrb[0].mxu0
        %v557 = vadd.f32 %v366, %v556
        %558 = vdwg.mxu0
        %v559 = vand.u32 2147483647, %v448
        %vm560 = vcmp.le.f32.partialorder %v559, 0.7853982
        %vm561 = vcmp.lt.s32.totalorder %v448, 0
        %v562 = vand.u32 %v448, 2139095040
        %v563 = vshrl.u32 %v562, 23
        %v564 = vsub.s32 %v563, 127
        %v565 = vand.u32 2147483647, %v448
        %v566 = vand.u32 %v565, 8388607
        %v567 = vor.u32 %v566, 8388608
        %v568 = vsub.s32 0, %v567
        %v569 = vadd.s32 %v564, 1
        %vm570 = vcmp.gt.s32.totalorder %v569, 0
        %v571 = vsel %vm570, %v569, 0
        %v572 = vshrl.u32 %v571, 5
        %v573 = vand.u32 %v571, 31
        %v574 = vsub.s32 32, %v573
        %v575 = vshrl.u32 683565275, %v574
        %v576 = vshll.u32 683565275, %v573
        %v577 = vshrl.u32 2475754826, %v574
        %v578 = vor.u32 %v576, %v577
        %v579 = vshll.u32 2475754826, %v573
        %v580 = vshrl.u32 2131351028, %v574
        %v581 = vor.u32 %v579, %v580
        %v582 = vshll.u32 2131351028, %v573
        %v583 = vshrl.u32 2102212464, %v574
        %v584 = vor.u32 %v582, %v583
        %v585 = vshll.u32 2102212464, %v573
        %v586 = vshrl.u32 920167782, %v574
        %v587 = vor.u32 %v585, %v586
        %v588 = vshll.u32 920167782, %v573
        %v589 = vshrl.u32 1326507024, %v574
        %v590 = vor.u32 %v588, %v589
        %vm591 = vcmp.lt.s32.totalorder %v572, 1
        %vm592 = vcmp.lt.s32.totalorder %v572, 2
        %vm593 = vcmp.lt.s32.totalorder %v572, 3
        %vm594 = vcmp.lt.s32.totalorder %v572, 4
        %v595 = vsel %vm591, %v575, %v578
        %v596 = vsel %vm594, %v584, 2102212464
        %v597 = vsel %vm593, %v581, %v596
        %v598 = vsel %vm592, %v595, %v597
        %v599 = vsel %vm591, %v578, %v581
        %v600 = vsel %vm594, %v587, 920167782
        %v601 = vsel %vm593, %v584, %v600
        %v602 = vsel %vm592, %v599, %v601
        %v603 = vsel %vm591, %v581, %v584
        %v604 = vsel %vm594, %v590, 1326507024
        %v605 = vsel %vm593, %v587, %v604
        %v606 = vsel %vm592, %v603, %v605
        %v607 = vshll.u32 %v567, 8
        %v608 = vmul.u32.u64.compose %v607, %v606
        %v609 = vextract.low.u32 %v608
        %v610 = vextract.high.u32 %v608
        %v611 = vmul.u32.u64.compose %v607, %v602
        %v612 = vextract.low.u32 %v611
        %v613 = vextract.high.u32 %v611
        %v614 = vmul.u32 %v607, %v598
        %v615 = vadd.s32 %v610, %v612
        %vm616 = vc.u32 %v610, %v612
        %v617 = vadd.s32 %v613, 1
        %v618 = vsel %vm616, %v617, %v613
        %v619 = vadd.s32 %v614, %v618
        %v620 = vadd.s32 %v619, 536870912
        %v621 = vshrl.u32 %v620, 30
        %v622 = vshll.u32 %v621, 30
        %v623 = vsub.s32 %v619, %v622
        %vm624 = vcmp.lt.s32.totalorder %v623, 0
        %v625 = vsub.s32 0, %v623
        %v626 = vsel %vm624, %v625, %v623
        %v627 = vclz %v626
        %v628 = vsub.s32 %v627, 2
        %vm629 = vcmp.gt.s32.totalorder 0, %v628
        %v630 = vsel %vm629, 0, %v628
        %v631 = vsub.s32 32, %v630
        %v632 = vshll.u32 %v623, %v630
        %v633 = vshrl.u32 %v615, %v631
        %v634 = vor.u32 %v632, %v633
        %v635 = vsub.s32 4294967266, %v630
        %v636 = vadd.s32 %v635, 127
        %v637 = vshll.u32 %v636, 23
        %v638 = vor.u32 4788187, %v637
        %v639 = vand.u32 2147483647, %v638
        %v641 = vcvt.s32.f32 %v634
        %v642 = vmul.f32 %v641, %v639
        %v643 = vxor.u32 %v642, 2147483648
        %v644 = vsel %vm561, %v643, %v642
        %v645 = vsub.s32 4, %v621
        %v646 = vsel %vm561, %v645, %v621
        %v647 = vsel %vm560, %v448, %v644
        %v648 = vsel %vm560, 0, %v646
        %v649 = vcosq.f32.pop %v647
        %v650 = vsinq.f32.pop %v647
        %vm651 = vweird.f32 %v448
        %v652 = vadd.s32 %v648, 3
        %v653 = vand.u32 %v652, 3
        %vm654 = vcmp.lt.s32.totalorder %v653, 2
        %vm655 = vcmp.eq.s32.totalorder %v653, 0
        %v656 = vxor.u32 %v650, 2147483648
        %v657 = vsel %vm655, %v649, %v656
        %vm658 = vcmp.eq.s32.totalorder %v653, 2
        %v659 = vxor.u32 %v649, 2147483648
        %v660 = vsel %vm658, %v659, %v650
        %v661 = vsel %vm654, %v657, %v660
        %v662 = vsel %vm651, nan, %v661
        %v663 = vand.u32 2147483647, %v450
        %vm664 = vcmp.le.f32.partialorder %v663, 0.7853982
        %vm665 = vcmp.lt.s32.totalorder %v450, 0
        %v666 = vand.u32 %v450, 2139095040
        %v667 = vshrl.u32 %v666, 23
        %v668 = vsub.s32 %v667, 127
        %v669 = vand.u32 2147483647, %v450
        %v670 = vand.u32 %v669, 8388607
        %v671 = vor.u32 %v670, 8388608
        %v672 = vsub.s32 0, %v671
        %v673 = vadd.s32 %v668, 1
        %vm674 = vcmp.gt.s32.totalorder %v673, 0
        %v675 = vsel %vm674, %v673, 0
        %v676 = vshrl.u32 %v675, 5
        %v677 = vand.u32 %v675, 31
        %v678 = vsub.s32 32, %v677
        %v679 = vshrl.u32 683565275, %v678
        %v680 = vshll.u32 683565275, %v677
        %v681 = vshrl.u32 2475754826, %v678
        %v682 = vor.u32 %v680, %v681
        %v683 = vshll.u32 2475754826, %v677
        %v684 = vshrl.u32 2131351028, %v678
        %v685 = vor.u32 %v683, %v684
        %v686 = vshll.u32 2131351028, %v677
        %v687 = vshrl.u32 2102212464, %v678
        %v688 = vor.u32 %v686, %v687
        %v689 = vshll.u32 2102212464, %v677
        %v690 = vshrl.u32 920167782, %v678
        %v691 = vor.u32 %v689, %v690
        %v692 = vshll.u32 920167782, %v677
        %v693 = vshrl.u32 1326507024, %v678
        %v694 = vor.u32 %v692, %v693
        %vm695 = vcmp.lt.s32.totalorder %v676, 1
        %vm696 = vcmp.lt.s32.totalorder %v676, 2
        %vm697 = vcmp.lt.s32.totalorder %v676, 3
        %vm698 = vcmp.lt.s32.totalorder %v676, 4
        %v699 = vsel %vm695, %v679, %v682
        %v700 = vsel %vm698, %v688, 2102212464
        %v701 = vsel %vm697, %v685, %v700
        %v702 = vsel %vm696, %v699, %v701
        %v703 = vsel %vm695, %v682, %v685
        %v704 = vsel %vm698, %v691, 920167782
        %v705 = vsel %vm697, %v688, %v704
        %v706 = vsel %vm696, %v703, %v705
        %v707 = vsel %vm695, %v685, %v688
        %v708 = vsel %vm698, %v694, 1326507024
        %v709 = vsel %vm697, %v691, %v708
        %v710 = vsel %vm696, %v707, %v709
        %v711 = vshll.u32 %v671, 8
        %v712 = vmul.u32.u64.compose %v711, %v710
        %v713 = vextract.low.u32 %v712
        %v714 = vextract.high.u32 %v712
        %v715 = vmul.u32.u64.compose %v711, %v706
        %v716 = vextract.low.u32 %v715
        %v717 = vextract.high.u32 %v715
        %v718 = vmul.u32 %v711, %v702
        %v719 = vadd.s32 %v714, %v716
        %vm720 = vc.u32 %v714, %v716
        %v721 = vadd.s32 %v717, 1
        %v722 = vsel %vm720, %v721, %v717
        %v723 = vadd.s32 %v718, %v722
        %v724 = vadd.s32 %v723, 536870912
        %v725 = vshrl.u32 %v724, 30
        %v726 = vshll.u32 %v725, 30
        %v727 = vsub.s32 %v723, %v726
        %vm728 = vcmp.lt.s32.totalorder %v727, 0
        %v729 = vsub.s32 0, %v727
        %v730 = vsel %vm728, %v729, %v727
        %v731 = vclz %v730
        %v732 = vsub.s32 %v731, 2
        %vm733 = vcmp.gt.s32.totalorder 0, %v732
        %v734 = vsel %vm733, 0, %v732
        %v735 = vsub.s32 32, %v734
        %v736 = vshll.u32 %v727, %v734
        %v737 = vshrl.u32 %v719, %v735
        %v738 = vor.u32 %v736, %v737
        %v739 = vsub.s32 4294967266, %v734
        %v740 = vadd.s32 %v739, 127
        %v741 = vshll.u32 %v740, 23
        %v742 = vor.u32 4788187, %v741
        %v743 = vand.u32 2147483647, %v742
        %v745 = vcvt.s32.f32 %v738
        %v746 = vmul.f32 %v745, %v743
        %v747 = vxor.u32 %v746, 2147483648
        %v748 = vsel %vm665, %v747, %v746
        %v749 = vsub.s32 4, %v725
        %v750 = vsel %vm665, %v749, %v725
        %v751 = vsel %vm664, %v450, %v748
        %v752 = vsel %vm664, 0, %v750
        %v753 = vcosq.f32.pop %v751
        %v754 = vsinq.f32.pop %v751
        %vm755 = vweird.f32 %v450
        %v756 = vadd.s32 %v752, 3
        %v757 = vand.u32 %v756, 3
        %vm758 = vcmp.lt.s32.totalorder %v757, 2
        %vm759 = vcmp.eq.s32.totalorder %v757, 0
        %v760 = vxor.u32 %v754, 2147483648
        %v761 = vsel %vm759, %v753, %v760
        %vm762 = vcmp.eq.s32.totalorder %v757, 2
        %v763 = vxor.u32 %v753, 2147483648
        %v764 = vsel %vm762, %v763, %v754
        %v765 = vsel %vm758, %v761, %v764
        %v766 = vsel %vm755, nan, %v765
        %v767 = vand.u32 2147483647, %v537
        %vm768 = vcmp.le.f32.partialorder %v767, 0.7853982
        %vm769 = vcmp.lt.s32.totalorder %v537, 0
        %v770 = vand.u32 %v537, 2139095040
        %v771 = vshrl.u32 %v770, 23
        %v772 = vsub.s32 %v771, 127
        %v773 = vand.u32 2147483647, %v537
        %v774 = vand.u32 %v773, 8388607
        %v775 = vor.u32 %v774, 8388608
        %v776 = vsub.s32 0, %v775
        %v777 = vadd.s32 %v772, 1
        %vm778 = vcmp.gt.s32.totalorder %v777, 0
        %v779 = vsel %vm778, %v777, 0
        %v780 = vshrl.u32 %v779, 5
        %v781 = vand.u32 %v779, 31
        %v782 = vsub.s32 32, %v781
        %v783 = vshrl.u32 683565275, %v782
        %v784 = vshll.u32 683565275, %v781
        %v785 = vshrl.u32 2475754826, %v782
        %v786 = vor.u32 %v784, %v785
        %v787 = vshll.u32 2475754826, %v781
        %v788 = vshrl.u32 2131351028, %v782
        %v789 = vor.u32 %v787, %v788
        %v790 = vshll.u32 2131351028, %v781
        %v791 = vshrl.u32 2102212464, %v782
        %v792 = vor.u32 %v790, %v791
        %v793 = vshll.u32 2102212464, %v781
        %v794 = vshrl.u32 920167782, %v782
        %v795 = vor.u32 %v793, %v794
        %v796 = vshll.u32 920167782, %v781
        %v797 = vshrl.u32 1326507024, %v782
        %v798 = vor.u32 %v796, %v797
        %vm799 = vcmp.lt.s32.totalorder %v780, 1
        %vm800 = vcmp.lt.s32.totalorder %v780, 2
        %vm801 = vcmp.lt.s32.totalorder %v780, 3
        %vm802 = vcmp.lt.s32.totalorder %v780, 4
        %v803 = vsel %vm799, %v783, %v786
        %v804 = vsel %vm802, %v792, 2102212464
        %v805 = vsel %vm801, %v789, %v804
        %v806 = vsel %vm800, %v803, %v805
        %v807 = vsel %vm799, %v786, %v789
        %v808 = vsel %vm802, %v795, 920167782
        %v809 = vsel %vm801, %v792, %v808
        %v810 = vsel %vm800, %v807, %v809
        %v811 = vsel %vm799, %v789, %v792
        %v812 = vsel %vm802, %v798, 1326507024
        %v813 = vsel %vm801, %v795, %v812
        %v814 = vsel %vm800, %v811, %v813
        %v815 = vshll.u32 %v775, 8
        %v816 = vmul.u32.u64.compose %v815, %v814
        %v817 = vextract.low.u32 %v816
        %v818 = vextract.high.u32 %v816
        %v819 = vmul.u32.u64.compose %v815, %v810
        %v820 = vextract.low.u32 %v819
        %v821 = vextract.high.u32 %v819
        %v822 = vmul.u32 %v815, %v806
        %v823 = vadd.s32 %v818, %v820
        %vm824 = vc.u32 %v818, %v820
        %v825 = vadd.s32 %v821, 1
        %v826 = vsel %vm824, %v825, %v821
        %v827 = vadd.s32 %v822, %v826
        %v828 = vadd.s32 %v827, 536870912
        %v829 = vshrl.u32 %v828, 30
        %v830 = vshll.u32 %v829, 30
        %v831 = vsub.s32 %v827, %v830
        %vm832 = vcmp.lt.s32.totalorder %v831, 0
        %v833 = vsub.s32 0, %v831
        %v834 = vsel %vm832, %v833, %v831
        %v835 = vclz %v834
        %v836 = vsub.s32 %v835, 2
        %vm837 = vcmp.gt.s32.totalorder 0, %v836
        %v838 = vsel %vm837, 0, %v836
        %v839 = vsub.s32 32, %v838
        %v840 = vshll.u32 %v831, %v838
        %v841 = vshrl.u32 %v823, %v839
        %v842 = vor.u32 %v840, %v841
        %v843 = vsub.s32 4294967266, %v838
        %v844 = vadd.s32 %v843, 127
        %v845 = vshll.u32 %v844, 23
        %v846 = vor.u32 4788187, %v845
        %v847 = vand.u32 2147483647, %v846
        %v849 = vcvt.s32.f32 %v842
        %v850 = vmul.f32 %v849, %v847
        %v851 = vxor.u32 %v850, 2147483648
        %v852 = vsel %vm769, %v851, %v850
        %v853 = vsub.s32 4, %v829
        %v854 = vsel %vm769, %v853, %v829
        %v855 = vsel %vm768, %v537, %v852
        %v856 = vsel %vm768, 0, %v854
        %v857 = vcosq.f32.pop %v855
        %v858 = vsinq.f32.pop %v855
        %vm859 = vweird.f32 %v537
        %v860 = vadd.s32 %v856, 3
        %v861 = vand.u32 %v860, 3
        %vm862 = vcmp.lt.s32.totalorder %v861, 2
        %vm863 = vcmp.eq.s32.totalorder %v861, 0
        %v864 = vxor.u32 %v858, 2147483648
        %v865 = vsel %vm863, %v857, %v864
        %vm866 = vcmp.eq.s32.totalorder %v861, 2
        %v867 = vxor.u32 %v857, 2147483648
        %v868 = vsel %vm866, %v867, %v858
        %v869 = vsel %vm862, %v865, %v868
        %v870 = vsel %vm859, nan, %v869
        %v871 = vand.u32 2147483647, %v539
        %vm872 = vcmp.le.f32.partialorder %v871, 0.7853982
        %vm873 = vcmp.lt.s32.totalorder %v539, 0
        %v874 = vand.u32 %v539, 2139095040
        %v875 = vshrl.u32 %v874, 23
        %v876 = vsub.s32 %v875, 127
        %v877 = vand.u32 2147483647, %v539
        %v878 = vand.u32 %v877, 8388607
        %v879 = vor.u32 %v878, 8388608
        %v880 = vsub.s32 0, %v879
        %v881 = vadd.s32 %v876, 1
        %vm882 = vcmp.gt.s32.totalorder %v881, 0
        %v883 = vsel %vm882, %v881, 0
        %v884 = vshrl.u32 %v883, 5
        %v885 = vand.u32 %v883, 31
        %v886 = vsub.s32 32, %v885
        %v887 = vshrl.u32 683565275, %v886
        %v888 = vshll.u32 683565275, %v885
        %v889 = vshrl.u32 2475754826, %v886
        %v890 = vor.u32 %v888, %v889
        %v891 = vshll.u32 2475754826, %v885
        %v892 = vshrl.u32 2131351028, %v886
        %v893 = vor.u32 %v891, %v892
        %v894 = vshll.u32 2131351028, %v885
        %v895 = vshrl.u32 2102212464, %v886
        %v896 = vor.u32 %v894, %v895
        %v897 = vshll.u32 2102212464, %v885
        %v898 = vshrl.u32 920167782, %v886
        %v899 = vor.u32 %v897, %v898
        %v900 = vshll.u32 920167782, %v885
        %v901 = vshrl.u32 1326507024, %v886
        %v902 = vor.u32 %v900, %v901
        %vm903 = vcmp.lt.s32.totalorder %v884, 1
        %vm904 = vcmp.lt.s32.totalorder %v884, 2
        %vm905 = vcmp.lt.s32.totalorder %v884, 3
        %vm906 = vcmp.lt.s32.totalorder %v884, 4
        %v907 = vsel %vm903, %v887, %v890
        %v908 = vsel %vm906, %v896, 2102212464
        %v909 = vsel %vm905, %v893, %v908
        %v910 = vsel %vm904, %v907, %v909
        %v911 = vsel %vm903, %v890, %v893
        %v912 = vsel %vm906, %v899, 920167782
        %v913 = vsel %vm905, %v896, %v912
        %v914 = vsel %vm904, %v911, %v913
        %v915 = vsel %vm903, %v893, %v896
        %v916 = vsel %vm906, %v902, 1326507024
        %v917 = vsel %vm905, %v899, %v916
        %v918 = vsel %vm904, %v915, %v917
        %v919 = vshll.u32 %v879, 8
        %v920 = vmul.u32.u64.compose %v919, %v918
        %v921 = vextract.low.u32 %v920
        %v922 = vextract.high.u32 %v920
        %v923 = vmul.u32.u64.compose %v919, %v914
        %v924 = vextract.low.u32 %v923
        %v925 = vextract.high.u32 %v923
        %v926 = vmul.u32 %v919, %v910
        %v927 = vadd.s32 %v922, %v924
        %vm928 = vc.u32 %v922, %v924
        %v929 = vadd.s32 %v925, 1
        %v930 = vsel %vm928, %v929, %v925
        %v931 = vadd.s32 %v926, %v930
        %v932 = vadd.s32 %v931, 536870912
        %v933 = vshrl.u32 %v932, 30
        %v934 = vshll.u32 %v933, 30
        %v935 = vsub.s32 %v931, %v934
        %vm936 = vcmp.lt.s32.totalorder %v935, 0
        %v937 = vsub.s32 0, %v935
        %v938 = vsel %vm936, %v937, %v935
        %v939 = vclz %v938
        %v940 = vsub.s32 %v939, 2
        %vm941 = vcmp.gt.s32.totalorder 0, %v940
        %v942 = vsel %vm941, 0, %v940
        %v943 = vsub.s32 32, %v942
        %v944 = vshll.u32 %v935, %v942
        %v945 = vshrl.u32 %v927, %v943
        %v946 = vor.u32 %v944, %v945
        %v947 = vsub.s32 4294967266, %v942
        %v948 = vadd.s32 %v947, 127
        %v949 = vshll.u32 %v948, 23
        %v950 = vor.u32 4788187, %v949
        %v951 = vand.u32 2147483647, %v950
        %v953 = vcvt.s32.f32 %v946
        %v954 = vmul.f32 %v953, %v951
        %v955 = vxor.u32 %v954, 2147483648
        %v956 = vsel %vm873, %v955, %v954
        %v957 = vsub.s32 4, %v933
        %v958 = vsel %vm873, %v957, %v933
        %v959 = vsel %vm872, %v539, %v956
        %v960 = vsel %vm872, 0, %v958
        %v961 = vcosq.f32.pop %v959
        %v962 = vsinq.f32.pop %v959
        %vm963 = vweird.f32 %v539
        %v964 = vadd.s32 %v960, 3
        %v965 = vand.u32 %v964, 3
        %vm966 = vcmp.lt.s32.totalorder %v965, 2
        %vm967 = vcmp.eq.s32.totalorder %v965, 0
        %v968 = vxor.u32 %v962, 2147483648
        %v969 = vsel %vm967, %v961, %v968
        %vm970 = vcmp.eq.s32.totalorder %v965, 2
        %v971 = vxor.u32 %v961, 2147483648
        %v972 = vsel %vm970, %v971, %v962
        %v973 = vsel %vm966, %v969, %v972
        %v974 = vsel %vm963, nan, %v973
        %v975 = vand.u32 2147483647, %v454
        %vm976 = vcmp.le.f32.partialorder %v975, 0.7853982
        %vm977 = vcmp.lt.s32.totalorder %v454, 0
        %v978 = vand.u32 %v454, 2139095040
        %v979 = vshrl.u32 %v978, 23
        %v980 = vsub.s32 %v979, 127
        %v981 = vand.u32 2147483647, %v454
        %v982 = vand.u32 %v981, 8388607
        %v983 = vor.u32 %v982, 8388608
        %v984 = vsub.s32 0, %v983
        %v985 = vadd.s32 %v980, 1
        %vm986 = vcmp.gt.s32.totalorder %v985, 0
        %v987 = vsel %vm986, %v985, 0
        %v988 = vshrl.u32 %v987, 5
        %v989 = vand.u32 %v987, 31
        %v990 = vsub.s32 32, %v989
        %v991 = vshrl.u32 683565275, %v990
        %v992 = vshll.u32 683565275, %v989
        %v993 = vshrl.u32 2475754826, %v990
        %v994 = vor.u32 %v992, %v993
        %v995 = vshll.u32 2475754826, %v989
        %v996 = vshrl.u32 2131351028, %v990
        %v997 = vor.u32 %v995, %v996
        %v998 = vshll.u32 2131351028, %v989
        %v999 = vshrl.u32 2102212464, %v990
        %v1000 = vor.u32 %v998, %v999
        %v1001 = vshll.u32 2102212464, %v989
        %v1002 = vshrl.u32 920167782, %v990
        %v1003 = vor.u32 %v1001, %v1002
        %v1004 = vshll.u32 920167782, %v989
        %v1005 = vshrl.u32 1326507024, %v990
        %v1006 = vor.u32 %v1004, %v1005
        %vm1007 = vcmp.lt.s32.totalorder %v988, 1
        %vm1008 = vcmp.lt.s32.totalorder %v988, 2
        %vm1009 = vcmp.lt.s32.totalorder %v988, 3
        %vm1010 = vcmp.lt.s32.totalorder %v988, 4
        %v1011 = vsel %vm1007, %v991, %v994
        %v1012 = vsel %vm1010, %v1000, 2102212464
        %v1013 = vsel %vm1009, %v997, %v1012
        %v1014 = vsel %vm1008, %v1011, %v1013
        %v1015 = vsel %vm1007, %v994, %v997
        %v1016 = vsel %vm1010, %v1003, 920167782
        %v1017 = vsel %vm1009, %v1000, %v1016
        %v1018 = vsel %vm1008, %v1015, %v1017
        %v1019 = vsel %vm1007, %v997, %v1000
        %v1020 = vsel %vm1010, %v1006, 1326507024
        %v1021 = vsel %vm1009, %v1003, %v1020
        %v1022 = vsel %vm1008, %v1019, %v1021
        %v1023 = vshll.u32 %v983, 8
        %v1024 = vmul.u32.u64.compose %v1023, %v1022
        %v1025 = vextract.low.u32 %v1024
        %v1026 = vextract.high.u32 %v1024
        %v1027 = vmul.u32.u64.compose %v1023, %v1018
        %v1028 = vextract.low.u32 %v1027
        %v1029 = vextract.high.u32 %v1027
        %v1030 = vmul.u32 %v1023, %v1014
        %v1031 = vadd.s32 %v1026, %v1028
        %vm1032 = vc.u32 %v1026, %v1028
        %v1033 = vadd.s32 %v1029, 1
        %v1034 = vsel %vm1032, %v1033, %v1029
        %v1035 = vadd.s32 %v1030, %v1034
        %v1036 = vadd.s32 %v1035, 536870912
        %v1037 = vshrl.u32 %v1036, 30
        %v1038 = vshll.u32 %v1037, 30
        %v1039 = vsub.s32 %v1035, %v1038
        %vm1040 = vcmp.lt.s32.totalorder %v1039, 0
        %v1041 = vsub.s32 0, %v1039
        %v1042 = vsel %vm1040, %v1041, %v1039
        %v1043 = vclz %v1042
        %v1044 = vsub.s32 %v1043, 2
        %vm1045 = vcmp.gt.s32.totalorder 0, %v1044
        %v1046 = vsel %vm1045, 0, %v1044
        %v1047 = vsub.s32 32, %v1046
        %v1048 = vshll.u32 %v1039, %v1046
        %v1049 = vshrl.u32 %v1031, %v1047
        %v1050 = vor.u32 %v1048, %v1049
        %v1051 = vsub.s32 4294967266, %v1046
        %v1052 = vadd.s32 %v1051, 127
        %v1053 = vshll.u32 %v1052, 23
        %v1054 = vor.u32 4788187, %v1053
        %v1055 = vand.u32 2147483647, %v1054
        %v1057 = vcvt.s32.f32 %v1050
        %v1058 = vmul.f32 %v1057, %v1055
        %v1059 = vxor.u32 %v1058, 2147483648
        %v1060 = vsel %vm977, %v1059, %v1058
        %v1061 = vsub.s32 4, %v1037
        %v1062 = vsel %vm977, %v1061, %v1037
        %v1063 = vsel %vm976, %v454, %v1060
        %v1064 = vsel %vm976, 0, %v1062
        %v1065 = vcosq.f32.pop %v1063
        %v1066 = vsinq.f32.pop %v1063
        %vm1067 = vweird.f32 %v454
        %v1068 = vadd.s32 %v1064, 3
        %v1069 = vand.u32 %v1068, 3
        %vm1070 = vcmp.lt.s32.totalorder %v1069, 2
        %vm1071 = vcmp.eq.s32.totalorder %v1069, 0
        %v1072 = vxor.u32 %v1066, 2147483648
        %v1073 = vsel %vm1071, %v1065, %v1072
        %vm1074 = vcmp.eq.s32.totalorder %v1069, 2
        %v1075 = vxor.u32 %v1065, 2147483648
        %v1076 = vsel %vm1074, %v1075, %v1066
        %v1077 = vsel %vm1070, %v1073, %v1076
        %v1078 = vsel %vm1067, nan, %v1077
        %v1079 = vand.u32 2147483647, %v456
        %vm1080 = vcmp.le.f32.partialorder %v1079, 0.7853982
        %vm1081 = vcmp.lt.s32.totalorder %v456, 0
        %v1082 = vand.u32 %v456, 2139095040
        %v1083 = vshrl.u32 %v1082, 23
        %v1084 = vsub.s32 %v1083, 127
        %v1085 = vand.u32 2147483647, %v456
        %v1086 = vand.u32 %v1085, 8388607
        %v1087 = vor.u32 %v1086, 8388608
        %v1088 = vsub.s32 0, %v1087
        %v1089 = vadd.s32 %v1084, 1
        %vm1090 = vcmp.gt.s32.totalorder %v1089, 0
        %v1091 = vsel %vm1090, %v1089, 0
        %v1092 = vshrl.u32 %v1091, 5
        %v1093 = vand.u32 %v1091, 31
        %v1094 = vsub.s32 32, %v1093
        %v1095 = vshrl.u32 683565275, %v1094
        %v1096 = vshll.u32 683565275, %v1093
        %v1097 = vshrl.u32 2475754826, %v1094
        %v1098 = vor.u32 %v1096, %v1097
        %v1099 = vshll.u32 2475754826, %v1093
        %v1100 = vshrl.u32 2131351028, %v1094
        %v1101 = vor.u32 %v1099, %v1100
        %v1102 = vshll.u32 2131351028, %v1093
        %v1103 = vshrl.u32 2102212464, %v1094
        %v1104 = vor.u32 %v1102, %v1103
        %v1105 = vshll.u32 2102212464, %v1093
        %v1106 = vshrl.u32 920167782, %v1094
        %v1107 = vor.u32 %v1105, %v1106
        %v1108 = vshll.u32 920167782, %v1093
        %v1109 = vshrl.u32 1326507024, %v1094
        %v1110 = vor.u32 %v1108, %v1109
        %vm1111 = vcmp.lt.s32.totalorder %v1092, 1
        %vm1112 = vcmp.lt.s32.totalorder %v1092, 2
        %vm1113 = vcmp.lt.s32.totalorder %v1092, 3
        %vm1114 = vcmp.lt.s32.totalorder %v1092, 4
        %v1115 = vsel %vm1111, %v1095, %v1098
        %v1116 = vsel %vm1114, %v1104, 2102212464
        %v1117 = vsel %vm1113, %v1101, %v1116
        %v1118 = vsel %vm1112, %v1115, %v1117
        %v1119 = vsel %vm1111, %v1098, %v1101
        %v1120 = vsel %vm1114, %v1107, 920167782
        %v1121 = vsel %vm1113, %v1104, %v1120
        %v1122 = vsel %vm1112, %v1119, %v1121
        %v1123 = vsel %vm1111, %v1101, %v1104
        %v1124 = vsel %vm1114, %v1110, 1326507024
        %v1125 = vsel %vm1113, %v1107, %v1124
        %v1126 = vsel %vm1112, %v1123, %v1125
        %v1127 = vshll.u32 %v1087, 8
        %v1128 = vmul.u32.u64.compose %v1127, %v1126
        %v1129 = vextract.low.u32 %v1128
        %v1130 = vextract.high.u32 %v1128
        %v1131 = vmul.u32.u64.compose %v1127, %v1122
        %v1132 = vextract.low.u32 %v1131
        %v1133 = vextract.high.u32 %v1131
        %v1134 = vmul.u32 %v1127, %v1118
        %v1135 = vadd.s32 %v1130, %v1132
        %vm1136 = vc.u32 %v1130, %v1132
        %v1137 = vadd.s32 %v1133, 1
        %v1138 = vsel %vm1136, %v1137, %v1133
        %v1139 = vadd.s32 %v1134, %v1138
        %v1140 = vadd.s32 %v1139, 536870912
        %v1141 = vshrl.u32 %v1140, 30
        %v1142 = vshll.u32 %v1141, 30
        %v1143 = vsub.s32 %v1139, %v1142
        %vm1144 = vcmp.lt.s32.totalorder %v1143, 0
        %v1145 = vsub.s32 0, %v1143
        %v1146 = vsel %vm1144, %v1145, %v1143
        %v1147 = vclz %v1146
        %v1148 = vsub.s32 %v1147, 2
        %vm1149 = vcmp.gt.s32.totalorder 0, %v1148
        %v1150 = vsel %vm1149, 0, %v1148
        %v1151 = vsub.s32 32, %v1150
        %v1152 = vshll.u32 %v1143, %v1150
        %v1153 = vshrl.u32 %v1135, %v1151
        %v1154 = vor.u32 %v1152, %v1153
        %v1155 = vsub.s32 4294967266, %v1150
        %v1156 = vadd.s32 %v1155, 127
        %v1157 = vshll.u32 %v1156, 23
        %v1158 = vor.u32 4788187, %v1157
        %v1159 = vand.u32 2147483647, %v1158
        %v1161 = vcvt.s32.f32 %v1154
        %v1162 = vmul.f32 %v1161, %v1159
        %v1163 = vxor.u32 %v1162, 2147483648
        %v1164 = vsel %vm1081, %v1163, %v1162
        %v1165 = vsub.s32 4, %v1141
        %v1166 = vsel %vm1081, %v1165, %v1141
        %v1167 = vsel %vm1080, %v456, %v1164
        %v1168 = vsel %vm1080, 0, %v1166
        %v1169 = vcosq.f32.pop %v1167
        %v1170 = vsinq.f32.pop %v1167
        %vm1171 = vweird.f32 %v456
        %v1172 = vadd.s32 %v1168, 3
        %v1173 = vand.u32 %v1172, 3
        %vm1174 = vcmp.lt.s32.totalorder %v1173, 2
        %vm1175 = vcmp.eq.s32.totalorder %v1173, 0
        %v1176 = vxor.u32 %v1170, 2147483648
        %v1177 = vsel %vm1175, %v1169, %v1176
        %vm1178 = vcmp.eq.s32.totalorder %v1173, 2
        %v1179 = vxor.u32 %v1169, 2147483648
        %v1180 = vsel %vm1178, %v1179, %v1170
        %v1181 = vsel %vm1174, %v1177, %v1180
        %v1182 = vsel %vm1171, nan, %v1181
        %v1183 = vand.u32 2147483647, %v543
        %vm1184 = vcmp.le.f32.partialorder %v1183, 0.7853982
        %vm1185 = vcmp.lt.s32.totalorder %v543, 0
        %v1186 = vand.u32 %v543, 2139095040
        %v1187 = vshrl.u32 %v1186, 23
        %v1188 = vsub.s32 %v1187, 127
        %v1189 = vand.u32 2147483647, %v543
        %v1190 = vand.u32 %v1189, 8388607
        %v1191 = vor.u32 %v1190, 8388608
        %v1192 = vsub.s32 0, %v1191
        %v1193 = vadd.s32 %v1188, 1
        %vm1194 = vcmp.gt.s32.totalorder %v1193, 0
        %v1195 = vsel %vm1194, %v1193, 0
        %v1196 = vshrl.u32 %v1195, 5
        %v1197 = vand.u32 %v1195, 31
        %v1198 = vsub.s32 32, %v1197
        %v1199 = vshrl.u32 683565275, %v1198
        %v1200 = vshll.u32 683565275, %v1197
        %v1201 = vshrl.u32 2475754826, %v1198
        %v1202 = vor.u32 %v1200, %v1201
        %v1203 = vshll.u32 2475754826, %v1197
        %v1204 = vshrl.u32 2131351028, %v1198
        %v1205 = vor.u32 %v1203, %v1204
        %v1206 = vshll.u32 2131351028, %v1197
        %v1207 = vshrl.u32 2102212464, %v1198
        %v1208 = vor.u32 %v1206, %v1207
        %v1209 = vshll.u32 2102212464, %v1197
        %v1210 = vshrl.u32 920167782, %v1198
        %v1211 = vor.u32 %v1209, %v1210
        %v1212 = vshll.u32 920167782, %v1197
        %v1213 = vshrl.u32 1326507024, %v1198
        %v1214 = vor.u32 %v1212, %v1213
        %vm1215 = vcmp.lt.s32.totalorder %v1196, 1
        %vm1216 = vcmp.lt.s32.totalorder %v1196, 2
        %vm1217 = vcmp.lt.s32.totalorder %v1196, 3
        %vm1218 = vcmp.lt.s32.totalorder %v1196, 4
        %v1219 = vsel %vm1215, %v1199, %v1202
        %v1220 = vsel %vm1218, %v1208, 2102212464
        %v1221 = vsel %vm1217, %v1205, %v1220
        %v1222 = vsel %vm1216, %v1219, %v1221
        %v1223 = vsel %vm1215, %v1202, %v1205
        %v1224 = vsel %vm1218, %v1211, 920167782
        %v1225 = vsel %vm1217, %v1208, %v1224
        %v1226 = vsel %vm1216, %v1223, %v1225
        %v1227 = vsel %vm1215, %v1205, %v1208
        %v1228 = vsel %vm1218, %v1214, 1326507024
        %v1229 = vsel %vm1217, %v1211, %v1228
        %v1230 = vsel %vm1216, %v1227, %v1229
        %v1231 = vshll.u32 %v1191, 8
        %v1232 = vmul.u32.u64.compose %v1231, %v1230
        %v1233 = vextract.low.u32 %v1232
        %v1234 = vextract.high.u32 %v1232
        %v1235 = vmul.u32.u64.compose %v1231, %v1226
        %v1236 = vextract.low.u32 %v1235
        %v1237 = vextract.high.u32 %v1235
        %v1238 = vmul.u32 %v1231, %v1222
        %v1239 = vadd.s32 %v1234, %v1236
        %vm1240 = vc.u32 %v1234, %v1236
        %v1241 = vadd.s32 %v1237, 1
        %v1242 = vsel %vm1240, %v1241, %v1237
        %v1243 = vadd.s32 %v1238, %v1242
        %v1244 = vadd.s32 %v1243, 536870912
        %v1245 = vshrl.u32 %v1244, 30
        %v1246 = vshll.u32 %v1245, 30
        %v1247 = vsub.s32 %v1243, %v1246
        %vm1248 = vcmp.lt.s32.totalorder %v1247, 0
        %v1249 = vsub.s32 0, %v1247
        %v1250 = vsel %vm1248, %v1249, %v1247
        %v1251 = vclz %v1250
        %v1252 = vsub.s32 %v1251, 2
        %vm1253 = vcmp.gt.s32.totalorder 0, %v1252
        %v1254 = vsel %vm1253, 0, %v1252
        %v1255 = vsub.s32 32, %v1254
        %v1256 = vshll.u32 %v1247, %v1254
        %v1257 = vshrl.u32 %v1239, %v1255
        %v1258 = vor.u32 %v1256, %v1257
        %v1259 = vsub.s32 4294967266, %v1254
        %v1260 = vadd.s32 %v1259, 127
        %v1261 = vshll.u32 %v1260, 23
        %v1262 = vor.u32 4788187, %v1261
        %v1263 = vand.u32 2147483647, %v1262
        %v1265 = vcvt.s32.f32 %v1258
        %v1266 = vmul.f32 %v1265, %v1263
        %v1267 = vxor.u32 %v1266, 2147483648
        %v1268 = vsel %vm1185, %v1267, %v1266
        %v1269 = vsub.s32 4, %v1245
        %v1270 = vsel %vm1185, %v1269, %v1245
        %v1271 = vsel %vm1184, %v543, %v1268
        %v1272 = vsel %vm1184, 0, %v1270
        %v1273 = vcosq.f32.pop %v1271
        %v1274 = vsinq.f32.pop %v1271
        %vm1275 = vweird.f32 %v543
        %v1276 = vadd.s32 %v1272, 3
        %v1277 = vand.u32 %v1276, 3
        %vm1278 = vcmp.lt.s32.totalorder %v1277, 2
        %vm1279 = vcmp.eq.s32.totalorder %v1277, 0
        %v1280 = vxor.u32 %v1274, 2147483648
        %v1281 = vsel %vm1279, %v1273, %v1280
        %vm1282 = vcmp.eq.s32.totalorder %v1277, 2
        %v1283 = vxor.u32 %v1273, 2147483648
        %v1284 = vsel %vm1282, %v1283, %v1274
        %v1285 = vsel %vm1278, %v1281, %v1284
        %v1286 = vsel %vm1275, nan, %v1285
        %v1287 = vand.u32 2147483647, %v545
        %vm1288 = vcmp.le.f32.partialorder %v1287, 0.7853982
        %vm1289 = vcmp.lt.s32.totalorder %v545, 0
        %v1290 = vand.u32 %v545, 2139095040
        %v1291 = vshrl.u32 %v1290, 23
        %v1292 = vsub.s32 %v1291, 127
        %v1293 = vand.u32 2147483647, %v545
        %v1294 = vand.u32 %v1293, 8388607
        %v1295 = vor.u32 %v1294, 8388608
        %v1296 = vsub.s32 0, %v1295
        %v1297 = vadd.s32 %v1292, 1
        %vm1298 = vcmp.gt.s32.totalorder %v1297, 0
        %v1299 = vsel %vm1298, %v1297, 0
        %v1300 = vshrl.u32 %v1299, 5
        %v1301 = vand.u32 %v1299, 31
        %v1302 = vsub.s32 32, %v1301
        %v1303 = vshrl.u32 683565275, %v1302
        %v1304 = vshll.u32 683565275, %v1301
        %v1305 = vshrl.u32 2475754826, %v1302
        %v1306 = vor.u32 %v1304, %v1305
        %v1307 = vshll.u32 2475754826, %v1301
        %v1308 = vshrl.u32 2131351028, %v1302
        %v1309 = vor.u32 %v1307, %v1308
        %v1310 = vshll.u32 2131351028, %v1301
        %v1311 = vshrl.u32 2102212464, %v1302
        %v1312 = vor.u32 %v1310, %v1311
        %v1313 = vshll.u32 2102212464, %v1301
        %v1314 = vshrl.u32 920167782, %v1302
        %v1315 = vor.u32 %v1313, %v1314
        %v1316 = vshll.u32 920167782, %v1301
        %v1317 = vshrl.u32 1326507024, %v1302
        %v1318 = vor.u32 %v1316, %v1317
        %vm1319 = vcmp.lt.s32.totalorder %v1300, 1
        %vm1320 = vcmp.lt.s32.totalorder %v1300, 2
        %vm1321 = vcmp.lt.s32.totalorder %v1300, 3
        %vm1322 = vcmp.lt.s32.totalorder %v1300, 4
        %v1323 = vsel %vm1319, %v1303, %v1306
        %v1324 = vsel %vm1322, %v1312, 2102212464
        %v1325 = vsel %vm1321, %v1309, %v1324
        %v1326 = vsel %vm1320, %v1323, %v1325
        %v1327 = vsel %vm1319, %v1306, %v1309
        %v1328 = vsel %vm1322, %v1315, 920167782
        %v1329 = vsel %vm1321, %v1312, %v1328
        %v1330 = vsel %vm1320, %v1327, %v1329
        %v1331 = vsel %vm1319, %v1309, %v1312
        %v1332 = vsel %vm1322, %v1318, 1326507024
        %v1333 = vsel %vm1321, %v1315, %v1332
        %v1334 = vsel %vm1320, %v1331, %v1333
        %v1335 = vshll.u32 %v1295, 8
        %v1336 = vmul.u32.u64.compose %v1335, %v1334
        %v1337 = vextract.low.u32 %v1336
        %v1338 = vextract.high.u32 %v1336
        %v1339 = vmul.u32.u64.compose %v1335, %v1330
        %v1340 = vextract.low.u32 %v1339
        %v1341 = vextract.high.u32 %v1339
        %v1342 = vmul.u32 %v1335, %v1326
        %v1343 = vadd.s32 %v1338, %v1340
        %vm1344 = vc.u32 %v1338, %v1340
        %v1345 = vadd.s32 %v1341, 1
        %v1346 = vsel %vm1344, %v1345, %v1341
        %v1347 = vadd.s32 %v1342, %v1346
        %v1348 = vadd.s32 %v1347, 536870912
        %v1349 = vshrl.u32 %v1348, 30
        %v1350 = vshll.u32 %v1349, 30
        %v1351 = vsub.s32 %v1347, %v1350
        %vm1352 = vcmp.lt.s32.totalorder %v1351, 0
        %v1353 = vsub.s32 0, %v1351
        %v1354 = vsel %vm1352, %v1353, %v1351
        %v1355 = vclz %v1354
        %v1356 = vsub.s32 %v1355, 2
        %vm1357 = vcmp.gt.s32.totalorder 0, %v1356
        %v1358 = vsel %vm1357, 0, %v1356
        %v1359 = vsub.s32 32, %v1358
        %v1360 = vshll.u32 %v1351, %v1358
        %v1361 = vshrl.u32 %v1343, %v1359
        %v1362 = vor.u32 %v1360, %v1361
        %v1363 = vsub.s32 4294967266, %v1358
        %v1364 = vadd.s32 %v1363, 127
        %v1365 = vshll.u32 %v1364, 23
        %v1366 = vor.u32 4788187, %v1365
        %v1367 = vand.u32 2147483647, %v1366
        %v1369 = vcvt.s32.f32 %v1362
        %v1370 = vmul.f32 %v1369, %v1367
        %v1371 = vxor.u32 %v1370, 2147483648
        %v1372 = vsel %vm1289, %v1371, %v1370
        %v1373 = vsub.s32 4, %v1349
        %v1374 = vsel %vm1289, %v1373, %v1349
        %v1375 = vsel %vm1288, %v545, %v1372
        %v1376 = vsel %vm1288, 0, %v1374
        %v1377 = vcosq.f32.pop %v1375
        %v1378 = vsinq.f32.pop %v1375
        %vm1379 = vweird.f32 %v545
        %v1380 = vadd.s32 %v1376, 3
        %v1381 = vand.u32 %v1380, 3
        %vm1382 = vcmp.lt.s32.totalorder %v1381, 2
        %vm1383 = vcmp.eq.s32.totalorder %v1381, 0
        %v1384 = vxor.u32 %v1378, 2147483648
        %v1385 = vsel %vm1383, %v1377, %v1384
        %vm1386 = vcmp.eq.s32.totalorder %v1381, 2
        %v1387 = vxor.u32 %v1377, 2147483648
        %v1388 = vsel %vm1386, %v1387, %v1378
        %v1389 = vsel %vm1382, %v1385, %v1388
        %v1390 = vsel %vm1379, nan, %v1389
        %v1391 = vand.u32 2147483647, %v460
        %vm1392 = vcmp.le.f32.partialorder %v1391, 0.7853982
        %vm1393 = vcmp.lt.s32.totalorder %v460, 0
        %v1394 = vand.u32 %v460, 2139095040
        %v1395 = vshrl.u32 %v1394, 23
        %v1396 = vsub.s32 %v1395, 127
        %v1397 = vand.u32 2147483647, %v460
        %v1398 = vand.u32 %v1397, 8388607
        %v1399 = vor.u32 %v1398, 8388608
        %v1400 = vsub.s32 0, %v1399
        %v1401 = vadd.s32 %v1396, 1
        %vm1402 = vcmp.gt.s32.totalorder %v1401, 0
        %v1403 = vsel %vm1402, %v1401, 0
        %v1404 = vshrl.u32 %v1403, 5
        %v1405 = vand.u32 %v1403, 31
        %v1406 = vsub.s32 32, %v1405
        %v1407 = vshrl.u32 683565275, %v1406
        %v1408 = vshll.u32 683565275, %v1405
        %v1409 = vshrl.u32 2475754826, %v1406
        %v1410 = vor.u32 %v1408, %v1409
        %v1411 = vshll.u32 2475754826, %v1405
        %v1412 = vshrl.u32 2131351028, %v1406
        %v1413 = vor.u32 %v1411, %v1412
        %v1414 = vshll.u32 2131351028, %v1405
        %v1415 = vshrl.u32 2102212464, %v1406
        %v1416 = vor.u32 %v1414, %v1415
        %v1417 = vshll.u32 2102212464, %v1405
        %v1418 = vshrl.u32 920167782, %v1406
        %v1419 = vor.u32 %v1417, %v1418
        %v1420 = vshll.u32 920167782, %v1405
        %v1421 = vshrl.u32 1326507024, %v1406
        %v1422 = vor.u32 %v1420, %v1421
        %vm1423 = vcmp.lt.s32.totalorder %v1404, 1
        %vm1424 = vcmp.lt.s32.totalorder %v1404, 2
        %vm1425 = vcmp.lt.s32.totalorder %v1404, 3
        %vm1426 = vcmp.lt.s32.totalorder %v1404, 4
        %v1427 = vsel %vm1423, %v1407, %v1410
        %v1428 = vsel %vm1426, %v1416, 2102212464
        %v1429 = vsel %vm1425, %v1413, %v1428
        %v1430 = vsel %vm1424, %v1427, %v1429
        %v1431 = vsel %vm1423, %v1410, %v1413
        %v1432 = vsel %vm1426, %v1419, 920167782
        %v1433 = vsel %vm1425, %v1416, %v1432
        %v1434 = vsel %vm1424, %v1431, %v1433
        %v1435 = vsel %vm1423, %v1413, %v1416
        %v1436 = vsel %vm1426, %v1422, 1326507024
        %v1437 = vsel %vm1425, %v1419, %v1436
        %v1438 = vsel %vm1424, %v1435, %v1437
        %v1439 = vshll.u32 %v1399, 8
        %v1440 = vmul.u32.u64.compose %v1439, %v1438
        %v1441 = vextract.low.u32 %v1440
        %v1442 = vextract.high.u32 %v1440
        %v1443 = vmul.u32.u64.compose %v1439, %v1434
        %v1444 = vextract.low.u32 %v1443
        %v1445 = vextract.high.u32 %v1443
        %v1446 = vmul.u32 %v1439, %v1430
        %v1447 = vadd.s32 %v1442, %v1444
        %vm1448 = vc.u32 %v1442, %v1444
        %v1449 = vadd.s32 %v1445, 1
        %v1450 = vsel %vm1448, %v1449, %v1445
        %v1451 = vadd.s32 %v1446, %v1450
        %v1452 = vadd.s32 %v1451, 536870912
        %v1453 = vshrl.u32 %v1452, 30
        %v1454 = vshll.u32 %v1453, 30
        %v1455 = vsub.s32 %v1451, %v1454
        %vm1456 = vcmp.lt.s32.totalorder %v1455, 0
        %v1457 = vsub.s32 0, %v1455
        %v1458 = vsel %vm1456, %v1457, %v1455
        %v1459 = vclz %v1458
        %v1460 = vsub.s32 %v1459, 2
        %vm1461 = vcmp.gt.s32.totalorder 0, %v1460
        %v1462 = vsel %vm1461, 0, %v1460
        %v1463 = vsub.s32 32, %v1462
        %v1464 = vshll.u32 %v1455, %v1462
        %v1465 = vshrl.u32 %v1447, %v1463
        %v1466 = vor.u32 %v1464, %v1465
        %v1467 = vsub.s32 4294967266, %v1462
        %v1468 = vadd.s32 %v1467, 127
        %v1469 = vshll.u32 %v1468, 23
        %v1470 = vor.u32 4788187, %v1469
        %v1471 = vand.u32 2147483647, %v1470
        %v1473 = vcvt.s32.f32 %v1466
        %v1474 = vmul.f32 %v1473, %v1471
        %v1475 = vxor.u32 %v1474, 2147483648
        %v1476 = vsel %vm1393, %v1475, %v1474
        %v1477 = vsub.s32 4, %v1453
        %v1478 = vsel %vm1393, %v1477, %v1453
        %v1479 = vsel %vm1392, %v460, %v1476
        %v1480 = vsel %vm1392, 0, %v1478
        %v1481 = vcosq.f32.pop %v1479
        %v1482 = vsinq.f32.pop %v1479
        %vm1483 = vweird.f32 %v460
        %v1484 = vadd.s32 %v1480, 3
        %v1485 = vand.u32 %v1484, 3
        %vm1486 = vcmp.lt.s32.totalorder %v1485, 2
        %vm1487 = vcmp.eq.s32.totalorder %v1485, 0
        %v1488 = vxor.u32 %v1482, 2147483648
        %v1489 = vsel %vm1487, %v1481, %v1488
        %vm1490 = vcmp.eq.s32.totalorder %v1485, 2
        %v1491 = vxor.u32 %v1481, 2147483648
        %v1492 = vsel %vm1490, %v1491, %v1482
        %v1493 = vsel %vm1486, %v1489, %v1492
        %v1494 = vsel %vm1483, nan, %v1493
        %v1495 = vand.u32 2147483647, %v462
        %vm1496 = vcmp.le.f32.partialorder %v1495, 0.7853982
        %vm1497 = vcmp.lt.s32.totalorder %v462, 0
        %v1498 = vand.u32 %v462, 2139095040
        %v1499 = vshrl.u32 %v1498, 23
        %v1500 = vsub.s32 %v1499, 127
        %v1501 = vand.u32 2147483647, %v462
        %v1502 = vand.u32 %v1501, 8388607
        %v1503 = vor.u32 %v1502, 8388608
        %v1504 = vsub.s32 0, %v1503
        %v1505 = vadd.s32 %v1500, 1
        %vm1506 = vcmp.gt.s32.totalorder %v1505, 0
        %v1507 = vsel %vm1506, %v1505, 0
        %v1508 = vshrl.u32 %v1507, 5
        %v1509 = vand.u32 %v1507, 31
        %v1510 = vsub.s32 32, %v1509
        %v1511 = vshrl.u32 683565275, %v1510
        %v1512 = vshll.u32 683565275, %v1509
        %v1513 = vshrl.u32 2475754826, %v1510
        %v1514 = vor.u32 %v1512, %v1513
        %v1515 = vshll.u32 2475754826, %v1509
        %v1516 = vshrl.u32 2131351028, %v1510
        %v1517 = vor.u32 %v1515, %v1516
        %v1518 = vshll.u32 2131351028, %v1509
        %v1519 = vshrl.u32 2102212464, %v1510
        %v1520 = vor.u32 %v1518, %v1519
        %v1521 = vshll.u32 2102212464, %v1509
        %v1522 = vshrl.u32 920167782, %v1510
        %v1523 = vor.u32 %v1521, %v1522
        %v1524 = vshll.u32 920167782, %v1509
        %v1525 = vshrl.u32 1326507024, %v1510
        %v1526 = vor.u32 %v1524, %v1525
        %vm1527 = vcmp.lt.s32.totalorder %v1508, 1
        %vm1528 = vcmp.lt.s32.totalorder %v1508, 2
        %vm1529 = vcmp.lt.s32.totalorder %v1508, 3
        %vm1530 = vcmp.lt.s32.totalorder %v1508, 4
        %v1531 = vsel %vm1527, %v1511, %v1514
        %v1532 = vsel %vm1530, %v1520, 2102212464
        %v1533 = vsel %vm1529, %v1517, %v1532
        %v1534 = vsel %vm1528, %v1531, %v1533
        %v1535 = vsel %vm1527, %v1514, %v1517
        %v1536 = vsel %vm1530, %v1523, 920167782
        %v1537 = vsel %vm1529, %v1520, %v1536
        %v1538 = vsel %vm1528, %v1535, %v1537
        %v1539 = vsel %vm1527, %v1517, %v1520
        %v1540 = vsel %vm1530, %v1526, 1326507024
        %v1541 = vsel %vm1529, %v1523, %v1540
        %v1542 = vsel %vm1528, %v1539, %v1541
        %v1543 = vshll.u32 %v1503, 8
        %v1544 = vmul.u32.u64.compose %v1543, %v1542
        %v1545 = vextract.low.u32 %v1544
        %v1546 = vextract.high.u32 %v1544
        %v1547 = vmul.u32.u64.compose %v1543, %v1538
        %v1548 = vextract.low.u32 %v1547
        %v1549 = vextract.high.u32 %v1547
        %v1550 = vmul.u32 %v1543, %v1534
        %v1551 = vadd.s32 %v1546, %v1548
        %vm1552 = vc.u32 %v1546, %v1548
        %v1553 = vadd.s32 %v1549, 1
        %v1554 = vsel %vm1552, %v1553, %v1549
        %v1555 = vadd.s32 %v1550, %v1554
        %v1556 = vadd.s32 %v1555, 536870912
        %v1557 = vshrl.u32 %v1556, 30
        %v1558 = vshll.u32 %v1557, 30
        %v1559 = vsub.s32 %v1555, %v1558
        %vm1560 = vcmp.lt.s32.totalorder %v1559, 0
        %v1561 = vsub.s32 0, %v1559
        %v1562 = vsel %vm1560, %v1561, %v1559
        %v1563 = vclz %v1562
        %v1564 = vsub.s32 %v1563, 2
        %vm1565 = vcmp.gt.s32.totalorder 0, %v1564
        %v1566 = vsel %vm1565, 0, %v1564
        %v1567 = vsub.s32 32, %v1566
        %v1568 = vshll.u32 %v1559, %v1566
        %v1569 = vshrl.u32 %v1551, %v1567
        %v1570 = vor.u32 %v1568, %v1569
        %v1571 = vsub.s32 4294967266, %v1566
        %v1572 = vadd.s32 %v1571, 127
        %v1573 = vshll.u32 %v1572, 23
        %v1574 = vor.u32 4788187, %v1573
        %v1575 = vand.u32 2147483647, %v1574
        %v1577 = vcvt.s32.f32 %v1570
        %v1578 = vmul.f32 %v1577, %v1575
        %v1579 = vxor.u32 %v1578, 2147483648
        %v1580 = vsel %vm1497, %v1579, %v1578
        %v1581 = vsub.s32 4, %v1557
        %v1582 = vsel %vm1497, %v1581, %v1557
        %v1583 = vsel %vm1496, %v462, %v1580
        %v1584 = vsel %vm1496, 0, %v1582
        %v1585 = vcosq.f32.pop %v1583
        %v1586 = vsinq.f32.pop %v1583
        %vm1587 = vweird.f32 %v462
        %v1588 = vadd.s32 %v1584, 3
        %v1589 = vand.u32 %v1588, 3
        %vm1590 = vcmp.lt.s32.totalorder %v1589, 2
        %vm1591 = vcmp.eq.s32.totalorder %v1589, 0
        %v1592 = vxor.u32 %v1586, 2147483648
        %v1593 = vsel %vm1591, %v1585, %v1592
        %vm1594 = vcmp.eq.s32.totalorder %v1589, 2
        %v1595 = vxor.u32 %v1585, 2147483648
        %v1596 = vsel %vm1594, %v1595, %v1586
        %v1597 = vsel %vm1590, %v1593, %v1596
        %v1598 = vsel %vm1587, nan, %v1597
        %v1599 = vand.u32 2147483647, %v549
        %vm1600 = vcmp.le.f32.partialorder %v1599, 0.7853982
        %vm1601 = vcmp.lt.s32.totalorder %v549, 0
        %v1602 = vand.u32 %v549, 2139095040
        %v1603 = vshrl.u32 %v1602, 23
        %v1604 = vsub.s32 %v1603, 127
        %v1605 = vand.u32 2147483647, %v549
        %v1606 = vand.u32 %v1605, 8388607
        %v1607 = vor.u32 %v1606, 8388608
        %v1608 = vsub.s32 0, %v1607
        %v1609 = vadd.s32 %v1604, 1
        %vm1610 = vcmp.gt.s32.totalorder %v1609, 0
        %v1611 = vsel %vm1610, %v1609, 0
        %v1612 = vshrl.u32 %v1611, 5
        %v1613 = vand.u32 %v1611, 31
        %v1614 = vsub.s32 32, %v1613
        %v1615 = vshrl.u32 683565275, %v1614
        %v1616 = vshll.u32 683565275, %v1613
        %v1617 = vshrl.u32 2475754826, %v1614
        %v1618 = vor.u32 %v1616, %v1617
        %v1619 = vshll.u32 2475754826, %v1613
        %v1620 = vshrl.u32 2131351028, %v1614
        %v1621 = vor.u32 %v1619, %v1620
        %v1622 = vshll.u32 2131351028, %v1613
        %v1623 = vshrl.u32 2102212464, %v1614
        %v1624 = vor.u32 %v1622, %v1623
        %v1625 = vshll.u32 2102212464, %v1613
        %v1626 = vshrl.u32 920167782, %v1614
        %v1627 = vor.u32 %v1625, %v1626
        %v1628 = vshll.u32 920167782, %v1613
        %v1629 = vshrl.u32 1326507024, %v1614
        %v1630 = vor.u32 %v1628, %v1629
        %vm1631 = vcmp.lt.s32.totalorder %v1612, 1
        %vm1632 = vcmp.lt.s32.totalorder %v1612, 2
        %vm1633 = vcmp.lt.s32.totalorder %v1612, 3
        %vm1634 = vcmp.lt.s32.totalorder %v1612, 4
        %v1635 = vsel %vm1631, %v1615, %v1618
        %v1636 = vsel %vm1634, %v1624, 2102212464
        %v1637 = vsel %vm1633, %v1621, %v1636
        %v1638 = vsel %vm1632, %v1635, %v1637
        %v1639 = vsel %vm1631, %v1618, %v1621
        %v1640 = vsel %vm1634, %v1627, 920167782
        %v1641 = vsel %vm1633, %v1624, %v1640
        %v1642 = vsel %vm1632, %v1639, %v1641
        %v1643 = vsel %vm1631, %v1621, %v1624
        %v1644 = vsel %vm1634, %v1630, 1326507024
        %v1645 = vsel %vm1633, %v1627, %v1644
        %v1646 = vsel %vm1632, %v1643, %v1645
        %v1647 = vshll.u32 %v1607, 8
        %v1648 = vmul.u32.u64.compose %v1647, %v1646
        %v1649 = vextract.low.u32 %v1648
        %v1650 = vextract.high.u32 %v1648
        %v1651 = vmul.u32.u64.compose %v1647, %v1642
        %v1652 = vextract.low.u32 %v1651
        %v1653 = vextract.high.u32 %v1651
        %v1654 = vmul.u32 %v1647, %v1638
        %v1655 = vadd.s32 %v1650, %v1652
        %vm1656 = vc.u32 %v1650, %v1652
        %v1657 = vadd.s32 %v1653, 1
        %v1658 = vsel %vm1656, %v1657, %v1653
        %v1659 = vadd.s32 %v1654, %v1658
        %v1660 = vadd.s32 %v1659, 536870912
        %v1661 = vshrl.u32 %v1660, 30
        %v1662 = vshll.u32 %v1661, 30
        %v1663 = vsub.s32 %v1659, %v1662
        %vm1664 = vcmp.lt.s32.totalorder %v1663, 0
        %v1665 = vsub.s32 0, %v1663
        %v1666 = vsel %vm1664, %v1665, %v1663
        %v1667 = vclz %v1666
        %v1668 = vsub.s32 %v1667, 2
        %vm1669 = vcmp.gt.s32.totalorder 0, %v1668
        %v1670 = vsel %vm1669, 0, %v1668
        %v1671 = vsub.s32 32, %v1670
        %v1672 = vshll.u32 %v1663, %v1670
        %v1673 = vshrl.u32 %v1655, %v1671
        %v1674 = vor.u32 %v1672, %v1673
        %v1675 = vsub.s32 4294967266, %v1670
        %v1676 = vadd.s32 %v1675, 127
        %v1677 = vshll.u32 %v1676, 23
        %v1678 = vor.u32 4788187, %v1677
        %v1679 = vand.u32 2147483647, %v1678
        %v1681 = vcvt.s32.f32 %v1674
        %v1682 = vmul.f32 %v1681, %v1679
        %v1683 = vxor.u32 %v1682, 2147483648
        %v1684 = vsel %vm1601, %v1683, %v1682
        %v1685 = vsub.s32 4, %v1661
        %v1686 = vsel %vm1601, %v1685, %v1661
        %v1687 = vsel %vm1600, %v549, %v1684
        %v1688 = vsel %vm1600, 0, %v1686
        %v1689 = vcosq.f32.pop %v1687
        %v1690 = vsinq.f32.pop %v1687
        %vm1691 = vweird.f32 %v549
        %v1692 = vadd.s32 %v1688, 3
        %v1693 = vand.u32 %v1692, 3
        %vm1694 = vcmp.lt.s32.totalorder %v1693, 2
        %vm1695 = vcmp.eq.s32.totalorder %v1693, 0
        %v1696 = vxor.u32 %v1690, 2147483648
        %v1697 = vsel %vm1695, %v1689, %v1696
        %vm1698 = vcmp.eq.s32.totalorder %v1693, 2
        %v1699 = vxor.u32 %v1689, 2147483648
        %v1700 = vsel %vm1698, %v1699, %v1690
        %v1701 = vsel %vm1694, %v1697, %v1700
        %v1702 = vsel %vm1691, nan, %v1701
        %v1703 = vand.u32 2147483647, %v551
        %vm1704 = vcmp.le.f32.partialorder %v1703, 0.7853982
        %vm1705 = vcmp.lt.s32.totalorder %v551, 0
        %v1706 = vand.u32 %v551, 2139095040
        %v1707 = vshrl.u32 %v1706, 23
        %v1708 = vsub.s32 %v1707, 127
        %v1709 = vand.u32 2147483647, %v551
        %v1710 = vand.u32 %v1709, 8388607
        %v1711 = vor.u32 %v1710, 8388608
        %v1712 = vsub.s32 0, %v1711
        %v1713 = vadd.s32 %v1708, 1
        %vm1714 = vcmp.gt.s32.totalorder %v1713, 0
        %v1715 = vsel %vm1714, %v1713, 0
        %v1716 = vshrl.u32 %v1715, 5
        %v1717 = vand.u32 %v1715, 31
        %v1718 = vsub.s32 32, %v1717
        %v1719 = vshrl.u32 683565275, %v1718
        %v1720 = vshll.u32 683565275, %v1717
        %v1721 = vshrl.u32 2475754826, %v1718
        %v1722 = vor.u32 %v1720, %v1721
        %v1723 = vshll.u32 2475754826, %v1717
        %v1724 = vshrl.u32 2131351028, %v1718
        %v1725 = vor.u32 %v1723, %v1724
        %v1726 = vshll.u32 2131351028, %v1717
        %v1727 = vshrl.u32 2102212464, %v1718
        %v1728 = vor.u32 %v1726, %v1727
        %v1729 = vshll.u32 2102212464, %v1717
        %v1730 = vshrl.u32 920167782, %v1718
        %v1731 = vor.u32 %v1729, %v1730
        %v1732 = vshll.u32 920167782, %v1717
        %v1733 = vshrl.u32 1326507024, %v1718
        %v1734 = vor.u32 %v1732, %v1733
        %vm1735 = vcmp.lt.s32.totalorder %v1716, 1
        %vm1736 = vcmp.lt.s32.totalorder %v1716, 2
        %vm1737 = vcmp.lt.s32.totalorder %v1716, 3
        %vm1738 = vcmp.lt.s32.totalorder %v1716, 4
        %v1739 = vsel %vm1735, %v1719, %v1722
        %v1740 = vsel %vm1738, %v1728, 2102212464
        %v1741 = vsel %vm1737, %v1725, %v1740
        %v1742 = vsel %vm1736, %v1739, %v1741
        %v1743 = vsel %vm1735, %v1722, %v1725
        %v1744 = vsel %vm1738, %v1731, 920167782
        %v1745 = vsel %vm1737, %v1728, %v1744
        %v1746 = vsel %vm1736, %v1743, %v1745
        %v1747 = vsel %vm1735, %v1725, %v1728
        %v1748 = vsel %vm1738, %v1734, 1326507024
        %v1749 = vsel %vm1737, %v1731, %v1748
        %v1750 = vsel %vm1736, %v1747, %v1749
        %v1751 = vshll.u32 %v1711, 8
        %v1752 = vmul.u32.u64.compose %v1751, %v1750
        %v1753 = vextract.low.u32 %v1752
        %v1754 = vextract.high.u32 %v1752
        %v1755 = vmul.u32.u64.compose %v1751, %v1746
        %v1756 = vextract.low.u32 %v1755
        %v1757 = vextract.high.u32 %v1755
        %v1758 = vmul.u32 %v1751, %v1742
        %v1759 = vadd.s32 %v1754, %v1756
        %vm1760 = vc.u32 %v1754, %v1756
        %v1761 = vadd.s32 %v1757, 1
        %v1762 = vsel %vm1760, %v1761, %v1757
        %v1763 = vadd.s32 %v1758, %v1762
        %v1764 = vadd.s32 %v1763, 536870912
        %v1765 = vshrl.u32 %v1764, 30
        %v1766 = vshll.u32 %v1765, 30
        %v1767 = vsub.s32 %v1763, %v1766
        %vm1768 = vcmp.lt.s32.totalorder %v1767, 0
        %v1769 = vsub.s32 0, %v1767
        %v1770 = vsel %vm1768, %v1769, %v1767
        %v1771 = vclz %v1770
        %v1772 = vsub.s32 %v1771, 2
        %vm1773 = vcmp.gt.s32.totalorder 0, %v1772
        %v1774 = vsel %vm1773, 0, %v1772
        %v1775 = vsub.s32 32, %v1774
        %v1776 = vshll.u32 %v1767, %v1774
        %v1777 = vshrl.u32 %v1759, %v1775
        %v1778 = vor.u32 %v1776, %v1777
        %v1779 = vsub.s32 4294967266, %v1774
        %v1780 = vadd.s32 %v1779, 127
        %v1781 = vshll.u32 %v1780, 23
        %v1782 = vor.u32 4788187, %v1781
        %v1783 = vand.u32 2147483647, %v1782
        %v1785 = vcvt.s32.f32 %v1778
        %v1786 = vmul.f32 %v1785, %v1783
        %v1787 = vxor.u32 %v1786, 2147483648
        %v1788 = vsel %vm1705, %v1787, %v1786
        %v1789 = vsub.s32 4, %v1765
        %v1790 = vsel %vm1705, %v1789, %v1765
        %v1791 = vsel %vm1704, %v551, %v1788
        %v1792 = vsel %vm1704, 0, %v1790
        %v1793 = vcosq.f32.pop %v1791
        %v1794 = vsinq.f32.pop %v1791
        %vm1795 = vweird.f32 %v551
        %v1796 = vadd.s32 %v1792, 3
        %v1797 = vand.u32 %v1796, 3
        %vm1798 = vcmp.lt.s32.totalorder %v1797, 2
        %vm1799 = vcmp.eq.s32.totalorder %v1797, 0
        %v1800 = vxor.u32 %v1794, 2147483648
        %v1801 = vsel %vm1799, %v1793, %v1800
        %vm1802 = vcmp.eq.s32.totalorder %v1797, 2
        %v1803 = vxor.u32 %v1793, 2147483648
        %v1804 = vsel %vm1802, %v1803, %v1794
        %v1805 = vsel %vm1798, %v1801, %v1804
        %v1806 = vsel %vm1795, nan, %v1805
        %v1807 = vand.u32 2147483647, %v466
        %vm1808 = vcmp.le.f32.partialorder %v1807, 0.7853982
        %vm1809 = vcmp.lt.s32.totalorder %v466, 0
        %v1810 = vand.u32 %v466, 2139095040
        %v1811 = vshrl.u32 %v1810, 23
        %v1812 = vsub.s32 %v1811, 127
        %v1813 = vand.u32 2147483647, %v466
        %v1814 = vand.u32 %v1813, 8388607
        %v1815 = vor.u32 %v1814, 8388608
        %v1816 = vsub.s32 0, %v1815
        %v1817 = vadd.s32 %v1812, 1
        %vm1818 = vcmp.gt.s32.totalorder %v1817, 0
        %v1819 = vsel %vm1818, %v1817, 0
        %v1820 = vshrl.u32 %v1819, 5
        %v1821 = vand.u32 %v1819, 31
        %v1822 = vsub.s32 32, %v1821
        %v1823 = vshrl.u32 683565275, %v1822
        %v1824 = vshll.u32 683565275, %v1821
        %v1825 = vshrl.u32 2475754826, %v1822
        %v1826 = vor.u32 %v1824, %v1825
        %v1827 = vshll.u32 2475754826, %v1821
        %v1828 = vshrl.u32 2131351028, %v1822
        %v1829 = vor.u32 %v1827, %v1828
        %v1830 = vshll.u32 2131351028, %v1821
        %v1831 = vshrl.u32 2102212464, %v1822
        %v1832 = vor.u32 %v1830, %v1831
        %v1833 = vshll.u32 2102212464, %v1821
        %v1834 = vshrl.u32 920167782, %v1822
        %v1835 = vor.u32 %v1833, %v1834
        %v1836 = vshll.u32 920167782, %v1821
        %v1837 = vshrl.u32 1326507024, %v1822
        %v1838 = vor.u32 %v1836, %v1837
        %vm1839 = vcmp.lt.s32.totalorder %v1820, 1
        %vm1840 = vcmp.lt.s32.totalorder %v1820, 2
        %vm1841 = vcmp.lt.s32.totalorder %v1820, 3
        %vm1842 = vcmp.lt.s32.totalorder %v1820, 4
        %v1843 = vsel %vm1839, %v1823, %v1826
        %v1844 = vsel %vm1842, %v1832, 2102212464
        %v1845 = vsel %vm1841, %v1829, %v1844
        %v1846 = vsel %vm1840, %v1843, %v1845
        %v1847 = vsel %vm1839, %v1826, %v1829
        %v1848 = vsel %vm1842, %v1835, 920167782
        %v1849 = vsel %vm1841, %v1832, %v1848
        %v1850 = vsel %vm1840, %v1847, %v1849
        %v1851 = vsel %vm1839, %v1829, %v1832
        %v1852 = vsel %vm1842, %v1838, 1326507024
        %v1853 = vsel %vm1841, %v1835, %v1852
        %v1854 = vsel %vm1840, %v1851, %v1853
        %v1855 = vshll.u32 %v1815, 8
        %v1856 = vmul.u32.u64.compose %v1855, %v1854
        %v1857 = vextract.low.u32 %v1856
        %v1858 = vextract.high.u32 %v1856
        %v1859 = vmul.u32.u64.compose %v1855, %v1850
        %v1860 = vextract.low.u32 %v1859
        %v1861 = vextract.high.u32 %v1859
        %v1862 = vmul.u32 %v1855, %v1846
        %v1863 = vadd.s32 %v1858, %v1860
        %vm1864 = vc.u32 %v1858, %v1860
        %v1865 = vadd.s32 %v1861, 1
        %v1866 = vsel %vm1864, %v1865, %v1861
        %v1867 = vadd.s32 %v1862, %v1866
        %v1868 = vadd.s32 %v1867, 536870912
        %v1869 = vshrl.u32 %v1868, 30
        %v1870 = vshll.u32 %v1869, 30
        %v1871 = vsub.s32 %v1867, %v1870
        %vm1872 = vcmp.lt.s32.totalorder %v1871, 0
        %v1873 = vsub.s32 0, %v1871
        %v1874 = vsel %vm1872, %v1873, %v1871
        %v1875 = vclz %v1874
        %v1876 = vsub.s32 %v1875, 2
        %vm1877 = vcmp.gt.s32.totalorder 0, %v1876
        %v1878 = vsel %vm1877, 0, %v1876
        %v1879 = vsub.s32 32, %v1878
        %v1880 = vshll.u32 %v1871, %v1878
        %v1881 = vshrl.u32 %v1863, %v1879
        %v1882 = vor.u32 %v1880, %v1881
        %v1883 = vsub.s32 4294967266, %v1878
        %v1884 = vadd.s32 %v1883, 127
        %v1885 = vshll.u32 %v1884, 23
        %v1886 = vor.u32 4788187, %v1885
        %v1887 = vand.u32 2147483647, %v1886
        %v1889 = vcvt.s32.f32 %v1882
        %v1890 = vmul.f32 %v1889, %v1887
        %v1891 = vxor.u32 %v1890, 2147483648
        %v1892 = vsel %vm1809, %v1891, %v1890
        %v1893 = vsub.s32 4, %v1869
        %v1894 = vsel %vm1809, %v1893, %v1869
        %v1895 = vsel %vm1808, %v466, %v1892
        %v1896 = vsel %vm1808, 0, %v1894
        %v1897 = vcosq.f32.pop %v1895
        %v1898 = vsinq.f32.pop %v1895
        %vm1899 = vweird.f32 %v466
        %v1900 = vadd.s32 %v1896, 3
        %v1901 = vand.u32 %v1900, 3
        %vm1902 = vcmp.lt.s32.totalorder %v1901, 2
        %vm1903 = vcmp.eq.s32.totalorder %v1901, 0
        %v1904 = vxor.u32 %v1898, 2147483648
        %v1905 = vsel %vm1903, %v1897, %v1904
        %vm1906 = vcmp.eq.s32.totalorder %v1901, 2
        %v1907 = vxor.u32 %v1897, 2147483648
        %v1908 = vsel %vm1906, %v1907, %v1898
        %v1909 = vsel %vm1902, %v1905, %v1908
        %v1910 = vsel %vm1899, nan, %v1909
        %v1911 = vand.u32 2147483647, %v468
        %vm1912 = vcmp.le.f32.partialorder %v1911, 0.7853982
        %vm1913 = vcmp.lt.s32.totalorder %v468, 0
        %v1914 = vand.u32 %v468, 2139095040
        %v1915 = vshrl.u32 %v1914, 23
        %v1916 = vsub.s32 %v1915, 127
        %v1917 = vand.u32 2147483647, %v468
        %v1918 = vand.u32 %v1917, 8388607
        %v1919 = vor.u32 %v1918, 8388608
        %v1920 = vsub.s32 0, %v1919
        %v1921 = vadd.s32 %v1916, 1
        %vm1922 = vcmp.gt.s32.totalorder %v1921, 0
        %v1923 = vsel %vm1922, %v1921, 0
        %v1924 = vshrl.u32 %v1923, 5
        %v1925 = vand.u32 %v1923, 31
        %v1926 = vsub.s32 32, %v1925
        %v1927 = vshrl.u32 683565275, %v1926
        %v1928 = vshll.u32 683565275, %v1925
        %v1929 = vshrl.u32 2475754826, %v1926
        %v1930 = vor.u32 %v1928, %v1929
        %v1931 = vshll.u32 2475754826, %v1925
        %v1932 = vshrl.u32 2131351028, %v1926
        %v1933 = vor.u32 %v1931, %v1932
        %v1934 = vshll.u32 2131351028, %v1925
        %v1935 = vshrl.u32 2102212464, %v1926
        %v1936 = vor.u32 %v1934, %v1935
        %v1937 = vshll.u32 2102212464, %v1925
        %v1938 = vshrl.u32 920167782, %v1926
        %v1939 = vor.u32 %v1937, %v1938
        %v1940 = vshll.u32 920167782, %v1925
        %v1941 = vshrl.u32 1326507024, %v1926
        %v1942 = vor.u32 %v1940, %v1941
        %vm1943 = vcmp.lt.s32.totalorder %v1924, 1
        %vm1944 = vcmp.lt.s32.totalorder %v1924, 2
        %vm1945 = vcmp.lt.s32.totalorder %v1924, 3
        %vm1946 = vcmp.lt.s32.totalorder %v1924, 4
        %v1947 = vsel %vm1943, %v1927, %v1930
        %v1948 = vsel %vm1946, %v1936, 2102212464
        %v1949 = vsel %vm1945, %v1933, %v1948
        %v1950 = vsel %vm1944, %v1947, %v1949
        %v1951 = vsel %vm1943, %v1930, %v1933
        %v1952 = vsel %vm1946, %v1939, 920167782
        %v1953 = vsel %vm1945, %v1936, %v1952
        %v1954 = vsel %vm1944, %v1951, %v1953
        %v1955 = vsel %vm1943, %v1933, %v1936
        %v1956 = vsel %vm1946, %v1942, 1326507024
        %v1957 = vsel %vm1945, %v1939, %v1956
        %v1958 = vsel %vm1944, %v1955, %v1957
        %v1959 = vshll.u32 %v1919, 8
        %v1960 = vmul.u32.u64.compose %v1959, %v1958
        %v1961 = vextract.low.u32 %v1960
        %v1962 = vextract.high.u32 %v1960
        %v1963 = vmul.u32.u64.compose %v1959, %v1954
        %v1964 = vextract.low.u32 %v1963
        %v1965 = vextract.high.u32 %v1963
        %v1966 = vmul.u32 %v1959, %v1950
        %v1967 = vadd.s32 %v1962, %v1964
        %vm1968 = vc.u32 %v1962, %v1964
        %v1969 = vadd.s32 %v1965, 1
        %v1970 = vsel %vm1968, %v1969, %v1965
        %v1971 = vadd.s32 %v1966, %v1970
        %v1972 = vadd.s32 %v1971, 536870912
        %v1973 = vshrl.u32 %v1972, 30
        %v1974 = vshll.u32 %v1973, 30
        %v1975 = vsub.s32 %v1971, %v1974
        %vm1976 = vcmp.lt.s32.totalorder %v1975, 0
        %v1977 = vsub.s32 0, %v1975
        %v1978 = vsel %vm1976, %v1977, %v1975
        %v1979 = vclz %v1978
        %v1980 = vsub.s32 %v1979, 2
        %vm1981 = vcmp.gt.s32.totalorder 0, %v1980
        %v1982 = vsel %vm1981, 0, %v1980
        %v1983 = vsub.s32 32, %v1982
        %v1984 = vshll.u32 %v1975, %v1982
        %v1985 = vshrl.u32 %v1967, %v1983
        %v1986 = vor.u32 %v1984, %v1985
        %v1987 = vsub.s32 4294967266, %v1982
        %v1988 = vadd.s32 %v1987, 127
        %v1989 = vshll.u32 %v1988, 23
        %v1990 = vor.u32 4788187, %v1989
        %v1991 = vand.u32 2147483647, %v1990
        %v1993 = vcvt.s32.f32 %v1986
        %v1994 = vmul.f32 %v1993, %v1991
        %v1995 = vxor.u32 %v1994, 2147483648
        %v1996 = vsel %vm1913, %v1995, %v1994
        %v1997 = vsub.s32 4, %v1973
        %v1998 = vsel %vm1913, %v1997, %v1973
        %v1999 = vsel %vm1912, %v468, %v1996
        %v2000 = vsel %vm1912, 0, %v1998
        %v2001 = vcosq.f32.pop %v1999
        %v2002 = vsinq.f32.pop %v1999
        %vm2003 = vweird.f32 %v468
        %v2004 = vadd.s32 %v2000, 3
        %v2005 = vand.u32 %v2004, 3
        %vm2006 = vcmp.lt.s32.totalorder %v2005, 2
        %vm2007 = vcmp.eq.s32.totalorder %v2005, 0
        %v2008 = vxor.u32 %v2002, 2147483648
        %v2009 = vsel %vm2007, %v2001, %v2008
        %vm2010 = vcmp.eq.s32.totalorder %v2005, 2
        %v2011 = vxor.u32 %v2001, 2147483648
        %v2012 = vsel %vm2010, %v2011, %v2002
        %v2013 = vsel %vm2006, %v2009, %v2012
        %v2014 = vsel %vm2003, nan, %v2013
        %v2015 = vand.u32 2147483647, %v555
        %vm2016 = vcmp.le.f32.partialorder %v2015, 0.7853982
        %vm2017 = vcmp.lt.s32.totalorder %v555, 0
        %v2018 = vand.u32 %v555, 2139095040
        %v2019 = vshrl.u32 %v2018, 23
        %v2020 = vsub.s32 %v2019, 127
        %v2021 = vand.u32 2147483647, %v555
        %v2022 = vand.u32 %v2021, 8388607
        %v2023 = vor.u32 %v2022, 8388608
        %v2024 = vsub.s32 0, %v2023
        %v2025 = vadd.s32 %v2020, 1
        %vm2026 = vcmp.gt.s32.totalorder %v2025, 0
        %v2027 = vsel %vm2026, %v2025, 0
        %v2028 = vshrl.u32 %v2027, 5
        %v2029 = vand.u32 %v2027, 31
        %v2030 = vsub.s32 32, %v2029
        %v2031 = vshrl.u32 683565275, %v2030
        %v2032 = vshll.u32 683565275, %v2029
        %v2033 = vshrl.u32 2475754826, %v2030
        %v2034 = vor.u32 %v2032, %v2033
        %v2035 = vshll.u32 2475754826, %v2029
        %v2036 = vshrl.u32 2131351028, %v2030
        %v2037 = vor.u32 %v2035, %v2036
        %v2038 = vshll.u32 2131351028, %v2029
        %v2039 = vshrl.u32 2102212464, %v2030
        %v2040 = vor.u32 %v2038, %v2039
        %v2041 = vshll.u32 2102212464, %v2029
        %v2042 = vshrl.u32 920167782, %v2030
        %v2043 = vor.u32 %v2041, %v2042
        %v2044 = vshll.u32 920167782, %v2029
        %v2045 = vshrl.u32 1326507024, %v2030
        %v2046 = vor.u32 %v2044, %v2045
        %vm2047 = vcmp.lt.s32.totalorder %v2028, 1
        %vm2048 = vcmp.lt.s32.totalorder %v2028, 2
        %vm2049 = vcmp.lt.s32.totalorder %v2028, 3
        %vm2050 = vcmp.lt.s32.totalorder %v2028, 4
        %v2051 = vsel %vm2047, %v2031, %v2034
        %v2052 = vsel %vm2050, %v2040, 2102212464
        %v2053 = vsel %vm2049, %v2037, %v2052
        %v2054 = vsel %vm2048, %v2051, %v2053
        %v2055 = vsel %vm2047, %v2034, %v2037
        %v2056 = vsel %vm2050, %v2043, 920167782
        %v2057 = vsel %vm2049, %v2040, %v2056
        %v2058 = vsel %vm2048, %v2055, %v2057
        %v2059 = vsel %vm2047, %v2037, %v2040
        %v2060 = vsel %vm2050, %v2046, 1326507024
        %v2061 = vsel %vm2049, %v2043, %v2060
        %v2062 = vsel %vm2048, %v2059, %v2061
        %v2063 = vshll.u32 %v2023, 8
        %v2064 = vmul.u32.u64.compose %v2063, %v2062
        %v2065 = vextract.low.u32 %v2064
        %v2066 = vextract.high.u32 %v2064
        %v2067 = vmul.u32.u64.compose %v2063, %v2058
        %v2068 = vextract.low.u32 %v2067
        %v2069 = vextract.high.u32 %v2067
        %v2070 = vmul.u32 %v2063, %v2054
        %v2071 = vadd.s32 %v2066, %v2068
        %vm2072 = vc.u32 %v2066, %v2068
        %v2073 = vadd.s32 %v2069, 1
        %v2074 = vsel %vm2072, %v2073, %v2069
        %v2075 = vadd.s32 %v2070, %v2074
        %v2076 = vadd.s32 %v2075, 536870912
        %v2077 = vshrl.u32 %v2076, 30
        %v2078 = vshll.u32 %v2077, 30
        %v2079 = vsub.s32 %v2075, %v2078
        %vm2080 = vcmp.lt.s32.totalorder %v2079, 0
        %v2081 = vsub.s32 0, %v2079
        %v2082 = vsel %vm2080, %v2081, %v2079
        %v2083 = vclz %v2082
        %v2084 = vsub.s32 %v2083, 2
        %vm2085 = vcmp.gt.s32.totalorder 0, %v2084
        %v2086 = vsel %vm2085, 0, %v2084
        %v2087 = vsub.s32 32, %v2086
        %v2088 = vshll.u32 %v2079, %v2086
        %v2089 = vshrl.u32 %v2071, %v2087
        %v2090 = vor.u32 %v2088, %v2089
        %v2091 = vsub.s32 4294967266, %v2086
        %v2092 = vadd.s32 %v2091, 127
        %v2093 = vshll.u32 %v2092, 23
        %v2094 = vor.u32 4788187, %v2093
        %v2095 = vand.u32 2147483647, %v2094
        %v2097 = vcvt.s32.f32 %v2090
        %v2098 = vmul.f32 %v2097, %v2095
        %v2099 = vxor.u32 %v2098, 2147483648
        %v2100 = vsel %vm2017, %v2099, %v2098
        %v2101 = vsub.s32 4, %v2077
        %v2102 = vsel %vm2017, %v2101, %v2077
        %v2103 = vsel %vm2016, %v555, %v2100
        %v2104 = vsel %vm2016, 0, %v2102
        %v2105 = vcosq.f32.pop %v2103
        %v2106 = vsinq.f32.pop %v2103
        %vm2107 = vweird.f32 %v555
        %v2108 = vadd.s32 %v2104, 3
        %v2109 = vand.u32 %v2108, 3
        %vm2110 = vcmp.lt.s32.totalorder %v2109, 2
        %vm2111 = vcmp.eq.s32.totalorder %v2109, 0
        %v2112 = vxor.u32 %v2106, 2147483648
        %v2113 = vsel %vm2111, %v2105, %v2112
        %vm2114 = vcmp.eq.s32.totalorder %v2109, 2
        %v2115 = vxor.u32 %v2105, 2147483648
        %v2116 = vsel %vm2114, %v2115, %v2106
        %v2117 = vsel %vm2110, %v2113, %v2116
        %v2118 = vsel %vm2107, nan, %v2117
        %v2119 = vand.u32 2147483647, %v557
        %vm2120 = vcmp.le.f32.partialorder %v2119, 0.7853982
        %vm2121 = vcmp.lt.s32.totalorder %v557, 0
        %v2122 = vand.u32 %v557, 2139095040
        %v2123 = vshrl.u32 %v2122, 23
        %v2124 = vsub.s32 %v2123, 127
        %v2125 = vand.u32 2147483647, %v557
        %v2126 = vand.u32 %v2125, 8388607
        %v2127 = vor.u32 %v2126, 8388608
        %v2128 = vsub.s32 0, %v2127
        %v2129 = vadd.s32 %v2124, 1
        %vm2130 = vcmp.gt.s32.totalorder %v2129, 0
        %v2131 = vsel %vm2130, %v2129, 0
        %v2132 = vshrl.u32 %v2131, 5
        %v2133 = vand.u32 %v2131, 31
        %v2134 = vsub.s32 32, %v2133
        %v2135 = vshrl.u32 683565275, %v2134
        %v2136 = vshll.u32 683565275, %v2133
        %v2137 = vshrl.u32 2475754826, %v2134
        %v2138 = vor.u32 %v2136, %v2137
        %v2139 = vshll.u32 2475754826, %v2133
        %v2140 = vshrl.u32 2131351028, %v2134
        %v2141 = vor.u32 %v2139, %v2140
        %v2142 = vshll.u32 2131351028, %v2133
        %v2143 = vshrl.u32 2102212464, %v2134
        %v2144 = vor.u32 %v2142, %v2143
        %v2145 = vshll.u32 2102212464, %v2133
        %v2146 = vshrl.u32 920167782, %v2134
        %v2147 = vor.u32 %v2145, %v2146
        %v2148 = vshll.u32 920167782, %v2133
        %v2149 = vshrl.u32 1326507024, %v2134
        %v2150 = vor.u32 %v2148, %v2149
        %vm2151 = vcmp.lt.s32.totalorder %v2132, 1
        %vm2152 = vcmp.lt.s32.totalorder %v2132, 2
        %vm2153 = vcmp.lt.s32.totalorder %v2132, 3
        %vm2154 = vcmp.lt.s32.totalorder %v2132, 4
        %v2155 = vsel %vm2151, %v2135, %v2138
        %v2156 = vsel %vm2154, %v2144, 2102212464
        %v2157 = vsel %vm2153, %v2141, %v2156
        %v2158 = vsel %vm2152, %v2155, %v2157
        %v2159 = vsel %vm2151, %v2138, %v2141
        %v2160 = vsel %vm2154, %v2147, 920167782
        %v2161 = vsel %vm2153, %v2144, %v2160
        %v2162 = vsel %vm2152, %v2159, %v2161
        %v2163 = vsel %vm2151, %v2141, %v2144
        %v2164 = vsel %vm2154, %v2150, 1326507024
        %v2165 = vsel %vm2153, %v2147, %v2164
        %v2166 = vsel %vm2152, %v2163, %v2165
        %v2167 = vshll.u32 %v2127, 8
        %v2168 = vmul.u32.u64.compose %v2167, %v2166
        %v2169 = vextract.low.u32 %v2168
        %v2170 = vextract.high.u32 %v2168
        %v2171 = vmul.u32.u64.compose %v2167, %v2162
        %v2172 = vextract.low.u32 %v2171
        %v2173 = vextract.high.u32 %v2171
        %v2174 = vmul.u32 %v2167, %v2158
        %v2175 = vadd.s32 %v2170, %v2172
        %vm2176 = vc.u32 %v2170, %v2172
        %v2177 = vadd.s32 %v2173, 1
        %v2178 = vsel %vm2176, %v2177, %v2173
        %v2179 = vadd.s32 %v2174, %v2178
        %v2180 = vadd.s32 %v2179, 536870912
        %v2181 = vshrl.u32 %v2180, 30
        %v2182 = vshll.u32 %v2181, 30
        %v2183 = vsub.s32 %v2179, %v2182
        %vm2184 = vcmp.lt.s32.totalorder %v2183, 0
        %v2185 = vsub.s32 0, %v2183
        %v2186 = vsel %vm2184, %v2185, %v2183
        %v2187 = vclz %v2186
        %v2188 = vsub.s32 %v2187, 2
        %vm2189 = vcmp.gt.s32.totalorder 0, %v2188
        %v2190 = vsel %vm2189, 0, %v2188
        %v2191 = vsub.s32 32, %v2190
        %v2192 = vshll.u32 %v2183, %v2190
        %v2193 = vshrl.u32 %v2175, %v2191
        %v2194 = vor.u32 %v2192, %v2193
        %v2195 = vsub.s32 4294967266, %v2190
        %v2196 = vadd.s32 %v2195, 127
        %v2197 = vshll.u32 %v2196, 23
        %v2198 = vor.u32 4788187, %v2197
        %v2199 = vand.u32 2147483647, %v2198
        %v2201 = vcvt.s32.f32 %v2194
        %v2202 = vmul.f32 %v2201, %v2199
        %v2203 = vxor.u32 %v2202, 2147483648
        %v2204 = vsel %vm2121, %v2203, %v2202
        %v2205 = vsub.s32 4, %v2181
        %v2206 = vsel %vm2121, %v2205, %v2181
        %v2207 = vsel %vm2120, %v557, %v2204
        %v2208 = vsel %vm2120, 0, %v2206
        %v2209 = vcosq.f32.pop %v2207
        %v2210 = vsinq.f32.pop %v2207
        %vm2211 = vweird.f32 %v557
        %v2212 = vadd.s32 %v2208, 3
        %v2213 = vand.u32 %v2212, 3
        %vm2214 = vcmp.lt.s32.totalorder %v2213, 2
        %vm2215 = vcmp.eq.s32.totalorder %v2213, 0
        %v2216 = vxor.u32 %v2210, 2147483648
        %v2217 = vsel %vm2215, %v2209, %v2216
        %vm2218 = vcmp.eq.s32.totalorder %v2213, 2
        %v2219 = vxor.u32 %v2209, 2147483648
        %v2220 = vsel %vm2218, %v2219, %v2210
        %v2221 = vsel %vm2214, %v2217, %v2220
        %v2222 = vsel %vm2211, nan, %v2221
        %v2223 = vld [vmem:[%s3] sm:$0xff]
        %v2224 = vld [vmem:[%s3 + $0x8] sm:$0xff]
        %v2225 = vld [vmem:[%s3 + $0x10] sm:$0xff]
        %v2226 = vld [vmem:[%s3 + $0x18] sm:$0xff]
        %v2227 = vld [vmem:[%s4] sm:$0xff]
        %v2228 = vld [vmem:[%s4 + $0x8] sm:$0xff]
        %v2229 = vld [vmem:[%s4 + $0x10] sm:$0xff]
        %v2230 = vld [vmem:[%s4 + $0x18] sm:$0xff]
        %2232 = vset.pattern.permute.xlu0 0
        %2233 = vperm.xlu0 %2232, %v2227
        %v2234 = vpop.permute.xlu0 %2233
        %2237 = vset.pattern.permute.xlu0 0
        %2238 = vperm.xlu0 %2237, %v2228
        %v2239 = vpop.permute.xlu0 %2238
        %2242 = vset.pattern.permute.xlu0 0
        %2243 = vperm.xlu0 %2242, %v2229
        %v2244 = vpop.permute.xlu0 %2243
        %2247 = vset.pattern.permute.xlu0 0
        %2248 = vperm.xlu0 %2247, %v2230
        %v2249 = vpop.permute.xlu0 %2248
        %vm2251 = vcmask 261120
        %v2253 = vsel %vm2251, %v2223, 0
        %v2256 = vsel %vm2251, %v2224, 0
        %v2259 = vsel %vm2251, %v2225, 0
        %v2262 = vsel %vm2251, %v2226, 0
        %2264 = vmatprep.subr.mxu0 %v766
        %2265 = vmatpush1.msra.mxu0 %v662
        %2266 = vmatprep.subr.mxu0 %v1182
        %2267 = vmatpush1.msra.mxu0 %v1078
        %2268 = vmatprep.subr.mxu0 %v1598
        %2269 = vmatpush1.msra.mxu0 %v1494
        %2270 = vmatprep.subr.mxu0 %v2014
        %2271 = vmatpush1.msra.mxu0 %v1910
        %2272 = vmatprep.subr.mxu0 0.0
        %2273 = vmatpush1.msra.mxu0 0.0
        %2274 = vmatprep.subr.mxu0 0.0
        %2275 = vmatpush1.msra.mxu0 0.0
        %2276 = vmatprep.subr.mxu0 0.0
        %2277 = vmatpush1.msra.mxu0 0.0
        %2278 = vmatprep.subr.mxu0 0.0
        %2279 = vmatpush1.msra.mxu0 0.0
        %2280 = vmatprep.subr.mxu0 0.0
        %2281 = vmatpush1.msra.mxu0 0.0
        %2282 = vmatprep.subr.mxu0 0.0
        %2283 = vmatpush1.msra.mxu0 0.0
        %2284 = vmatprep.subr.mxu0 0.0
        %2285 = vmatpush1.msra.mxu0 0.0
        %2286 = vmatprep.subr.mxu0 0.0
        %2287 = vmatpush1.msra.mxu0 0.0
        %2288 = vmatprep.subr.mxu0 0.0
        %2289 = vmatpush1.msra.mxu0 0.0
        %2290 = vmatprep.subr.mxu0 0.0
        %2291 = vmatpush1.msra.mxu0 0.0
        %2292 = vmatprep.subr.mxu0 0.0
        %2293 = vmatpush1.msra.mxu0 0.0
        %2294 = vmatprep.subr.mxu0 0.0
        %2295 = vmatpush1.msra.mxu0 0.0
        %2296 = vmatprep.subr.mxu0 0.0
        %2297 = vmatpush1.msra.mxu0 0.0
        %2298 = vmatprep.subr.mxu0 0.0
        %2299 = vmatpush1.msra.mxu0 0.0
        %2300 = vmatprep.subr.mxu0 0.0
        %2301 = vmatpush1.msra.mxu0 0.0
        %2302 = vmatprep.subr.mxu0 0.0
        %2303 = vmatpush1.msra.mxu0 0.0
        %2304 = vmatprep.subr.mxu0 0.0
        %2305 = vmatpush1.msra.mxu0 0.0
        %2306 = vmatprep.subr.mxu0 0.0
        %2307 = vmatpush1.msra.mxu0 0.0
        %2308 = vmatprep.subr.mxu0 0.0
        %2309 = vmatpush1.msra.mxu0 0.0
        %2310 = vmatprep.subr.mxu0 0.0
        %2311 = vmatpush1.msra.mxu0 0.0
        %2312 = vmatprep.subr.mxu0 0.0
        %2313 = vmatpush1.msra.mxu0 0.0
        %2314 = vmatprep.subr.mxu0 0.0
        %2315 = vmatpush1.msra.mxu0 0.0
        %2316 = vmatprep.subr.mxu0 0.0
        %2317 = vmatpush1.msra.mxu0 0.0
        %2318 = vmatprep.subr.mxu0 0.0
        %2319 = vmatpush1.msra.mxu0 0.0
        %2320 = vmatprep.subr.mxu0 0.0
        %2321 = vmatpush1.msra.mxu0 0.0
        %2322 = vmatprep.subr.mxu0 0.0
        %2323 = vmatpush1.msra.mxu0 0.0
        %2324 = vmatprep.subr.mxu0 0.0
        %2325 = vmatpush1.msra.mxu0 0.0
        %2326 = vmatprep.subr.mxu0 0.0
        %2327 = vmatpush1.msra.mxu0 0.0
        %2328 = vmatprep.mubr.f32.mxu0 0.0
        %2329 = vmatmul.mubr.f32.gmra.mrb[0].mxu0 %v2253
        %v2330 = vpop.f32.mrb[0].mxu0
        %v2331 = vadd.f32 %v2234, %v2330
        %v2332 = vpop.f32.mrb[0].mxu0
        %v2333 = vadd.f32 %v2234, %v2332
        %2334 = vmatprep.mubr.f32.mxu0 0.0
        %2335 = vmatmul.mubr.f32.gmra.mrb[0].mxu0 %v2256
        %v2336 = vpop.f32.mrb[0].mxu0
        %v2337 = vadd.f32 %v2239, %v2336
        %v2338 = vpop.f32.mrb[0].mxu0
        %v2339 = vadd.f32 %v2239, %v2338
        %2340 = vmatprep.mubr.f32.mxu0 0.0
        %2341 = vmatmul.mubr.f32.gmra.mrb[0].mxu0 %v2259
        %v2342 = vpop.f32.mrb[0].mxu0
        %v2343 = vadd.f32 %v2244, %v2342
        %v2344 = vpop.f32.mrb[0].mxu0
        %v2345 = vadd.f32 %v2244, %v2344
        %2346 = vmatprep.mubr.f32.mxu0 0.0
        %2347 = vmatmul.mubr.f32.gmra.mrb[0].mxu0 %v2262
        %v2348 = vpop.f32.mrb[0].mxu0
        %v2349 = vadd.f32 %v2249, %v2348
        %v2350 = vpop.f32.mrb[0].mxu0
        %v2351 = vadd.f32 %v2249, %v2350
        %2352 = vdwg.mxu0
        %2353 = vmatprep.subr.mxu0 %v974
        %2354 = vmatpush1.msra.mxu0 %v870
        %2355 = vmatprep.subr.mxu0 %v1390
        %2356 = vmatpush1.msra.mxu0 %v1286
        %2357 = vmatprep.subr.mxu0 %v1806
        %2358 = vmatpush1.msra.mxu0 %v1702
        %2359 = vmatprep.subr.mxu0 %v2222
        %2360 = vmatpush1.msra.mxu0 %v2118
        %2361 = vmatprep.subr.mxu0 0.0
        %2362 = vmatpush1.msra.mxu0 0.0
        %2363 = vmatprep.subr.mxu0 0.0
        %2364 = vmatpush1.msra.mxu0 0.0
        %2365 = vmatprep.subr.mxu0 0.0
        %2366 = vmatpush1.msra.mxu0 0.0
        %2367 = vmatprep.subr.mxu0 0.0
        %2368 = vmatpush1.msra.mxu0 0.0
        %2369 = vmatprep.subr.mxu0 0.0
        %2370 = vmatpush1.msra.mxu0 0.0
        %2371 = vmatprep.subr.mxu0 0.0
        %2372 = vmatpush1.msra.mxu0 0.0
        %2373 = vmatprep.subr.mxu0 0.0
        %2374 = vmatpush1.msra.mxu0 0.0
        %2375 = vmatprep.subr.mxu0 0.0
        %2376 = vmatpush1.msra.mxu0 0.0
        %2377 = vmatprep.subr.mxu0 0.0
        %2378 = vmatpush1.msra.mxu0 0.0
        %2379 = vmatprep.subr.mxu0 0.0
        %2380 = vmatpush1.msra.mxu0 0.0
        %2381 = vmatprep.subr.mxu0 0.0
        %2382 = vmatpush1.msra.mxu0 0.0
        %2383 = vmatprep.subr.mxu0 0.0
        %2384 = vmatpush1.msra.mxu0 0.0
        %2385 = vmatprep.subr.mxu0 0.0
        %2386 = vmatpush1.msra.mxu0 0.0
        %2387 = vmatprep.subr.mxu0 0.0
        %2388 = vmatpush1.msra.mxu0 0.0
        %2389 = vmatprep.subr.mxu0 0.0
        %2390 = vmatpush1.msra.mxu0 0.0
        %2391 = vmatprep.subr.mxu0 0.0
        %2392 = vmatpush1.msra.mxu0 0.0
        %2393 = vmatprep.subr.mxu0 0.0
        %2394 = vmatpush1.msra.mxu0 0.0
        %2395 = vmatprep.subr.mxu0 0.0
        %2396 = vmatpush1.msra.mxu0 0.0
        %2397 = vmatprep.subr.mxu0 0.0
        %2398 = vmatpush1.msra.mxu0 0.0
        %2399 = vmatprep.subr.mxu0 0.0
        %2400 = vmatpush1.msra.mxu0 0.0
        %2401 = vmatprep.subr.mxu0 0.0
        %2402 = vmatpush1.msra.mxu0 0.0
        %2403 = vmatprep.subr.mxu0 0.0
        %2404 = vmatpush1.msra.mxu0 0.0
        %2405 = vmatprep.subr.mxu0 0.0
        %2406 = vmatpush1.msra.mxu0 0.0
        %2407 = vmatprep.subr.mxu0 0.0
        %2408 = vmatpush1.msra.mxu0 0.0
        %2409 = vmatprep.subr.mxu0 0.0
        %2410 = vmatpush1.msra.mxu0 0.0
        %2411 = vmatprep.subr.mxu0 0.0
        %2412 = vmatpush1.msra.mxu0 0.0
        %2413 = vmatprep.subr.mxu0 0.0
        %2414 = vmatpush1.msra.mxu0 0.0
        %2415 = vmatprep.subr.mxu0 0.0
        %2416 = vmatpush1.msra.mxu0 0.0
        %2417 = vmatprep.mubr.f32.mxu0 0.0
        %2418 = vmatmul.mubr.f32.gmra.mrb[0].mxu0 %v2253
        %v2419 = vpop.f32.mrb[0].mxu0
        %v2420 = vadd.f32 %v2234, %v2419
        %v2421 = vpop.f32.mrb[0].mxu0
        %v2422 = vadd.f32 %v2234, %v2421
        %2423 = vmatprep.mubr.f32.mxu0 0.0
        %2424 = vmatmul.mubr.f32.gmra.mrb[0].mxu0 %v2256
        %v2425 = vpop.f32.mrb[0].mxu0
        %v2426 = vadd.f32 %v2239, %v2425
        %v2427 = vpop.f32.mrb[0].mxu0
        %v2428 = vadd.f32 %v2239, %v2427
        %2429 = vmatprep.mubr.f32.mxu0 0.0
        %2430 = vmatmul.mubr.f32.gmra.mrb[0].mxu0 %v2259
        %v2431 = vpop.f32.mrb[0].mxu0
        %v2432 = vadd.f32 %v2244, %v2431
        %v2433 = vpop.f32.mrb[0].mxu0
        %v2434 = vadd.f32 %v2244, %v2433
        %2435 = vmatprep.mubr.f32.mxu0 0.0
        %2436 = vmatmul.mubr.f32.gmra.mrb[0].mxu0 %v2262
        %v2437 = vpop.f32.mrb[0].mxu0
        %v2438 = vadd.f32 %v2249, %v2437
        %v2439 = vpop.f32.mrb[0].mxu0
        %v2440 = vadd.f32 %v2249, %v2439
        %2441 = vdwg.mxu0
        %v2442 = vand.u32 2147483647, %v2331
        %vm2443 = vcmp.le.f32.partialorder %v2442, 0.7853982
        %vm2444 = vcmp.lt.s32.totalorder %v2331, 0
        %v2445 = vand.u32 %v2331, 2139095040
        %v2446 = vshrl.u32 %v2445, 23
        %v2447 = vsub.s32 %v2446, 127
        %v2448 = vand.u32 2147483647, %v2331
        %v2449 = vand.u32 %v2448, 8388607
        %v2450 = vor.u32 %v2449, 8388608
        %v2451 = vsub.s32 0, %v2450
        %v2452 = vadd.s32 %v2447, 1
        %vm2453 = vcmp.gt.s32.totalorder %v2452, 0
        %v2454 = vsel %vm2453, %v2452, 0
        %v2455 = vshrl.u32 %v2454, 5
        %v2456 = vand.u32 %v2454, 31
        %v2457 = vsub.s32 32, %v2456
        %v2458 = vshrl.u32 683565275, %v2457
        %v2459 = vshll.u32 683565275, %v2456
        %v2460 = vshrl.u32 2475754826, %v2457
        %v2461 = vor.u32 %v2459, %v2460
        %v2462 = vshll.u32 2475754826, %v2456
        %v2463 = vshrl.u32 2131351028, %v2457
        %v2464 = vor.u32 %v2462, %v2463
        %v2465 = vshll.u32 2131351028, %v2456
        %v2466 = vshrl.u32 2102212464, %v2457
        %v2467 = vor.u32 %v2465, %v2466
        %v2468 = vshll.u32 2102212464, %v2456
        %v2469 = vshrl.u32 920167782, %v2457
        %v2470 = vor.u32 %v2468, %v2469
        %v2471 = vshll.u32 920167782, %v2456
        %v2472 = vshrl.u32 1326507024, %v2457
        %v2473 = vor.u32 %v2471, %v2472
        %vm2474 = vcmp.lt.s32.totalorder %v2455, 1
        %vm2475 = vcmp.lt.s32.totalorder %v2455, 2
        %vm2476 = vcmp.lt.s32.totalorder %v2455, 3
        %vm2477 = vcmp.lt.s32.totalorder %v2455, 4
        %v2478 = vsel %vm2474, %v2458, %v2461
        %v2479 = vsel %vm2477, %v2467, 2102212464
        %v2480 = vsel %vm2476, %v2464, %v2479
        %v2481 = vsel %vm2475, %v2478, %v2480
        %v2482 = vsel %vm2474, %v2461, %v2464
        %v2483 = vsel %vm2477, %v2470, 920167782
        %v2484 = vsel %vm2476, %v2467, %v2483
        %v2485 = vsel %vm2475, %v2482, %v2484
        %v2486 = vsel %vm2474, %v2464, %v2467
        %v2487 = vsel %vm2477, %v2473, 1326507024
        %v2488 = vsel %vm2476, %v2470, %v2487
        %v2489 = vsel %vm2475, %v2486, %v2488
        %v2490 = vshll.u32 %v2450, 8
        %v2491 = vmul.u32.u64.compose %v2490, %v2489
        %v2492 = vextract.low.u32 %v2491
        %v2493 = vextract.high.u32 %v2491
        %v2494 = vmul.u32.u64.compose %v2490, %v2485
        %v2495 = vextract.low.u32 %v2494
        %v2496 = vextract.high.u32 %v2494
        %v2497 = vmul.u32 %v2490, %v2481
        %v2498 = vadd.s32 %v2493, %v2495
        %vm2499 = vc.u32 %v2493, %v2495
        %v2500 = vadd.s32 %v2496, 1
        %v2501 = vsel %vm2499, %v2500, %v2496
        %v2502 = vadd.s32 %v2497, %v2501
        %v2503 = vadd.s32 %v2502, 536870912
        %v2504 = vshrl.u32 %v2503, 30
        %v2505 = vshll.u32 %v2504, 30
        %v2506 = vsub.s32 %v2502, %v2505
        %vm2507 = vcmp.lt.s32.totalorder %v2506, 0
        %v2508 = vsub.s32 0, %v2506
        %v2509 = vsel %vm2507, %v2508, %v2506
        %v2510 = vclz %v2509
        %v2511 = vsub.s32 %v2510, 2
        %vm2512 = vcmp.gt.s32.totalorder 0, %v2511
        %v2513 = vsel %vm2512, 0, %v2511
        %v2514 = vsub.s32 32, %v2513
        %v2515 = vshll.u32 %v2506, %v2513
        %v2516 = vshrl.u32 %v2498, %v2514
        %v2517 = vor.u32 %v2515, %v2516
        %v2518 = vsub.s32 4294967266, %v2513
        %v2519 = vadd.s32 %v2518, 127
        %v2520 = vshll.u32 %v2519, 23
        %v2521 = vor.u32 4788187, %v2520
        %v2522 = vand.u32 2147483647, %v2521
        %v2524 = vcvt.s32.f32 %v2517
        %v2525 = vmul.f32 %v2524, %v2522
        %v2526 = vxor.u32 %v2525, 2147483648
        %v2527 = vsel %vm2444, %v2526, %v2525
        %v2528 = vsub.s32 4, %v2504
        %v2529 = vsel %vm2444, %v2528, %v2504
        %v2530 = vsel %vm2443, %v2331, %v2527
        %v2531 = vsel %vm2443, 0, %v2529
        %v2532 = vcosq.f32.pop %v2530
        %v2533 = vsinq.f32.pop %v2530
        %vm2534 = vweird.f32 %v2331
        %v2535 = vadd.s32 %v2531, 3
        %v2536 = vand.u32 %v2535, 3
        %vm2537 = vcmp.lt.s32.totalorder %v2536, 2
        %vm2538 = vcmp.eq.s32.totalorder %v2536, 0
        %v2539 = vxor.u32 %v2533, 2147483648
        %v2540 = vsel %vm2538, %v2532, %v2539
        %vm2541 = vcmp.eq.s32.totalorder %v2536, 2
        %v2542 = vxor.u32 %v2532, 2147483648
        %v2543 = vsel %vm2541, %v2542, %v2533
        %v2544 = vsel %vm2537, %v2540, %v2543
        %v2545 = vsel %vm2534, nan, %v2544
        %v2546 = vand.u32 2147483647, %v2333
        %vm2547 = vcmp.le.f32.partialorder %v2546, 0.7853982
        %vm2548 = vcmp.lt.s32.totalorder %v2333, 0
        %v2549 = vand.u32 %v2333, 2139095040
        %v2550 = vshrl.u32 %v2549, 23
        %v2551 = vsub.s32 %v2550, 127
        %v2552 = vand.u32 2147483647, %v2333
        %v2553 = vand.u32 %v2552, 8388607
        %v2554 = vor.u32 %v2553, 8388608
        %v2555 = vsub.s32 0, %v2554
        %v2556 = vadd.s32 %v2551, 1
        %vm2557 = vcmp.gt.s32.totalorder %v2556, 0
        %v2558 = vsel %vm2557, %v2556, 0
        %v2559 = vshrl.u32 %v2558, 5
        %v2560 = vand.u32 %v2558, 31
        %v2561 = vsub.s32 32, %v2560
        %v2562 = vshrl.u32 683565275, %v2561
        %v2563 = vshll.u32 683565275, %v2560
        %v2564 = vshrl.u32 2475754826, %v2561
        %v2565 = vor.u32 %v2563, %v2564
        %v2566 = vshll.u32 2475754826, %v2560
        %v2567 = vshrl.u32 2131351028, %v2561
        %v2568 = vor.u32 %v2566, %v2567
        %v2569 = vshll.u32 2131351028, %v2560
        %v2570 = vshrl.u32 2102212464, %v2561
        %v2571 = vor.u32 %v2569, %v2570
        %v2572 = vshll.u32 2102212464, %v2560
        %v2573 = vshrl.u32 920167782, %v2561
        %v2574 = vor.u32 %v2572, %v2573
        %v2575 = vshll.u32 920167782, %v2560
        %v2576 = vshrl.u32 1326507024, %v2561
        %v2577 = vor.u32 %v2575, %v2576
        %vm2578 = vcmp.lt.s32.totalorder %v2559, 1
        %vm2579 = vcmp.lt.s32.totalorder %v2559, 2
        %vm2580 = vcmp.lt.s32.totalorder %v2559, 3
        %vm2581 = vcmp.lt.s32.totalorder %v2559, 4
        %v2582 = vsel %vm2578, %v2562, %v2565
        %v2583 = vsel %vm2581, %v2571, 2102212464
        %v2584 = vsel %vm2580, %v2568, %v2583
        %v2585 = vsel %vm2579, %v2582, %v2584
        %v2586 = vsel %vm2578, %v2565, %v2568
        %v2587 = vsel %vm2581, %v2574, 920167782
        %v2588 = vsel %vm2580, %v2571, %v2587
        %v2589 = vsel %vm2579, %v2586, %v2588
        %v2590 = vsel %vm2578, %v2568, %v2571
        %v2591 = vsel %vm2581, %v2577, 1326507024
        %v2592 = vsel %vm2580, %v2574, %v2591
        %v2593 = vsel %vm2579, %v2590, %v2592
        %v2594 = vshll.u32 %v2554, 8
        %v2595 = vmul.u32.u64.compose %v2594, %v2593
        %v2596 = vextract.low.u32 %v2595
        %v2597 = vextract.high.u32 %v2595
        %v2598 = vmul.u32.u64.compose %v2594, %v2589
        %v2599 = vextract.low.u32 %v2598
        %v2600 = vextract.high.u32 %v2598
        %v2601 = vmul.u32 %v2594, %v2585
        %v2602 = vadd.s32 %v2597, %v2599
        %vm2603 = vc.u32 %v2597, %v2599
        %v2604 = vadd.s32 %v2600, 1
        %v2605 = vsel %vm2603, %v2604, %v2600
        %v2606 = vadd.s32 %v2601, %v2605
        %v2607 = vadd.s32 %v2606, 536870912
        %v2608 = vshrl.u32 %v2607, 30
        %v2609 = vshll.u32 %v2608, 30
        %v2610 = vsub.s32 %v2606, %v2609
        %vm2611 = vcmp.lt.s32.totalorder %v2610, 0
        %v2612 = vsub.s32 0, %v2610
        %v2613 = vsel %vm2611, %v2612, %v2610
        %v2614 = vclz %v2613
        %v2615 = vsub.s32 %v2614, 2
        %vm2616 = vcmp.gt.s32.totalorder 0, %v2615
        %v2617 = vsel %vm2616, 0, %v2615
        %v2618 = vsub.s32 32, %v2617
        %v2619 = vshll.u32 %v2610, %v2617
        %v2620 = vshrl.u32 %v2602, %v2618
        %v2621 = vor.u32 %v2619, %v2620
        %v2622 = vsub.s32 4294967266, %v2617
        %v2623 = vadd.s32 %v2622, 127
        %v2624 = vshll.u32 %v2623, 23
        %v2625 = vor.u32 4788187, %v2624
        %v2626 = vand.u32 2147483647, %v2625
        %v2628 = vcvt.s32.f32 %v2621
        %v2629 = vmul.f32 %v2628, %v2626
        %v2630 = vxor.u32 %v2629, 2147483648
        %v2631 = vsel %vm2548, %v2630, %v2629
        %v2632 = vsub.s32 4, %v2608
        %v2633 = vsel %vm2548, %v2632, %v2608
        %v2634 = vsel %vm2547, %v2333, %v2631
        %v2635 = vsel %vm2547, 0, %v2633
        %v2636 = vcosq.f32.pop %v2634
        %v2637 = vsinq.f32.pop %v2634
        %vm2638 = vweird.f32 %v2333
        %v2639 = vadd.s32 %v2635, 3
        %v2640 = vand.u32 %v2639, 3
        %vm2641 = vcmp.lt.s32.totalorder %v2640, 2
        %vm2642 = vcmp.eq.s32.totalorder %v2640, 0
        %v2643 = vxor.u32 %v2637, 2147483648
        %v2644 = vsel %vm2642, %v2636, %v2643
        %vm2645 = vcmp.eq.s32.totalorder %v2640, 2
        %v2646 = vxor.u32 %v2636, 2147483648
        %v2647 = vsel %vm2645, %v2646, %v2637
        %v2648 = vsel %vm2641, %v2644, %v2647
        %v2649 = vsel %vm2638, nan, %v2648
        %v2650 = vand.u32 2147483647, %v2420
        %vm2651 = vcmp.le.f32.partialorder %v2650, 0.7853982
        %vm2652 = vcmp.lt.s32.totalorder %v2420, 0
        %v2653 = vand.u32 %v2420, 2139095040
        %v2654 = vshrl.u32 %v2653, 23
        %v2655 = vsub.s32 %v2654, 127
        %v2656 = vand.u32 2147483647, %v2420
        %v2657 = vand.u32 %v2656, 8388607
        %v2658 = vor.u32 %v2657, 8388608
        %v2659 = vsub.s32 0, %v2658
        %v2660 = vadd.s32 %v2655, 1
        %vm2661 = vcmp.gt.s32.totalorder %v2660, 0
        %v2662 = vsel %vm2661, %v2660, 0
        %v2663 = vshrl.u32 %v2662, 5
        %v2664 = vand.u32 %v2662, 31
        %v2665 = vsub.s32 32, %v2664
        %v2666 = vshrl.u32 683565275, %v2665
        %v2667 = vshll.u32 683565275, %v2664
        %v2668 = vshrl.u32 2475754826, %v2665
        %v2669 = vor.u32 %v2667, %v2668
        %v2670 = vshll.u32 2475754826, %v2664
        %v2671 = vshrl.u32 2131351028, %v2665
        %v2672 = vor.u32 %v2670, %v2671
        %v2673 = vshll.u32 2131351028, %v2664
        %v2674 = vshrl.u32 2102212464, %v2665
        %v2675 = vor.u32 %v2673, %v2674
        %v2676 = vshll.u32 2102212464, %v2664
        %v2677 = vshrl.u32 920167782, %v2665
        %v2678 = vor.u32 %v2676, %v2677
        %v2679 = vshll.u32 920167782, %v2664
        %v2680 = vshrl.u32 1326507024, %v2665
        %v2681 = vor.u32 %v2679, %v2680
        %vm2682 = vcmp.lt.s32.totalorder %v2663, 1
        %vm2683 = vcmp.lt.s32.totalorder %v2663, 2
        %vm2684 = vcmp.lt.s32.totalorder %v2663, 3
        %vm2685 = vcmp.lt.s32.totalorder %v2663, 4
        %v2686 = vsel %vm2682, %v2666, %v2669
        %v2687 = vsel %vm2685, %v2675, 2102212464
        %v2688 = vsel %vm2684, %v2672, %v2687
        %v2689 = vsel %vm2683, %v2686, %v2688
        %v2690 = vsel %vm2682, %v2669, %v2672
        %v2691 = vsel %vm2685, %v2678, 920167782
        %v2692 = vsel %vm2684, %v2675, %v2691
        %v2693 = vsel %vm2683, %v2690, %v2692
        %v2694 = vsel %vm2682, %v2672, %v2675
        %v2695 = vsel %vm2685, %v2681, 1326507024
        %v2696 = vsel %vm2684, %v2678, %v2695
        %v2697 = vsel %vm2683, %v2694, %v2696
        %v2698 = vshll.u32 %v2658, 8
        %v2699 = vmul.u32.u64.compose %v2698, %v2697
        %v2700 = vextract.low.u32 %v2699
        %v2701 = vextract.high.u32 %v2699
        %v2702 = vmul.u32.u64.compose %v2698, %v2693
        %v2703 = vextract.low.u32 %v2702
        %v2704 = vextract.high.u32 %v2702
        %v2705 = vmul.u32 %v2698, %v2689
        %v2706 = vadd.s32 %v2701, %v2703
        %vm2707 = vc.u32 %v2701, %v2703
        %v2708 = vadd.s32 %v2704, 1
        %v2709 = vsel %vm2707, %v2708, %v2704
        %v2710 = vadd.s32 %v2705, %v2709
        %v2711 = vadd.s32 %v2710, 536870912
        %v2712 = vshrl.u32 %v2711, 30
        %v2713 = vshll.u32 %v2712, 30
        %v2714 = vsub.s32 %v2710, %v2713
        %vm2715 = vcmp.lt.s32.totalorder %v2714, 0
        %v2716 = vsub.s32 0, %v2714
        %v2717 = vsel %vm2715, %v2716, %v2714
        %v2718 = vclz %v2717
        %v2719 = vsub.s32 %v2718, 2
        %vm2720 = vcmp.gt.s32.totalorder 0, %v2719
        %v2721 = vsel %vm2720, 0, %v2719
        %v2722 = vsub.s32 32, %v2721
        %v2723 = vshll.u32 %v2714, %v2721
        %v2724 = vshrl.u32 %v2706, %v2722
        %v2725 = vor.u32 %v2723, %v2724
        %v2726 = vsub.s32 4294967266, %v2721
        %v2727 = vadd.s32 %v2726, 127
        %v2728 = vshll.u32 %v2727, 23
        %v2729 = vor.u32 4788187, %v2728
        %v2730 = vand.u32 2147483647, %v2729
        %v2732 = vcvt.s32.f32 %v2725
        %v2733 = vmul.f32 %v2732, %v2730
        %v2734 = vxor.u32 %v2733, 2147483648
        %v2735 = vsel %vm2652, %v2734, %v2733
        %v2736 = vsub.s32 4, %v2712
        %v2737 = vsel %vm2652, %v2736, %v2712
        %v2738 = vsel %vm2651, %v2420, %v2735
        %v2739 = vsel %vm2651, 0, %v2737
        %v2740 = vcosq.f32.pop %v2738
        %v2741 = vsinq.f32.pop %v2738
        %vm2742 = vweird.f32 %v2420
        %v2743 = vadd.s32 %v2739, 3
        %v2744 = vand.u32 %v2743, 3
        %vm2745 = vcmp.lt.s32.totalorder %v2744, 2
        %vm2746 = vcmp.eq.s32.totalorder %v2744, 0
        %v2747 = vxor.u32 %v2741, 2147483648
        %v2748 = vsel %vm2746, %v2740, %v2747
        %vm2749 = vcmp.eq.s32.totalorder %v2744, 2
        %v2750 = vxor.u32 %v2740, 2147483648
        %v2751 = vsel %vm2749, %v2750, %v2741
        %v2752 = vsel %vm2745, %v2748, %v2751
        %v2753 = vsel %vm2742, nan, %v2752
        %v2754 = vand.u32 2147483647, %v2422
        %vm2755 = vcmp.le.f32.partialorder %v2754, 0.7853982
        %vm2756 = vcmp.lt.s32.totalorder %v2422, 0
        %v2757 = vand.u32 %v2422, 2139095040
        %v2758 = vshrl.u32 %v2757, 23
        %v2759 = vsub.s32 %v2758, 127
        %v2760 = vand.u32 2147483647, %v2422
        %v2761 = vand.u32 %v2760, 8388607
        %v2762 = vor.u32 %v2761, 8388608
        %v2763 = vsub.s32 0, %v2762
        %v2764 = vadd.s32 %v2759, 1
        %vm2765 = vcmp.gt.s32.totalorder %v2764, 0
        %v2766 = vsel %vm2765, %v2764, 0
        %v2767 = vshrl.u32 %v2766, 5
        %v2768 = vand.u32 %v2766, 31
        %v2769 = vsub.s32 32, %v2768
        %v2770 = vshrl.u32 683565275, %v2769
        %v2771 = vshll.u32 683565275, %v2768
        %v2772 = vshrl.u32 2475754826, %v2769
        %v2773 = vor.u32 %v2771, %v2772
        %v2774 = vshll.u32 2475754826, %v2768
        %v2775 = vshrl.u32 2131351028, %v2769
        %v2776 = vor.u32 %v2774, %v2775
        %v2777 = vshll.u32 2131351028, %v2768
        %v2778 = vshrl.u32 2102212464, %v2769
        %v2779 = vor.u32 %v2777, %v2778
        %v2780 = vshll.u32 2102212464, %v2768
        %v2781 = vshrl.u32 920167782, %v2769
        %v2782 = vor.u32 %v2780, %v2781
        %v2783 = vshll.u32 920167782, %v2768
        %v2784 = vshrl.u32 1326507024, %v2769
        %v2785 = vor.u32 %v2783, %v2784
        %vm2786 = vcmp.lt.s32.totalorder %v2767, 1
        %vm2787 = vcmp.lt.s32.totalorder %v2767, 2
        %vm2788 = vcmp.lt.s32.totalorder %v2767, 3
        %vm2789 = vcmp.lt.s32.totalorder %v2767, 4
        %v2790 = vsel %vm2786, %v2770, %v2773
        %v2791 = vsel %vm2789, %v2779, 2102212464
        %v2792 = vsel %vm2788, %v2776, %v2791
        %v2793 = vsel %vm2787, %v2790, %v2792
        %v2794 = vsel %vm2786, %v2773, %v2776
        %v2795 = vsel %vm2789, %v2782, 920167782
        %v2796 = vsel %vm2788, %v2779, %v2795
        %v2797 = vsel %vm2787, %v2794, %v2796
        %v2798 = vsel %vm2786, %v2776, %v2779
        %v2799 = vsel %vm2789, %v2785, 1326507024
        %v2800 = vsel %vm2788, %v2782, %v2799
        %v2801 = vsel %vm2787, %v2798, %v2800
        %v2802 = vshll.u32 %v2762, 8
        %v2803 = vmul.u32.u64.compose %v2802, %v2801
        %v2804 = vextract.low.u32 %v2803
        %v2805 = vextract.high.u32 %v2803
        %v2806 = vmul.u32.u64.compose %v2802, %v2797
        %v2807 = vextract.low.u32 %v2806
        %v2808 = vextract.high.u32 %v2806
        %v2809 = vmul.u32 %v2802, %v2793
        %v2810 = vadd.s32 %v2805, %v2807
        %vm2811 = vc.u32 %v2805, %v2807
        %v2812 = vadd.s32 %v2808, 1
        %v2813 = vsel %vm2811, %v2812, %v2808
        %v2814 = vadd.s32 %v2809, %v2813
        %v2815 = vadd.s32 %v2814, 536870912
        %v2816 = vshrl.u32 %v2815, 30
        %v2817 = vshll.u32 %v2816, 30
        %v2818 = vsub.s32 %v2814, %v2817
        %vm2819 = vcmp.lt.s32.totalorder %v2818, 0
        %v2820 = vsub.s32 0, %v2818
        %v2821 = vsel %vm2819, %v2820, %v2818
        %v2822 = vclz %v2821
        %v2823 = vsub.s32 %v2822, 2
        %vm2824 = vcmp.gt.s32.totalorder 0, %v2823
        %v2825 = vsel %vm2824, 0, %v2823
        %v2826 = vsub.s32 32, %v2825
        %v2827 = vshll.u32 %v2818, %v2825
        %v2828 = vshrl.u32 %v2810, %v2826
        %v2829 = vor.u32 %v2827, %v2828
        %v2830 = vsub.s32 4294967266, %v2825
        %v2831 = vadd.s32 %v2830, 127
        %v2832 = vshll.u32 %v2831, 23
        %v2833 = vor.u32 4788187, %v2832
        %v2834 = vand.u32 2147483647, %v2833
        %v2836 = vcvt.s32.f32 %v2829
        %v2837 = vmul.f32 %v2836, %v2834
        %v2838 = vxor.u32 %v2837, 2147483648
        %v2839 = vsel %vm2756, %v2838, %v2837
        %v2840 = vsub.s32 4, %v2816
        %v2841 = vsel %vm2756, %v2840, %v2816
        %v2842 = vsel %vm2755, %v2422, %v2839
        %v2843 = vsel %vm2755, 0, %v2841
        %v2844 = vcosq.f32.pop %v2842
        %v2845 = vsinq.f32.pop %v2842
        %vm2846 = vweird.f32 %v2422
        %v2847 = vadd.s32 %v2843, 3
        %v2848 = vand.u32 %v2847, 3
        %vm2849 = vcmp.lt.s32.totalorder %v2848, 2
        %vm2850 = vcmp.eq.s32.totalorder %v2848, 0
        %v2851 = vxor.u32 %v2845, 2147483648
        %v2852 = vsel %vm2850, %v2844, %v2851
        %vm2853 = vcmp.eq.s32.totalorder %v2848, 2
        %v2854 = vxor.u32 %v2844, 2147483648
        %v2855 = vsel %vm2853, %v2854, %v2845
        %v2856 = vsel %vm2849, %v2852, %v2855
        %v2857 = vsel %vm2846, nan, %v2856
        %v2858 = vand.u32 2147483647, %v2337
        %vm2859 = vcmp.le.f32.partialorder %v2858, 0.7853982
        %vm2860 = vcmp.lt.s32.totalorder %v2337, 0
        %v2861 = vand.u32 %v2337, 2139095040
        %v2862 = vshrl.u32 %v2861, 23
        %v2863 = vsub.s32 %v2862, 127
        %v2864 = vand.u32 2147483647, %v2337
        %v2865 = vand.u32 %v2864, 8388607
        %v2866 = vor.u32 %v2865, 8388608
        %v2867 = vsub.s32 0, %v2866
        %v2868 = vadd.s32 %v2863, 1
        %vm2869 = vcmp.gt.s32.totalorder %v2868, 0
        %v2870 = vsel %vm2869, %v2868, 0
        %v2871 = vshrl.u32 %v2870, 5
        %v2872 = vand.u32 %v2870, 31
        %v2873 = vsub.s32 32, %v2872
        %v2874 = vshrl.u32 683565275, %v2873
        %v2875 = vshll.u32 683565275, %v2872
        %v2876 = vshrl.u32 2475754826, %v2873
        %v2877 = vor.u32 %v2875, %v2876
        %v2878 = vshll.u32 2475754826, %v2872
        %v2879 = vshrl.u32 2131351028, %v2873
        %v2880 = vor.u32 %v2878, %v2879
        %v2881 = vshll.u32 2131351028, %v2872
        %v2882 = vshrl.u32 2102212464, %v2873
        %v2883 = vor.u32 %v2881, %v2882
        %v2884 = vshll.u32 2102212464, %v2872
        %v2885 = vshrl.u32 920167782, %v2873
        %v2886 = vor.u32 %v2884, %v2885
        %v2887 = vshll.u32 920167782, %v2872
        %v2888 = vshrl.u32 1326507024, %v2873
        %v2889 = vor.u32 %v2887, %v2888
        %vm2890 = vcmp.lt.s32.totalorder %v2871, 1
        %vm2891 = vcmp.lt.s32.totalorder %v2871, 2
        %vm2892 = vcmp.lt.s32.totalorder %v2871, 3
        %vm2893 = vcmp.lt.s32.totalorder %v2871, 4
        %v2894 = vsel %vm2890, %v2874, %v2877
        %v2895 = vsel %vm2893, %v2883, 2102212464
        %v2896 = vsel %vm2892, %v2880, %v2895
        %v2897 = vsel %vm2891, %v2894, %v2896
        %v2898 = vsel %vm2890, %v2877, %v2880
        %v2899 = vsel %vm2893, %v2886, 920167782
        %v2900 = vsel %vm2892, %v2883, %v2899
        %v2901 = vsel %vm2891, %v2898, %v2900
        %v2902 = vsel %vm2890, %v2880, %v2883
        %v2903 = vsel %vm2893, %v2889, 1326507024
        %v2904 = vsel %vm2892, %v2886, %v2903
        %v2905 = vsel %vm2891, %v2902, %v2904
        %v2906 = vshll.u32 %v2866, 8
        %v2907 = vmul.u32.u64.compose %v2906, %v2905
        %v2908 = vextract.low.u32 %v2907
        %v2909 = vextract.high.u32 %v2907
        %v2910 = vmul.u32.u64.compose %v2906, %v2901
        %v2911 = vextract.low.u32 %v2910
        %v2912 = vextract.high.u32 %v2910
        %v2913 = vmul.u32 %v2906, %v2897
        %v2914 = vadd.s32 %v2909, %v2911
        %vm2915 = vc.u32 %v2909, %v2911
        %v2916 = vadd.s32 %v2912, 1
        %v2917 = vsel %vm2915, %v2916, %v2912
        %v2918 = vadd.s32 %v2913, %v2917
        %v2919 = vadd.s32 %v2918, 536870912
        %v2920 = vshrl.u32 %v2919, 30
        %v2921 = vshll.u32 %v2920, 30
        %v2922 = vsub.s32 %v2918, %v2921
        %vm2923 = vcmp.lt.s32.totalorder %v2922, 0
        %v2924 = vsub.s32 0, %v2922
        %v2925 = vsel %vm2923, %v2924, %v2922
        %v2926 = vclz %v2925
        %v2927 = vsub.s32 %v2926, 2
        %vm2928 = vcmp.gt.s32.totalorder 0, %v2927
        %v2929 = vsel %vm2928, 0, %v2927
        %v2930 = vsub.s32 32, %v2929
        %v2931 = vshll.u32 %v2922, %v2929
        %v2932 = vshrl.u32 %v2914, %v2930
        %v2933 = vor.u32 %v2931, %v2932
        %v2934 = vsub.s32 4294967266, %v2929
        %v2935 = vadd.s32 %v2934, 127
        %v2936 = vshll.u32 %v2935, 23
        %v2937 = vor.u32 4788187, %v2936
        %v2938 = vand.u32 2147483647, %v2937
        %v2940 = vcvt.s32.f32 %v2933
        %v2941 = vmul.f32 %v2940, %v2938
        %v2942 = vxor.u32 %v2941, 2147483648
        %v2943 = vsel %vm2860, %v2942, %v2941
        %v2944 = vsub.s32 4, %v2920
        %v2945 = vsel %vm2860, %v2944, %v2920
        %v2946 = vsel %vm2859, %v2337, %v2943
        %v2947 = vsel %vm2859, 0, %v2945
        %v2948 = vcosq.f32.pop %v2946
        %v2949 = vsinq.f32.pop %v2946
        %vm2950 = vweird.f32 %v2337
        %v2951 = vadd.s32 %v2947, 3
        %v2952 = vand.u32 %v2951, 3
        %vm2953 = vcmp.lt.s32.totalorder %v2952, 2
        %vm2954 = vcmp.eq.s32.totalorder %v2952, 0
        %v2955 = vxor.u32 %v2949, 2147483648
        %v2956 = vsel %vm2954, %v2948, %v2955
        %vm2957 = vcmp.eq.s32.totalorder %v2952, 2
        %v2958 = vxor.u32 %v2948, 2147483648
        %v2959 = vsel %vm2957, %v2958, %v2949
        %v2960 = vsel %vm2953, %v2956, %v2959
        %v2961 = vsel %vm2950, nan, %v2960
        %v2962 = vand.u32 2147483647, %v2339
        %vm2963 = vcmp.le.f32.partialorder %v2962, 0.7853982
        %vm2964 = vcmp.lt.s32.totalorder %v2339, 0
        %v2965 = vand.u32 %v2339, 2139095040
        %v2966 = vshrl.u32 %v2965, 23
        %v2967 = vsub.s32 %v2966, 127
        %v2968 = vand.u32 2147483647, %v2339
        %v2969 = vand.u32 %v2968, 8388607
        %v2970 = vor.u32 %v2969, 8388608
        %v2971 = vsub.s32 0, %v2970
        %v2972 = vadd.s32 %v2967, 1
        %vm2973 = vcmp.gt.s32.totalorder %v2972, 0
        %v2974 = vsel %vm2973, %v2972, 0
        %v2975 = vshrl.u32 %v2974, 5
        %v2976 = vand.u32 %v2974, 31
        %v2977 = vsub.s32 32, %v2976
        %v2978 = vshrl.u32 683565275, %v2977
        %v2979 = vshll.u32 683565275, %v2976
        %v2980 = vshrl.u32 2475754826, %v2977
        %v2981 = vor.u32 %v2979, %v2980
        %v2982 = vshll.u32 2475754826, %v2976
        %v2983 = vshrl.u32 2131351028, %v2977
        %v2984 = vor.u32 %v2982, %v2983
        %v2985 = vshll.u32 2131351028, %v2976
        %v2986 = vshrl.u32 2102212464, %v2977
        %v2987 = vor.u32 %v2985, %v2986
        %v2988 = vshll.u32 2102212464, %v2976
        %v2989 = vshrl.u32 920167782, %v2977
        %v2990 = vor.u32 %v2988, %v2989
        %v2991 = vshll.u32 920167782, %v2976
        %v2992 = vshrl.u32 1326507024, %v2977
        %v2993 = vor.u32 %v2991, %v2992
        %vm2994 = vcmp.lt.s32.totalorder %v2975, 1
        %vm2995 = vcmp.lt.s32.totalorder %v2975, 2
        %vm2996 = vcmp.lt.s32.totalorder %v2975, 3
        %vm2997 = vcmp.lt.s32.totalorder %v2975, 4
        %v2998 = vsel %vm2994, %v2978, %v2981
        %v2999 = vsel %vm2997, %v2987, 2102212464
        %v3000 = vsel %vm2996, %v2984, %v2999
        %v3001 = vsel %vm2995, %v2998, %v3000
        %v3002 = vsel %vm2994, %v2981, %v2984
        %v3003 = vsel %vm2997, %v2990, 920167782
        %v3004 = vsel %vm2996, %v2987, %v3003
        %v3005 = vsel %vm2995, %v3002, %v3004
        %v3006 = vsel %vm2994, %v2984, %v2987
        %v3007 = vsel %vm2997, %v2993, 1326507024
        %v3008 = vsel %vm2996, %v2990, %v3007
        %v3009 = vsel %vm2995, %v3006, %v3008
        %v3010 = vshll.u32 %v2970, 8
        %v3011 = vmul.u32.u64.compose %v3010, %v3009
        %v3012 = vextract.low.u32 %v3011
        %v3013 = vextract.high.u32 %v3011
        %v3014 = vmul.u32.u64.compose %v3010, %v3005
        %v3015 = vextract.low.u32 %v3014
        %v3016 = vextract.high.u32 %v3014
        %v3017 = vmul.u32 %v3010, %v3001
        %v3018 = vadd.s32 %v3013, %v3015
        %vm3019 = vc.u32 %v3013, %v3015
        %v3020 = vadd.s32 %v3016, 1
        %v3021 = vsel %vm3019, %v3020, %v3016
        %v3022 = vadd.s32 %v3017, %v3021
        %v3023 = vadd.s32 %v3022, 536870912
        %v3024 = vshrl.u32 %v3023, 30
        %v3025 = vshll.u32 %v3024, 30
        %v3026 = vsub.s32 %v3022, %v3025
        %vm3027 = vcmp.lt.s32.totalorder %v3026, 0
        %v3028 = vsub.s32 0, %v3026
        %v3029 = vsel %vm3027, %v3028, %v3026
        %v3030 = vclz %v3029
        %v3031 = vsub.s32 %v3030, 2
        %vm3032 = vcmp.gt.s32.totalorder 0, %v3031
        %v3033 = vsel %vm3032, 0, %v3031
        %v3034 = vsub.s32 32, %v3033
        %v3035 = vshll.u32 %v3026, %v3033
        %v3036 = vshrl.u32 %v3018, %v3034
        %v3037 = vor.u32 %v3035, %v3036
        %v3038 = vsub.s32 4294967266, %v3033
        %v3039 = vadd.s32 %v3038, 127
        %v3040 = vshll.u32 %v3039, 23
        %v3041 = vor.u32 4788187, %v3040
        %v3042 = vand.u32 2147483647, %v3041
        %v3044 = vcvt.s32.f32 %v3037
        %v3045 = vmul.f32 %v3044, %v3042
        %v3046 = vxor.u32 %v3045, 2147483648
        %v3047 = vsel %vm2964, %v3046, %v3045
        %v3048 = vsub.s32 4, %v3024
        %v3049 = vsel %vm2964, %v3048, %v3024
        %v3050 = vsel %vm2963, %v2339, %v3047
        %v3051 = vsel %vm2963, 0, %v3049
        %v3052 = vcosq.f32.pop %v3050
        %v3053 = vsinq.f32.pop %v3050
        %vm3054 = vweird.f32 %v2339
        %v3055 = vadd.s32 %v3051, 3
        %v3056 = vand.u32 %v3055, 3
        %vm3057 = vcmp.lt.s32.totalorder %v3056, 2
        %vm3058 = vcmp.eq.s32.totalorder %v3056, 0
        %v3059 = vxor.u32 %v3053, 2147483648
        %v3060 = vsel %vm3058, %v3052, %v3059
        %vm3061 = vcmp.eq.s32.totalorder %v3056, 2
        %v3062 = vxor.u32 %v3052, 2147483648
        %v3063 = vsel %vm3061, %v3062, %v3053
        %v3064 = vsel %vm3057, %v3060, %v3063
        %v3065 = vsel %vm3054, nan, %v3064
        %v3066 = vand.u32 2147483647, %v2426
        %vm3067 = vcmp.le.f32.partialorder %v3066, 0.7853982
        %vm3068 = vcmp.lt.s32.totalorder %v2426, 0
        %v3069 = vand.u32 %v2426, 2139095040
        %v3070 = vshrl.u32 %v3069, 23
        %v3071 = vsub.s32 %v3070, 127
        %v3072 = vand.u32 2147483647, %v2426
        %v3073 = vand.u32 %v3072, 8388607
        %v3074 = vor.u32 %v3073, 8388608
        %v3075 = vsub.s32 0, %v3074
        %v3076 = vadd.s32 %v3071, 1
        %vm3077 = vcmp.gt.s32.totalorder %v3076, 0
        %v3078 = vsel %vm3077, %v3076, 0
        %v3079 = vshrl.u32 %v3078, 5
        %v3080 = vand.u32 %v3078, 31
        %v3081 = vsub.s32 32, %v3080
        %v3082 = vshrl.u32 683565275, %v3081
        %v3083 = vshll.u32 683565275, %v3080
        %v3084 = vshrl.u32 2475754826, %v3081
        %v3085 = vor.u32 %v3083, %v3084
        %v3086 = vshll.u32 2475754826, %v3080
        %v3087 = vshrl.u32 2131351028, %v3081
        %v3088 = vor.u32 %v3086, %v3087
        %v3089 = vshll.u32 2131351028, %v3080
        %v3090 = vshrl.u32 2102212464, %v3081
        %v3091 = vor.u32 %v3089, %v3090
        %v3092 = vshll.u32 2102212464, %v3080
        %v3093 = vshrl.u32 920167782, %v3081
        %v3094 = vor.u32 %v3092, %v3093
        %v3095 = vshll.u32 920167782, %v3080
        %v3096 = vshrl.u32 1326507024, %v3081
        %v3097 = vor.u32 %v3095, %v3096
        %vm3098 = vcmp.lt.s32.totalorder %v3079, 1
        %vm3099 = vcmp.lt.s32.totalorder %v3079, 2
        %vm3100 = vcmp.lt.s32.totalorder %v3079, 3
        %vm3101 = vcmp.lt.s32.totalorder %v3079, 4
        %v3102 = vsel %vm3098, %v3082, %v3085
        %v3103 = vsel %vm3101, %v3091, 2102212464
        %v3104 = vsel %vm3100, %v3088, %v3103
        %v3105 = vsel %vm3099, %v3102, %v3104
        %v3106 = vsel %vm3098, %v3085, %v3088
        %v3107 = vsel %vm3101, %v3094, 920167782
        %v3108 = vsel %vm3100, %v3091, %v3107
        %v3109 = vsel %vm3099, %v3106, %v3108
        %v3110 = vsel %vm3098, %v3088, %v3091
        %v3111 = vsel %vm3101, %v3097, 1326507024
        %v3112 = vsel %vm3100, %v3094, %v3111
        %v3113 = vsel %vm3099, %v3110, %v3112
        %v3114 = vshll.u32 %v3074, 8
        %v3115 = vmul.u32.u64.compose %v3114, %v3113
        %v3116 = vextract.low.u32 %v3115
        %v3117 = vextract.high.u32 %v3115
        %v3118 = vmul.u32.u64.compose %v3114, %v3109
        %v3119 = vextract.low.u32 %v3118
        %v3120 = vextract.high.u32 %v3118
        %v3121 = vmul.u32 %v3114, %v3105
        %v3122 = vadd.s32 %v3117, %v3119
        %vm3123 = vc.u32 %v3117, %v3119
        %v3124 = vadd.s32 %v3120, 1
        %v3125 = vsel %vm3123, %v3124, %v3120
        %v3126 = vadd.s32 %v3121, %v3125
        %v3127 = vadd.s32 %v3126, 536870912
        %v3128 = vshrl.u32 %v3127, 30
        %v3129 = vshll.u32 %v3128, 30
        %v3130 = vsub.s32 %v3126, %v3129
        %vm3131 = vcmp.lt.s32.totalorder %v3130, 0
        %v3132 = vsub.s32 0, %v3130
        %v3133 = vsel %vm3131, %v3132, %v3130
        %v3134 = vclz %v3133
        %v3135 = vsub.s32 %v3134, 2
        %vm3136 = vcmp.gt.s32.totalorder 0, %v3135
        %v3137 = vsel %vm3136, 0, %v3135
        %v3138 = vsub.s32 32, %v3137
        %v3139 = vshll.u32 %v3130, %v3137
        %v3140 = vshrl.u32 %v3122, %v3138
        %v3141 = vor.u32 %v3139, %v3140
        %v3142 = vsub.s32 4294967266, %v3137
        %v3143 = vadd.s32 %v3142, 127
        %v3144 = vshll.u32 %v3143, 23
        %v3145 = vor.u32 4788187, %v3144
        %v3146 = vand.u32 2147483647, %v3145
        %v3148 = vcvt.s32.f32 %v3141
        %v3149 = vmul.f32 %v3148, %v3146
        %v3150 = vxor.u32 %v3149, 2147483648
        %v3151 = vsel %vm3068, %v3150, %v3149
        %v3152 = vsub.s32 4, %v3128
        %v3153 = vsel %vm3068, %v3152, %v3128
        %v3154 = vsel %vm3067, %v2426, %v3151
        %v3155 = vsel %vm3067, 0, %v3153
        %v3156 = vcosq.f32.pop %v3154
        %v3157 = vsinq.f32.pop %v3154
        %vm3158 = vweird.f32 %v2426
        %v3159 = vadd.s32 %v3155, 3
        %v3160 = vand.u32 %v3159, 3
        %vm3161 = vcmp.lt.s32.totalorder %v3160, 2
        %vm3162 = vcmp.eq.s32.totalorder %v3160, 0
        %v3163 = vxor.u32 %v3157, 2147483648
        %v3164 = vsel %vm3162, %v3156, %v3163
        %vm3165 = vcmp.eq.s32.totalorder %v3160, 2
        %v3166 = vxor.u32 %v3156, 2147483648
        %v3167 = vsel %vm3165, %v3166, %v3157
        %v3168 = vsel %vm3161, %v3164, %v3167
        %v3169 = vsel %vm3158, nan, %v3168
        %v3170 = vand.u32 2147483647, %v2428
        %vm3171 = vcmp.le.f32.partialorder %v3170, 0.7853982
        %vm3172 = vcmp.lt.s32.totalorder %v2428, 0
        %v3173 = vand.u32 %v2428, 2139095040
        %v3174 = vshrl.u32 %v3173, 23
        %v3175 = vsub.s32 %v3174, 127
        %v3176 = vand.u32 2147483647, %v2428
        %v3177 = vand.u32 %v3176, 8388607
        %v3178 = vor.u32 %v3177, 8388608
        %v3179 = vsub.s32 0, %v3178
        %v3180 = vadd.s32 %v3175, 1
        %vm3181 = vcmp.gt.s32.totalorder %v3180, 0
        %v3182 = vsel %vm3181, %v3180, 0
        %v3183 = vshrl.u32 %v3182, 5
        %v3184 = vand.u32 %v3182, 31
        %v3185 = vsub.s32 32, %v3184
        %v3186 = vshrl.u32 683565275, %v3185
        %v3187 = vshll.u32 683565275, %v3184
        %v3188 = vshrl.u32 2475754826, %v3185
        %v3189 = vor.u32 %v3187, %v3188
        %v3190 = vshll.u32 2475754826, %v3184
        %v3191 = vshrl.u32 2131351028, %v3185
        %v3192 = vor.u32 %v3190, %v3191
        %v3193 = vshll.u32 2131351028, %v3184
        %v3194 = vshrl.u32 2102212464, %v3185
        %v3195 = vor.u32 %v3193, %v3194
        %v3196 = vshll.u32 2102212464, %v3184
        %v3197 = vshrl.u32 920167782, %v3185
        %v3198 = vor.u32 %v3196, %v3197
        %v3199 = vshll.u32 920167782, %v3184
        %v3200 = vshrl.u32 1326507024, %v3185
        %v3201 = vor.u32 %v3199, %v3200
        %vm3202 = vcmp.lt.s32.totalorder %v3183, 1
        %vm3203 = vcmp.lt.s32.totalorder %v3183, 2
        %vm3204 = vcmp.lt.s32.totalorder %v3183, 3
        %vm3205 = vcmp.lt.s32.totalorder %v3183, 4
        %v3206 = vsel %vm3202, %v3186, %v3189
        %v3207 = vsel %vm3205, %v3195, 2102212464
        %v3208 = vsel %vm3204, %v3192, %v3207
        %v3209 = vsel %vm3203, %v3206, %v3208
        %v3210 = vsel %vm3202, %v3189, %v3192
        %v3211 = vsel %vm3205, %v3198, 920167782
        %v3212 = vsel %vm3204, %v3195, %v3211
        %v3213 = vsel %vm3203, %v3210, %v3212
        %v3214 = vsel %vm3202, %v3192, %v3195
        %v3215 = vsel %vm3205, %v3201, 1326507024
        %v3216 = vsel %vm3204, %v3198, %v3215
        %v3217 = vsel %vm3203, %v3214, %v3216
        %v3218 = vshll.u32 %v3178, 8
        %v3219 = vmul.u32.u64.compose %v3218, %v3217
        %v3220 = vextract.low.u32 %v3219
        %v3221 = vextract.high.u32 %v3219
        %v3222 = vmul.u32.u64.compose %v3218, %v3213
        %v3223 = vextract.low.u32 %v3222
        %v3224 = vextract.high.u32 %v3222
        %v3225 = vmul.u32 %v3218, %v3209
        %v3226 = vadd.s32 %v3221, %v3223
        %vm3227 = vc.u32 %v3221, %v3223
        %v3228 = vadd.s32 %v3224, 1
        %v3229 = vsel %vm3227, %v3228, %v3224
        %v3230 = vadd.s32 %v3225, %v3229
        %v3231 = vadd.s32 %v3230, 536870912
        %v3232 = vshrl.u32 %v3231, 30
        %v3233 = vshll.u32 %v3232, 30
        %v3234 = vsub.s32 %v3230, %v3233
        %vm3235 = vcmp.lt.s32.totalorder %v3234, 0
        %v3236 = vsub.s32 0, %v3234
        %v3237 = vsel %vm3235, %v3236, %v3234
        %v3238 = vclz %v3237
        %v3239 = vsub.s32 %v3238, 2
        %vm3240 = vcmp.gt.s32.totalorder 0, %v3239
        %v3241 = vsel %vm3240, 0, %v3239
        %v3242 = vsub.s32 32, %v3241
        %v3243 = vshll.u32 %v3234, %v3241
        %v3244 = vshrl.u32 %v3226, %v3242
        %v3245 = vor.u32 %v3243, %v3244
        %v3246 = vsub.s32 4294967266, %v3241
        %v3247 = vadd.s32 %v3246, 127
        %v3248 = vshll.u32 %v3247, 23
        %v3249 = vor.u32 4788187, %v3248
        %v3250 = vand.u32 2147483647, %v3249
        %v3252 = vcvt.s32.f32 %v3245
        %v3253 = vmul.f32 %v3252, %v3250
        %v3254 = vxor.u32 %v3253, 2147483648
        %v3255 = vsel %vm3172, %v3254, %v3253
        %v3256 = vsub.s32 4, %v3232
        %v3257 = vsel %vm3172, %v3256, %v3232
        %v3258 = vsel %vm3171, %v2428, %v3255
        %v3259 = vsel %vm3171, 0, %v3257
        %v3260 = vcosq.f32.pop %v3258
        %v3261 = vsinq.f32.pop %v3258
        %vm3262 = vweird.f32 %v2428
        %v3263 = vadd.s32 %v3259, 3
        %v3264 = vand.u32 %v3263, 3
        %vm3265 = vcmp.lt.s32.totalorder %v3264, 2
        %vm3266 = vcmp.eq.s32.totalorder %v3264, 0
        %v3267 = vxor.u32 %v3261, 2147483648
        %v3268 = vsel %vm3266, %v3260, %v3267
        %vm3269 = vcmp.eq.s32.totalorder %v3264, 2
        %v3270 = vxor.u32 %v3260, 2147483648
        %v3271 = vsel %vm3269, %v3270, %v3261
        %v3272 = vsel %vm3265, %v3268, %v3271
        %v3273 = vsel %vm3262, nan, %v3272
        %v3274 = vand.u32 2147483647, %v2343
        %vm3275 = vcmp.le.f32.partialorder %v3274, 0.7853982
        %vm3276 = vcmp.lt.s32.totalorder %v2343, 0
        %v3277 = vand.u32 %v2343, 2139095040
        %v3278 = vshrl.u32 %v3277, 23
        %v3279 = vsub.s32 %v3278, 127
        %v3280 = vand.u32 2147483647, %v2343
        %v3281 = vand.u32 %v3280, 8388607
        %v3282 = vor.u32 %v3281, 8388608
        %v3283 = vsub.s32 0, %v3282
        %v3284 = vadd.s32 %v3279, 1
        %vm3285 = vcmp.gt.s32.totalorder %v3284, 0
        %v3286 = vsel %vm3285, %v3284, 0
        %v3287 = vshrl.u32 %v3286, 5
        %v3288 = vand.u32 %v3286, 31
        %v3289 = vsub.s32 32, %v3288
        %v3290 = vshrl.u32 683565275, %v3289
        %v3291 = vshll.u32 683565275, %v3288
        %v3292 = vshrl.u32 2475754826, %v3289
        %v3293 = vor.u32 %v3291, %v3292
        %v3294 = vshll.u32 2475754826, %v3288
        %v3295 = vshrl.u32 2131351028, %v3289
        %v3296 = vor.u32 %v3294, %v3295
        %v3297 = vshll.u32 2131351028, %v3288
        %v3298 = vshrl.u32 2102212464, %v3289
        %v3299 = vor.u32 %v3297, %v3298
        %v3300 = vshll.u32 2102212464, %v3288
        %v3301 = vshrl.u32 920167782, %v3289
        %v3302 = vor.u32 %v3300, %v3301
        %v3303 = vshll.u32 920167782, %v3288
        %v3304 = vshrl.u32 1326507024, %v3289
        %v3305 = vor.u32 %v3303, %v3304
        %vm3306 = vcmp.lt.s32.totalorder %v3287, 1
        %vm3307 = vcmp.lt.s32.totalorder %v3287, 2
        %vm3308 = vcmp.lt.s32.totalorder %v3287, 3
        %vm3309 = vcmp.lt.s32.totalorder %v3287, 4
        %v3310 = vsel %vm3306, %v3290, %v3293
        %v3311 = vsel %vm3309, %v3299, 2102212464
        %v3312 = vsel %vm3308, %v3296, %v3311
        %v3313 = vsel %vm3307, %v3310, %v3312
        %v3314 = vsel %vm3306, %v3293, %v3296
        %v3315 = vsel %vm3309, %v3302, 920167782
        %v3316 = vsel %vm3308, %v3299, %v3315
        %v3317 = vsel %vm3307, %v3314, %v3316
        %v3318 = vsel %vm3306, %v3296, %v3299
        %v3319 = vsel %vm3309, %v3305, 1326507024
        %v3320 = vsel %vm3308, %v3302, %v3319
        %v3321 = vsel %vm3307, %v3318, %v3320
        %v3322 = vshll.u32 %v3282, 8
        %v3323 = vmul.u32.u64.compose %v3322, %v3321
        %v3324 = vextract.low.u32 %v3323
        %v3325 = vextract.high.u32 %v3323
        %v3326 = vmul.u32.u64.compose %v3322, %v3317
        %v3327 = vextract.low.u32 %v3326
        %v3328 = vextract.high.u32 %v3326
        %v3329 = vmul.u32 %v3322, %v3313
        %v3330 = vadd.s32 %v3325, %v3327
        %vm3331 = vc.u32 %v3325, %v3327
        %v3332 = vadd.s32 %v3328, 1
        %v3333 = vsel %vm3331, %v3332, %v3328
        %v3334 = vadd.s32 %v3329, %v3333
        %v3335 = vadd.s32 %v3334, 536870912
        %v3336 = vshrl.u32 %v3335, 30
        %v3337 = vshll.u32 %v3336, 30
        %v3338 = vsub.s32 %v3334, %v3337
        %vm3339 = vcmp.lt.s32.totalorder %v3338, 0
        %v3340 = vsub.s32 0, %v3338
        %v3341 = vsel %vm3339, %v3340, %v3338
        %v3342 = vclz %v3341
        %v3343 = vsub.s32 %v3342, 2
        %vm3344 = vcmp.gt.s32.totalorder 0, %v3343
        %v3345 = vsel %vm3344, 0, %v3343
        %v3346 = vsub.s32 32, %v3345
        %v3347 = vshll.u32 %v3338, %v3345
        %v3348 = vshrl.u32 %v3330, %v3346
        %v3349 = vor.u32 %v3347, %v3348
        %v3350 = vsub.s32 4294967266, %v3345
        %v3351 = vadd.s32 %v3350, 127
        %v3352 = vshll.u32 %v3351, 23
        %v3353 = vor.u32 4788187, %v3352
        %v3354 = vand.u32 2147483647, %v3353
        %v3356 = vcvt.s32.f32 %v3349
        %v3357 = vmul.f32 %v3356, %v3354
        %v3358 = vxor.u32 %v3357, 2147483648
        %v3359 = vsel %vm3276, %v3358, %v3357
        %v3360 = vsub.s32 4, %v3336
        %v3361 = vsel %vm3276, %v3360, %v3336
        %v3362 = vsel %vm3275, %v2343, %v3359
        %v3363 = vsel %vm3275, 0, %v3361
        %v3364 = vcosq.f32.pop %v3362
        %v3365 = vsinq.f32.pop %v3362
        %vm3366 = vweird.f32 %v2343
        %v3367 = vadd.s32 %v3363, 3
        %v3368 = vand.u32 %v3367, 3
        %vm3369 = vcmp.lt.s32.totalorder %v3368, 2
        %vm3370 = vcmp.eq.s32.totalorder %v3368, 0
        %v3371 = vxor.u32 %v3365, 2147483648
        %v3372 = vsel %vm3370, %v3364, %v3371
        %vm3373 = vcmp.eq.s32.totalorder %v3368, 2
        %v3374 = vxor.u32 %v3364, 2147483648
        %v3375 = vsel %vm3373, %v3374, %v3365
        %v3376 = vsel %vm3369, %v3372, %v3375
        %v3377 = vsel %vm3366, nan, %v3376
        %v3378 = vand.u32 2147483647, %v2345
        %vm3379 = vcmp.le.f32.partialorder %v3378, 0.7853982
        %vm3380 = vcmp.lt.s32.totalorder %v2345, 0
        %v3381 = vand.u32 %v2345, 2139095040
        %v3382 = vshrl.u32 %v3381, 23
        %v3383 = vsub.s32 %v3382, 127
        %v3384 = vand.u32 2147483647, %v2345
        %v3385 = vand.u32 %v3384, 8388607
        %v3386 = vor.u32 %v3385, 8388608
        %v3387 = vsub.s32 0, %v3386
        %v3388 = vadd.s32 %v3383, 1
        %vm3389 = vcmp.gt.s32.totalorder %v3388, 0
        %v3390 = vsel %vm3389, %v3388, 0
        %v3391 = vshrl.u32 %v3390, 5
        %v3392 = vand.u32 %v3390, 31
        %v3393 = vsub.s32 32, %v3392
        %v3394 = vshrl.u32 683565275, %v3393
        %v3395 = vshll.u32 683565275, %v3392
        %v3396 = vshrl.u32 2475754826, %v3393
        %v3397 = vor.u32 %v3395, %v3396
        %v3398 = vshll.u32 2475754826, %v3392
        %v3399 = vshrl.u32 2131351028, %v3393
        %v3400 = vor.u32 %v3398, %v3399
        %v3401 = vshll.u32 2131351028, %v3392
        %v3402 = vshrl.u32 2102212464, %v3393
        %v3403 = vor.u32 %v3401, %v3402
        %v3404 = vshll.u32 2102212464, %v3392
        %v3405 = vshrl.u32 920167782, %v3393
        %v3406 = vor.u32 %v3404, %v3405
        %v3407 = vshll.u32 920167782, %v3392
        %v3408 = vshrl.u32 1326507024, %v3393
        %v3409 = vor.u32 %v3407, %v3408
        %vm3410 = vcmp.lt.s32.totalorder %v3391, 1
        %vm3411 = vcmp.lt.s32.totalorder %v3391, 2
        %vm3412 = vcmp.lt.s32.totalorder %v3391, 3
        %vm3413 = vcmp.lt.s32.totalorder %v3391, 4
        %v3414 = vsel %vm3410, %v3394, %v3397
        %v3415 = vsel %vm3413, %v3403, 2102212464
        %v3416 = vsel %vm3412, %v3400, %v3415
        %v3417 = vsel %vm3411, %v3414, %v3416
        %v3418 = vsel %vm3410, %v3397, %v3400
        %v3419 = vsel %vm3413, %v3406, 920167782
        %v3420 = vsel %vm3412, %v3403, %v3419
        %v3421 = vsel %vm3411, %v3418, %v3420
        %v3422 = vsel %vm3410, %v3400, %v3403
        %v3423 = vsel %vm3413, %v3409, 1326507024
        %v3424 = vsel %vm3412, %v3406, %v3423
        %v3425 = vsel %vm3411, %v3422, %v3424
        %v3426 = vshll.u32 %v3386, 8
        %v3427 = vmul.u32.u64.compose %v3426, %v3425
        %v3428 = vextract.low.u32 %v3427
        %v3429 = vextract.high.u32 %v3427
        %v3430 = vmul.u32.u64.compose %v3426, %v3421
        %v3431 = vextract.low.u32 %v3430
        %v3432 = vextract.high.u32 %v3430
        %v3433 = vmul.u32 %v3426, %v3417
        %v3434 = vadd.s32 %v3429, %v3431
        %vm3435 = vc.u32 %v3429, %v3431
        %v3436 = vadd.s32 %v3432, 1
        %v3437 = vsel %vm3435, %v3436, %v3432
        %v3438 = vadd.s32 %v3433, %v3437
        %v3439 = vadd.s32 %v3438, 536870912
        %v3440 = vshrl.u32 %v3439, 30
        %v3441 = vshll.u32 %v3440, 30
        %v3442 = vsub.s32 %v3438, %v3441
        %vm3443 = vcmp.lt.s32.totalorder %v3442, 0
        %v3444 = vsub.s32 0, %v3442
        %v3445 = vsel %vm3443, %v3444, %v3442
        %v3446 = vclz %v3445
        %v3447 = vsub.s32 %v3446, 2
        %vm3448 = vcmp.gt.s32.totalorder 0, %v3447
        %v3449 = vsel %vm3448, 0, %v3447
        %v3450 = vsub.s32 32, %v3449
        %v3451 = vshll.u32 %v3442, %v3449
        %v3452 = vshrl.u32 %v3434, %v3450
        %v3453 = vor.u32 %v3451, %v3452
        %v3454 = vsub.s32 4294967266, %v3449
        %v3455 = vadd.s32 %v3454, 127
        %v3456 = vshll.u32 %v3455, 23
        %v3457 = vor.u32 4788187, %v3456
        %v3458 = vand.u32 2147483647, %v3457
        %v3460 = vcvt.s32.f32 %v3453
        %v3461 = vmul.f32 %v3460, %v3458
        %v3462 = vxor.u32 %v3461, 2147483648
        %v3463 = vsel %vm3380, %v3462, %v3461
        %v3464 = vsub.s32 4, %v3440
        %v3465 = vsel %vm3380, %v3464, %v3440
        %v3466 = vsel %vm3379, %v2345, %v3463
        %v3467 = vsel %vm3379, 0, %v3465
        %v3468 = vcosq.f32.pop %v3466
        %v3469 = vsinq.f32.pop %v3466
        %vm3470 = vweird.f32 %v2345
        %v3471 = vadd.s32 %v3467, 3
        %v3472 = vand.u32 %v3471, 3
        %vm3473 = vcmp.lt.s32.totalorder %v3472, 2
        %vm3474 = vcmp.eq.s32.totalorder %v3472, 0
        %v3475 = vxor.u32 %v3469, 2147483648
        %v3476 = vsel %vm3474, %v3468, %v3475
        %vm3477 = vcmp.eq.s32.totalorder %v3472, 2
        %v3478 = vxor.u32 %v3468, 2147483648
        %v3479 = vsel %vm3477, %v3478, %v3469
        %v3480 = vsel %vm3473, %v3476, %v3479
        %v3481 = vsel %vm3470, nan, %v3480
        %v3482 = vand.u32 2147483647, %v2432
        %vm3483 = vcmp.le.f32.partialorder %v3482, 0.7853982
        %vm3484 = vcmp.lt.s32.totalorder %v2432, 0
        %v3485 = vand.u32 %v2432, 2139095040
        %v3486 = vshrl.u32 %v3485, 23
        %v3487 = vsub.s32 %v3486, 127
        %v3488 = vand.u32 2147483647, %v2432
        %v3489 = vand.u32 %v3488, 8388607
        %v3490 = vor.u32 %v3489, 8388608
        %v3491 = vsub.s32 0, %v3490
        %v3492 = vadd.s32 %v3487, 1
        %vm3493 = vcmp.gt.s32.totalorder %v3492, 0
        %v3494 = vsel %vm3493, %v3492, 0
        %v3495 = vshrl.u32 %v3494, 5
        %v3496 = vand.u32 %v3494, 31
        %v3497 = vsub.s32 32, %v3496
        %v3498 = vshrl.u32 683565275, %v3497
        %v3499 = vshll.u32 683565275, %v3496
        %v3500 = vshrl.u32 2475754826, %v3497
        %v3501 = vor.u32 %v3499, %v3500
        %v3502 = vshll.u32 2475754826, %v3496
        %v3503 = vshrl.u32 2131351028, %v3497
        %v3504 = vor.u32 %v3502, %v3503
        %v3505 = vshll.u32 2131351028, %v3496
        %v3506 = vshrl.u32 2102212464, %v3497
        %v3507 = vor.u32 %v3505, %v3506
        %v3508 = vshll.u32 2102212464, %v3496
        %v3509 = vshrl.u32 920167782, %v3497
        %v3510 = vor.u32 %v3508, %v3509
        %v3511 = vshll.u32 920167782, %v3496
        %v3512 = vshrl.u32 1326507024, %v3497
        %v3513 = vor.u32 %v3511, %v3512
        %vm3514 = vcmp.lt.s32.totalorder %v3495, 1
        %vm3515 = vcmp.lt.s32.totalorder %v3495, 2
        %vm3516 = vcmp.lt.s32.totalorder %v3495, 3
        %vm3517 = vcmp.lt.s32.totalorder %v3495, 4
        %v3518 = vsel %vm3514, %v3498, %v3501
        %v3519 = vsel %vm3517, %v3507, 2102212464
        %v3520 = vsel %vm3516, %v3504, %v3519
        %v3521 = vsel %vm3515, %v3518, %v3520
        %v3522 = vsel %vm3514, %v3501, %v3504
        %v3523 = vsel %vm3517, %v3510, 920167782
        %v3524 = vsel %vm3516, %v3507, %v3523
        %v3525 = vsel %vm3515, %v3522, %v3524
        %v3526 = vsel %vm3514, %v3504, %v3507
        %v3527 = vsel %vm3517, %v3513, 1326507024
        %v3528 = vsel %vm3516, %v3510, %v3527
        %v3529 = vsel %vm3515, %v3526, %v3528
        %v3530 = vshll.u32 %v3490, 8
        %v3531 = vmul.u32.u64.compose %v3530, %v3529
        %v3532 = vextract.low.u32 %v3531
        %v3533 = vextract.high.u32 %v3531
        %v3534 = vmul.u32.u64.compose %v3530, %v3525
        %v3535 = vextract.low.u32 %v3534
        %v3536 = vextract.high.u32 %v3534
        %v3537 = vmul.u32 %v3530, %v3521
        %v3538 = vadd.s32 %v3533, %v3535
        %vm3539 = vc.u32 %v3533, %v3535
        %v3540 = vadd.s32 %v3536, 1
        %v3541 = vsel %vm3539, %v3540, %v3536
        %v3542 = vadd.s32 %v3537, %v3541
        %v3543 = vadd.s32 %v3542, 536870912
        %v3544 = vshrl.u32 %v3543, 30
        %v3545 = vshll.u32 %v3544, 30
        %v3546 = vsub.s32 %v3542, %v3545
        %vm3547 = vcmp.lt.s32.totalorder %v3546, 0
        %v3548 = vsub.s32 0, %v3546
        %v3549 = vsel %vm3547, %v3548, %v3546
        %v3550 = vclz %v3549
        %v3551 = vsub.s32 %v3550, 2
        %vm3552 = vcmp.gt.s32.totalorder 0, %v3551
        %v3553 = vsel %vm3552, 0, %v3551
        %v3554 = vsub.s32 32, %v3553
        %v3555 = vshll.u32 %v3546, %v3553
        %v3556 = vshrl.u32 %v3538, %v3554
        %v3557 = vor.u32 %v3555, %v3556
        %v3558 = vsub.s32 4294967266, %v3553
        %v3559 = vadd.s32 %v3558, 127
        %v3560 = vshll.u32 %v3559, 23
        %v3561 = vor.u32 4788187, %v3560
        %v3562 = vand.u32 2147483647, %v3561
        %v3564 = vcvt.s32.f32 %v3557
        %v3565 = vmul.f32 %v3564, %v3562
        %v3566 = vxor.u32 %v3565, 2147483648
        %v3567 = vsel %vm3484, %v3566, %v3565
        %v3568 = vsub.s32 4, %v3544
        %v3569 = vsel %vm3484, %v3568, %v3544
        %v3570 = vsel %vm3483, %v2432, %v3567
        %v3571 = vsel %vm3483, 0, %v3569
        %v3572 = vcosq.f32.pop %v3570
        %v3573 = vsinq.f32.pop %v3570
        %vm3574 = vweird.f32 %v2432
        %v3575 = vadd.s32 %v3571, 3
        %v3576 = vand.u32 %v3575, 3
        %vm3577 = vcmp.lt.s32.totalorder %v3576, 2
        %vm3578 = vcmp.eq.s32.totalorder %v3576, 0
        %v3579 = vxor.u32 %v3573, 2147483648
        %v3580 = vsel %vm3578, %v3572, %v3579
        %vm3581 = vcmp.eq.s32.totalorder %v3576, 2
        %v3582 = vxor.u32 %v3572, 2147483648
        %v3583 = vsel %vm3581, %v3582, %v3573
        %v3584 = vsel %vm3577, %v3580, %v3583
        %v3585 = vsel %vm3574, nan, %v3584
        %v3586 = vand.u32 2147483647, %v2434
        %vm3587 = vcmp.le.f32.partialorder %v3586, 0.7853982
        %vm3588 = vcmp.lt.s32.totalorder %v2434, 0
        %v3589 = vand.u32 %v2434, 2139095040
        %v3590 = vshrl.u32 %v3589, 23
        %v3591 = vsub.s32 %v3590, 127
        %v3592 = vand.u32 2147483647, %v2434
        %v3593 = vand.u32 %v3592, 8388607
        %v3594 = vor.u32 %v3593, 8388608
        %v3595 = vsub.s32 0, %v3594
        %v3596 = vadd.s32 %v3591, 1
        %vm3597 = vcmp.gt.s32.totalorder %v3596, 0
        %v3598 = vsel %vm3597, %v3596, 0
        %v3599 = vshrl.u32 %v3598, 5
        %v3600 = vand.u32 %v3598, 31
        %v3601 = vsub.s32 32, %v3600
        %v3602 = vshrl.u32 683565275, %v3601
        %v3603 = vshll.u32 683565275, %v3600
        %v3604 = vshrl.u32 2475754826, %v3601
        %v3605 = vor.u32 %v3603, %v3604
        %v3606 = vshll.u32 2475754826, %v3600
        %v3607 = vshrl.u32 2131351028, %v3601
        %v3608 = vor.u32 %v3606, %v3607
        %v3609 = vshll.u32 2131351028, %v3600
        %v3610 = vshrl.u32 2102212464, %v3601
        %v3611 = vor.u32 %v3609, %v3610
        %v3612 = vshll.u32 2102212464, %v3600
        %v3613 = vshrl.u32 920167782, %v3601
        %v3614 = vor.u32 %v3612, %v3613
        %v3615 = vshll.u32 920167782, %v3600
        %v3616 = vshrl.u32 1326507024, %v3601
        %v3617 = vor.u32 %v3615, %v3616
        %vm3618 = vcmp.lt.s32.totalorder %v3599, 1
        %vm3619 = vcmp.lt.s32.totalorder %v3599, 2
        %vm3620 = vcmp.lt.s32.totalorder %v3599, 3
        %vm3621 = vcmp.lt.s32.totalorder %v3599, 4
        %v3622 = vsel %vm3618, %v3602, %v3605
        %v3623 = vsel %vm3621, %v3611, 2102212464
        %v3624 = vsel %vm3620, %v3608, %v3623
        %v3625 = vsel %vm3619, %v3622, %v3624
        %v3626 = vsel %vm3618, %v3605, %v3608
        %v3627 = vsel %vm3621, %v3614, 920167782
        %v3628 = vsel %vm3620, %v3611, %v3627
        %v3629 = vsel %vm3619, %v3626, %v3628
        %v3630 = vsel %vm3618, %v3608, %v3611
        %v3631 = vsel %vm3621, %v3617, 1326507024
        %v3632 = vsel %vm3620, %v3614, %v3631
        %v3633 = vsel %vm3619, %v3630, %v3632
        %v3634 = vshll.u32 %v3594, 8
        %v3635 = vmul.u32.u64.compose %v3634, %v3633
        %v3636 = vextract.low.u32 %v3635
        %v3637 = vextract.high.u32 %v3635
        %v3638 = vmul.u32.u64.compose %v3634, %v3629
        %v3639 = vextract.low.u32 %v3638
        %v3640 = vextract.high.u32 %v3638
        %v3641 = vmul.u32 %v3634, %v3625
        %v3642 = vadd.s32 %v3637, %v3639
        %vm3643 = vc.u32 %v3637, %v3639
        %v3644 = vadd.s32 %v3640, 1
        %v3645 = vsel %vm3643, %v3644, %v3640
        %v3646 = vadd.s32 %v3641, %v3645
        %v3647 = vadd.s32 %v3646, 536870912
        %v3648 = vshrl.u32 %v3647, 30
        %v3649 = vshll.u32 %v3648, 30
        %v3650 = vsub.s32 %v3646, %v3649
        %vm3651 = vcmp.lt.s32.totalorder %v3650, 0
        %v3652 = vsub.s32 0, %v3650
        %v3653 = vsel %vm3651, %v3652, %v3650
        %v3654 = vclz %v3653
        %v3655 = vsub.s32 %v3654, 2
        %vm3656 = vcmp.gt.s32.totalorder 0, %v3655
        %v3657 = vsel %vm3656, 0, %v3655
        %v3658 = vsub.s32 32, %v3657
        %v3659 = vshll.u32 %v3650, %v3657
        %v3660 = vshrl.u32 %v3642, %v3658
        %v3661 = vor.u32 %v3659, %v3660
        %v3662 = vsub.s32 4294967266, %v3657
        %v3663 = vadd.s32 %v3662, 127
        %v3664 = vshll.u32 %v3663, 23
        %v3665 = vor.u32 4788187, %v3664
        %v3666 = vand.u32 2147483647, %v3665
        %v3668 = vcvt.s32.f32 %v3661
        %v3669 = vmul.f32 %v3668, %v3666
        %v3670 = vxor.u32 %v3669, 2147483648
        %v3671 = vsel %vm3588, %v3670, %v3669
        %v3672 = vsub.s32 4, %v3648
        %v3673 = vsel %vm3588, %v3672, %v3648
        %v3674 = vsel %vm3587, %v2434, %v3671
        %v3675 = vsel %vm3587, 0, %v3673
        %v3676 = vcosq.f32.pop %v3674
        %v3677 = vsinq.f32.pop %v3674
        %vm3678 = vweird.f32 %v2434
        %v3679 = vadd.s32 %v3675, 3
        %v3680 = vand.u32 %v3679, 3
        %vm3681 = vcmp.lt.s32.totalorder %v3680, 2
        %vm3682 = vcmp.eq.s32.totalorder %v3680, 0
        %v3683 = vxor.u32 %v3677, 2147483648
        %v3684 = vsel %vm3682, %v3676, %v3683
        %vm3685 = vcmp.eq.s32.totalorder %v3680, 2
        %v3686 = vxor.u32 %v3676, 2147483648
        %v3687 = vsel %vm3685, %v3686, %v3677
        %v3688 = vsel %vm3681, %v3684, %v3687
        %v3689 = vsel %vm3678, nan, %v3688
        %v3690 = vand.u32 2147483647, %v2349
        %vm3691 = vcmp.le.f32.partialorder %v3690, 0.7853982
        %vm3692 = vcmp.lt.s32.totalorder %v2349, 0
        %v3693 = vand.u32 %v2349, 2139095040
        %v3694 = vshrl.u32 %v3693, 23
        %v3695 = vsub.s32 %v3694, 127
        %v3696 = vand.u32 2147483647, %v2349
        %v3697 = vand.u32 %v3696, 8388607
        %v3698 = vor.u32 %v3697, 8388608
        %v3699 = vsub.s32 0, %v3698
        %v3700 = vadd.s32 %v3695, 1
        %vm3701 = vcmp.gt.s32.totalorder %v3700, 0
        %v3702 = vsel %vm3701, %v3700, 0
        %v3703 = vshrl.u32 %v3702, 5
        %v3704 = vand.u32 %v3702, 31
        %v3705 = vsub.s32 32, %v3704
        %v3706 = vshrl.u32 683565275, %v3705
        %v3707 = vshll.u32 683565275, %v3704
        %v3708 = vshrl.u32 2475754826, %v3705
        %v3709 = vor.u32 %v3707, %v3708
        %v3710 = vshll.u32 2475754826, %v3704
        %v3711 = vshrl.u32 2131351028, %v3705
        %v3712 = vor.u32 %v3710, %v3711
        %v3713 = vshll.u32 2131351028, %v3704
        %v3714 = vshrl.u32 2102212464, %v3705
        %v3715 = vor.u32 %v3713, %v3714
        %v3716 = vshll.u32 2102212464, %v3704
        %v3717 = vshrl.u32 920167782, %v3705
        %v3718 = vor.u32 %v3716, %v3717
        %v3719 = vshll.u32 920167782, %v3704
        %v3720 = vshrl.u32 1326507024, %v3705
        %v3721 = vor.u32 %v3719, %v3720
        %vm3722 = vcmp.lt.s32.totalorder %v3703, 1
        %vm3723 = vcmp.lt.s32.totalorder %v3703, 2
        %vm3724 = vcmp.lt.s32.totalorder %v3703, 3
        %vm3725 = vcmp.lt.s32.totalorder %v3703, 4
        %v3726 = vsel %vm3722, %v3706, %v3709
        %v3727 = vsel %vm3725, %v3715, 2102212464
        %v3728 = vsel %vm3724, %v3712, %v3727
        %v3729 = vsel %vm3723, %v3726, %v3728
        %v3730 = vsel %vm3722, %v3709, %v3712
        %v3731 = vsel %vm3725, %v3718, 920167782
        %v3732 = vsel %vm3724, %v3715, %v3731
        %v3733 = vsel %vm3723, %v3730, %v3732
        %v3734 = vsel %vm3722, %v3712, %v3715
        %v3735 = vsel %vm3725, %v3721, 1326507024
        %v3736 = vsel %vm3724, %v3718, %v3735
        %v3737 = vsel %vm3723, %v3734, %v3736
        %v3738 = vshll.u32 %v3698, 8
        %v3739 = vmul.u32.u64.compose %v3738, %v3737
        %v3740 = vextract.low.u32 %v3739
        %v3741 = vextract.high.u32 %v3739
        %v3742 = vmul.u32.u64.compose %v3738, %v3733
        %v3743 = vextract.low.u32 %v3742
        %v3744 = vextract.high.u32 %v3742
        %v3745 = vmul.u32 %v3738, %v3729
        %v3746 = vadd.s32 %v3741, %v3743
        %vm3747 = vc.u32 %v3741, %v3743
        %v3748 = vadd.s32 %v3744, 1
        %v3749 = vsel %vm3747, %v3748, %v3744
        %v3750 = vadd.s32 %v3745, %v3749
        %v3751 = vadd.s32 %v3750, 536870912
        %v3752 = vshrl.u32 %v3751, 30
        %v3753 = vshll.u32 %v3752, 30
        %v3754 = vsub.s32 %v3750, %v3753
        %vm3755 = vcmp.lt.s32.totalorder %v3754, 0
        %v3756 = vsub.s32 0, %v3754
        %v3757 = vsel %vm3755, %v3756, %v3754
        %v3758 = vclz %v3757
        %v3759 = vsub.s32 %v3758, 2
        %vm3760 = vcmp.gt.s32.totalorder 0, %v3759
        %v3761 = vsel %vm3760, 0, %v3759
        %v3762 = vsub.s32 32, %v3761
        %v3763 = vshll.u32 %v3754, %v3761
        %v3764 = vshrl.u32 %v3746, %v3762
        %v3765 = vor.u32 %v3763, %v3764
        %v3766 = vsub.s32 4294967266, %v3761
        %v3767 = vadd.s32 %v3766, 127
        %v3768 = vshll.u32 %v3767, 23
        %v3769 = vor.u32 4788187, %v3768
        %v3770 = vand.u32 2147483647, %v3769
        %v3772 = vcvt.s32.f32 %v3765
        %v3773 = vmul.f32 %v3772, %v3770
        %v3774 = vxor.u32 %v3773, 2147483648
        %v3775 = vsel %vm3692, %v3774, %v3773
        %v3776 = vsub.s32 4, %v3752
        %v3777 = vsel %vm3692, %v3776, %v3752
        %v3778 = vsel %vm3691, %v2349, %v3775
        %v3779 = vsel %vm3691, 0, %v3777
        %v3780 = vcosq.f32.pop %v3778
        %v3781 = vsinq.f32.pop %v3778
        %vm3782 = vweird.f32 %v2349
        %v3783 = vadd.s32 %v3779, 3
        %v3784 = vand.u32 %v3783, 3
        %vm3785 = vcmp.lt.s32.totalorder %v3784, 2
        %vm3786 = vcmp.eq.s32.totalorder %v3784, 0
        %v3787 = vxor.u32 %v3781, 2147483648
        %v3788 = vsel %vm3786, %v3780, %v3787
        %vm3789 = vcmp.eq.s32.totalorder %v3784, 2
        %v3790 = vxor.u32 %v3780, 2147483648
        %v3791 = vsel %vm3789, %v3790, %v3781
        %v3792 = vsel %vm3785, %v3788, %v3791
        %v3793 = vsel %vm3782, nan, %v3792
        %v3794 = vand.u32 2147483647, %v2351
        %vm3795 = vcmp.le.f32.partialorder %v3794, 0.7853982
        %vm3796 = vcmp.lt.s32.totalorder %v2351, 0
        %v3797 = vand.u32 %v2351, 2139095040
        %v3798 = vshrl.u32 %v3797, 23
        %v3799 = vsub.s32 %v3798, 127
        %v3800 = vand.u32 2147483647, %v2351
        %v3801 = vand.u32 %v3800, 8388607
        %v3802 = vor.u32 %v3801, 8388608
        %v3803 = vsub.s32 0, %v3802
        %v3804 = vadd.s32 %v3799, 1
        %vm3805 = vcmp.gt.s32.totalorder %v3804, 0
        %v3806 = vsel %vm3805, %v3804, 0
        %v3807 = vshrl.u32 %v3806, 5
        %v3808 = vand.u32 %v3806, 31
        %v3809 = vsub.s32 32, %v3808
        %v3810 = vshrl.u32 683565275, %v3809
        %v3811 = vshll.u32 683565275, %v3808
        %v3812 = vshrl.u32 2475754826, %v3809
        %v3813 = vor.u32 %v3811, %v3812
        %v3814 = vshll.u32 2475754826, %v3808
        %v3815 = vshrl.u32 2131351028, %v3809
        %v3816 = vor.u32 %v3814, %v3815
        %v3817 = vshll.u32 2131351028, %v3808
        %v3818 = vshrl.u32 2102212464, %v3809
        %v3819 = vor.u32 %v3817, %v3818
        %v3820 = vshll.u32 2102212464, %v3808
        %v3821 = vshrl.u32 920167782, %v3809
        %v3822 = vor.u32 %v3820, %v3821
        %v3823 = vshll.u32 920167782, %v3808
        %v3824 = vshrl.u32 1326507024, %v3809
        %v3825 = vor.u32 %v3823, %v3824
        %vm3826 = vcmp.lt.s32.totalorder %v3807, 1
        %vm3827 = vcmp.lt.s32.totalorder %v3807, 2
        %vm3828 = vcmp.lt.s32.totalorder %v3807, 3
        %vm3829 = vcmp.lt.s32.totalorder %v3807, 4
        %v3830 = vsel %vm3826, %v3810, %v3813
        %v3831 = vsel %vm3829, %v3819, 2102212464
        %v3832 = vsel %vm3828, %v3816, %v3831
        %v3833 = vsel %vm3827, %v3830, %v3832
        %v3834 = vsel %vm3826, %v3813, %v3816
        %v3835 = vsel %vm3829, %v3822, 920167782
        %v3836 = vsel %vm3828, %v3819, %v3835
        %v3837 = vsel %vm3827, %v3834, %v3836
        %v3838 = vsel %vm3826, %v3816, %v3819
        %v3839 = vsel %vm3829, %v3825, 1326507024
        %v3840 = vsel %vm3828, %v3822, %v3839
        %v3841 = vsel %vm3827, %v3838, %v3840
        %v3842 = vshll.u32 %v3802, 8
        %v3843 = vmul.u32.u64.compose %v3842, %v3841
        %v3844 = vextract.low.u32 %v3843
        %v3845 = vextract.high.u32 %v3843
        %v3846 = vmul.u32.u64.compose %v3842, %v3837
        %v3847 = vextract.low.u32 %v3846
        %v3848 = vextract.high.u32 %v3846
        %v3849 = vmul.u32 %v3842, %v3833
        %v3850 = vadd.s32 %v3845, %v3847
        %vm3851 = vc.u32 %v3845, %v3847
        %v3852 = vadd.s32 %v3848, 1
        %v3853 = vsel %vm3851, %v3852, %v3848
        %v3854 = vadd.s32 %v3849, %v3853
        %v3855 = vadd.s32 %v3854, 536870912
        %v3856 = vshrl.u32 %v3855, 30
        %v3857 = vshll.u32 %v3856, 30
        %v3858 = vsub.s32 %v3854, %v3857
        %vm3859 = vcmp.lt.s32.totalorder %v3858, 0
        %v3860 = vsub.s32 0, %v3858
        %v3861 = vsel %vm3859, %v3860, %v3858
        %v3862 = vclz %v3861
        %v3863 = vsub.s32 %v3862, 2
        %vm3864 = vcmp.gt.s32.totalorder 0, %v3863
        %v3865 = vsel %vm3864, 0, %v3863
        %v3866 = vsub.s32 32, %v3865
        %v3867 = vshll.u32 %v3858, %v3865
        %v3868 = vshrl.u32 %v3850, %v3866
        %v3869 = vor.u32 %v3867, %v3868
        %v3870 = vsub.s32 4294967266, %v3865
        %v3871 = vadd.s32 %v3870, 127
        %v3872 = vshll.u32 %v3871, 23
        %v3873 = vor.u32 4788187, %v3872
        %v3874 = vand.u32 2147483647, %v3873
        %v3876 = vcvt.s32.f32 %v3869
        %v3877 = vmul.f32 %v3876, %v3874
        %v3878 = vxor.u32 %v3877, 2147483648
        %v3879 = vsel %vm3796, %v3878, %v3877
        %v3880 = vsub.s32 4, %v3856
        %v3881 = vsel %vm3796, %v3880, %v3856
        %v3882 = vsel %vm3795, %v2351, %v3879
        %v3883 = vsel %vm3795, 0, %v3881
        %v3884 = vcosq.f32.pop %v3882
        %v3885 = vsinq.f32.pop %v3882
        %vm3886 = vweird.f32 %v2351
        %v3887 = vadd.s32 %v3883, 3
        %v3888 = vand.u32 %v3887, 3
        %vm3889 = vcmp.lt.s32.totalorder %v3888, 2
        %vm3890 = vcmp.eq.s32.totalorder %v3888, 0
        %v3891 = vxor.u32 %v3885, 2147483648
        %v3892 = vsel %vm3890, %v3884, %v3891
        %vm3893 = vcmp.eq.s32.totalorder %v3888, 2
        %v3894 = vxor.u32 %v3884, 2147483648
        %v3895 = vsel %vm3893, %v3894, %v3885
        %v3896 = vsel %vm3889, %v3892, %v3895
        %v3897 = vsel %vm3886, nan, %v3896
        %v3898 = vand.u32 2147483647, %v2438
        %vm3899 = vcmp.le.f32.partialorder %v3898, 0.7853982
        %vm3900 = vcmp.lt.s32.totalorder %v2438, 0
        %v3901 = vand.u32 %v2438, 2139095040
        %v3902 = vshrl.u32 %v3901, 23
        %v3903 = vsub.s32 %v3902, 127
        %v3904 = vand.u32 2147483647, %v2438
        %v3905 = vand.u32 %v3904, 8388607
        %v3906 = vor.u32 %v3905, 8388608
        %v3907 = vsub.s32 0, %v3906
        %v3908 = vadd.s32 %v3903, 1
        %vm3909 = vcmp.gt.s32.totalorder %v3908, 0
        %v3910 = vsel %vm3909, %v3908, 0
        %v3911 = vshrl.u32 %v3910, 5
        %v3912 = vand.u32 %v3910, 31
        %v3913 = vsub.s32 32, %v3912
        %v3914 = vshrl.u32 683565275, %v3913
        %v3915 = vshll.u32 683565275, %v3912
        %v3916 = vshrl.u32 2475754826, %v3913
        %v3917 = vor.u32 %v3915, %v3916
        %v3918 = vshll.u32 2475754826, %v3912
        %v3919 = vshrl.u32 2131351028, %v3913
        %v3920 = vor.u32 %v3918, %v3919
        %v3921 = vshll.u32 2131351028, %v3912
        %v3922 = vshrl.u32 2102212464, %v3913
        %v3923 = vor.u32 %v3921, %v3922
        %v3924 = vshll.u32 2102212464, %v3912
        %v3925 = vshrl.u32 920167782, %v3913
        %v3926 = vor.u32 %v3924, %v3925
        %v3927 = vshll.u32 920167782, %v3912
        %v3928 = vshrl.u32 1326507024, %v3913
        %v3929 = vor.u32 %v3927, %v3928
        %vm3930 = vcmp.lt.s32.totalorder %v3911, 1
        %vm3931 = vcmp.lt.s32.totalorder %v3911, 2
        %vm3932 = vcmp.lt.s32.totalorder %v3911, 3
        %vm3933 = vcmp.lt.s32.totalorder %v3911, 4
        %v3934 = vsel %vm3930, %v3914, %v3917
        %v3935 = vsel %vm3933, %v3923, 2102212464
        %v3936 = vsel %vm3932, %v3920, %v3935
        %v3937 = vsel %vm3931, %v3934, %v3936
        %v3938 = vsel %vm3930, %v3917, %v3920
        %v3939 = vsel %vm3933, %v3926, 920167782
        %v3940 = vsel %vm3932, %v3923, %v3939
        %v3941 = vsel %vm3931, %v3938, %v3940
        %v3942 = vsel %vm3930, %v3920, %v3923
        %v3943 = vsel %vm3933, %v3929, 1326507024
        %v3944 = vsel %vm3932, %v3926, %v3943
        %v3945 = vsel %vm3931, %v3942, %v3944
        %v3946 = vshll.u32 %v3906, 8
        %v3947 = vmul.u32.u64.compose %v3946, %v3945
        %v3948 = vextract.low.u32 %v3947
        %v3949 = vextract.high.u32 %v3947
        %v3950 = vmul.u32.u64.compose %v3946, %v3941
        %v3951 = vextract.low.u32 %v3950
        %v3952 = vextract.high.u32 %v3950
        %v3953 = vmul.u32 %v3946, %v3937
        %v3954 = vadd.s32 %v3949, %v3951
        %vm3955 = vc.u32 %v3949, %v3951
        %v3956 = vadd.s32 %v3952, 1
        %v3957 = vsel %vm3955, %v3956, %v3952
        %v3958 = vadd.s32 %v3953, %v3957
        %v3959 = vadd.s32 %v3958, 536870912
        %v3960 = vshrl.u32 %v3959, 30
        %v3961 = vshll.u32 %v3960, 30
        %v3962 = vsub.s32 %v3958, %v3961
        %vm3963 = vcmp.lt.s32.totalorder %v3962, 0
        %v3964 = vsub.s32 0, %v3962
        %v3965 = vsel %vm3963, %v3964, %v3962
        %v3966 = vclz %v3965
        %v3967 = vsub.s32 %v3966, 2
        %vm3968 = vcmp.gt.s32.totalorder 0, %v3967
        %v3969 = vsel %vm3968, 0, %v3967
        %v3970 = vsub.s32 32, %v3969
        %v3971 = vshll.u32 %v3962, %v3969
        %v3972 = vshrl.u32 %v3954, %v3970
        %v3973 = vor.u32 %v3971, %v3972
        %v3974 = vsub.s32 4294967266, %v3969
        %v3975 = vadd.s32 %v3974, 127
        %v3976 = vshll.u32 %v3975, 23
        %v3977 = vor.u32 4788187, %v3976
        %v3978 = vand.u32 2147483647, %v3977
        %v3980 = vcvt.s32.f32 %v3973
        %v3981 = vmul.f32 %v3980, %v3978
        %v3982 = vxor.u32 %v3981, 2147483648
        %v3983 = vsel %vm3900, %v3982, %v3981
        %v3984 = vsub.s32 4, %v3960
        %v3985 = vsel %vm3900, %v3984, %v3960
        %v3986 = vsel %vm3899, %v2438, %v3983
        %v3987 = vsel %vm3899, 0, %v3985
        %v3988 = vcosq.f32.pop %v3986
        %v3989 = vsinq.f32.pop %v3986
        %vm3990 = vweird.f32 %v2438
        %v3991 = vadd.s32 %v3987, 3
        %v3992 = vand.u32 %v3991, 3
        %vm3993 = vcmp.lt.s32.totalorder %v3992, 2
        %vm3994 = vcmp.eq.s32.totalorder %v3992, 0
        %v3995 = vxor.u32 %v3989, 2147483648
        %v3996 = vsel %vm3994, %v3988, %v3995
        %vm3997 = vcmp.eq.s32.totalorder %v3992, 2
        %v3998 = vxor.u32 %v3988, 2147483648
        %v3999 = vsel %vm3997, %v3998, %v3989
        %v4000 = vsel %vm3993, %v3996, %v3999
        %v4001 = vsel %vm3990, nan, %v4000
        %v4002 = vand.u32 2147483647, %v2440
        %vm4003 = vcmp.le.f32.partialorder %v4002, 0.7853982
        %vm4004 = vcmp.lt.s32.totalorder %v2440, 0
        %v4005 = vand.u32 %v2440, 2139095040
        %v4006 = vshrl.u32 %v4005, 23
        %v4007 = vsub.s32 %v4006, 127
        %v4008 = vand.u32 2147483647, %v2440
        %v4009 = vand.u32 %v4008, 8388607
        %v4010 = vor.u32 %v4009, 8388608
        %v4011 = vsub.s32 0, %v4010
        %v4012 = vadd.s32 %v4007, 1
        %vm4013 = vcmp.gt.s32.totalorder %v4012, 0
        %v4014 = vsel %vm4013, %v4012, 0
        %v4015 = vshrl.u32 %v4014, 5
        %v4016 = vand.u32 %v4014, 31
        %v4017 = vsub.s32 32, %v4016
        %v4018 = vshrl.u32 683565275, %v4017
        %v4019 = vshll.u32 683565275, %v4016
        %v4020 = vshrl.u32 2475754826, %v4017
        %v4021 = vor.u32 %v4019, %v4020
        %v4022 = vshll.u32 2475754826, %v4016
        %v4023 = vshrl.u32 2131351028, %v4017
        %v4024 = vor.u32 %v4022, %v4023
        %v4025 = vshll.u32 2131351028, %v4016
        %v4026 = vshrl.u32 2102212464, %v4017
        %v4027 = vor.u32 %v4025, %v4026
        %v4028 = vshll.u32 2102212464, %v4016
        %v4029 = vshrl.u32 920167782, %v4017
        %v4030 = vor.u32 %v4028, %v4029
        %v4031 = vshll.u32 920167782, %v4016
        %v4032 = vshrl.u32 1326507024, %v4017
        %v4033 = vor.u32 %v4031, %v4032
        %vm4034 = vcmp.lt.s32.totalorder %v4015, 1
        %vm4035 = vcmp.lt.s32.totalorder %v4015, 2
        %vm4036 = vcmp.lt.s32.totalorder %v4015, 3
        %vm4037 = vcmp.lt.s32.totalorder %v4015, 4
        %v4038 = vsel %vm4034, %v4018, %v4021
        %v4039 = vsel %vm4037, %v4027, 2102212464
        %v4040 = vsel %vm4036, %v4024, %v4039
        %v4041 = vsel %vm4035, %v4038, %v4040
        %v4042 = vsel %vm4034, %v4021, %v4024
        %v4043 = vsel %vm4037, %v4030, 920167782
        %v4044 = vsel %vm4036, %v4027, %v4043
        %v4045 = vsel %vm4035, %v4042, %v4044
        %v4046 = vsel %vm4034, %v4024, %v4027
        %v4047 = vsel %vm4037, %v4033, 1326507024
        %v4048 = vsel %vm4036, %v4030, %v4047
        %v4049 = vsel %vm4035, %v4046, %v4048
        %v4050 = vshll.u32 %v4010, 8
        %v4051 = vmul.u32.u64.compose %v4050, %v4049
        %v4052 = vextract.low.u32 %v4051
        %v4053 = vextract.high.u32 %v4051
        %v4054 = vmul.u32.u64.compose %v4050, %v4045
        %v4055 = vextract.low.u32 %v4054
        %v4056 = vextract.high.u32 %v4054
        %v4057 = vmul.u32 %v4050, %v4041
        %v4058 = vadd.s32 %v4053, %v4055
        %vm4059 = vc.u32 %v4053, %v4055
        %v4060 = vadd.s32 %v4056, 1
        %v4061 = vsel %vm4059, %v4060, %v4056
        %v4062 = vadd.s32 %v4057, %v4061
        %v4063 = vadd.s32 %v4062, 536870912
        %v4064 = vshrl.u32 %v4063, 30
        %v4065 = vshll.u32 %v4064, 30
        %v4066 = vsub.s32 %v4062, %v4065
        %vm4067 = vcmp.lt.s32.totalorder %v4066, 0
        %v4068 = vsub.s32 0, %v4066
        %v4069 = vsel %vm4067, %v4068, %v4066
        %v4070 = vclz %v4069
        %v4071 = vsub.s32 %v4070, 2
        %vm4072 = vcmp.gt.s32.totalorder 0, %v4071
        %v4073 = vsel %vm4072, 0, %v4071
        %v4074 = vsub.s32 32, %v4073
        %v4075 = vshll.u32 %v4066, %v4073
        %v4076 = vshrl.u32 %v4058, %v4074
        %v4077 = vor.u32 %v4075, %v4076
        %v4078 = vsub.s32 4294967266, %v4073
        %v4079 = vadd.s32 %v4078, 127
        %v4080 = vshll.u32 %v4079, 23
        %v4081 = vor.u32 4788187, %v4080
        %v4082 = vand.u32 2147483647, %v4081
        %v4084 = vcvt.s32.f32 %v4077
        %v4085 = vmul.f32 %v4084, %v4082
        %v4086 = vxor.u32 %v4085, 2147483648
        %v4087 = vsel %vm4004, %v4086, %v4085
        %v4088 = vsub.s32 4, %v4064
        %v4089 = vsel %vm4004, %v4088, %v4064
        %v4090 = vsel %vm4003, %v2440, %v4087
        %v4091 = vsel %vm4003, 0, %v4089
        %v4092 = vcosq.f32.pop %v4090
        %v4093 = vsinq.f32.pop %v4090
        %vm4094 = vweird.f32 %v2440
        %v4095 = vadd.s32 %v4091, 3
        %v4096 = vand.u32 %v4095, 3
        %vm4097 = vcmp.lt.s32.totalorder %v4096, 2
        %vm4098 = vcmp.eq.s32.totalorder %v4096, 0
        %v4099 = vxor.u32 %v4093, 2147483648
        %v4100 = vsel %vm4098, %v4092, %v4099
        %vm4101 = vcmp.eq.s32.totalorder %v4096, 2
        %v4102 = vxor.u32 %v4092, 2147483648
        %v4103 = vsel %vm4101, %v4102, %v4093
        %v4104 = vsel %vm4097, %v4100, %v4103
        %v4105 = vsel %vm4094, nan, %v4104
        %v4106 = vld [vmem:[%s5] sm:$0xff]
        %v4107 = vld [vmem:[%s5 + $0x8] sm:$0xff]
        %v4108 = vld [vmem:[%s5 + $0x10] sm:$0xff]
        %v4109 = vld [vmem:[%s5 + $0x18] sm:$0xff]
        %v4110 = vld [vmem:[%s6] sm:$0xff]
        %v4111 = vld [vmem:[%s6 + $0x8] sm:$0xff]
        %v4112 = vld [vmem:[%s6 + $0x10] sm:$0xff]
        %v4113 = vld [vmem:[%s6 + $0x18] sm:$0xff]
        %4115 = vset.pattern.permute.xlu0 0
        %4116 = vperm.xlu0 %4115, %v4110
        %v4117 = vpop.permute.xlu0 %4116
        %4120 = vset.pattern.permute.xlu0 0
        %4121 = vperm.xlu0 %4120, %v4111
        %v4122 = vpop.permute.xlu0 %4121
        %4125 = vset.pattern.permute.xlu0 0
        %4126 = vperm.xlu0 %4125, %v4112
        %v4127 = vpop.permute.xlu0 %4126
        %4130 = vset.pattern.permute.xlu0 0
        %4131 = vperm.xlu0 %4130, %v4113
        %v4132 = vpop.permute.xlu0 %4131
        %v4135 = vsel %vm2251, %v4106, 0
        %v4138 = vsel %vm2251, %v4107, 0
        %v4141 = vsel %vm2251, %v4108, 0
        %v4144 = vsel %vm2251, %v4109, 0
        %4146 = vmatprep.subr.mxu0 %v2649
        %4147 = vmatpush1.msra.mxu0 %v2545
        %4148 = vmatprep.subr.mxu0 %v3065
        %4149 = vmatpush1.msra.mxu0 %v2961
        %4150 = vmatprep.subr.mxu0 %v3481
        %4151 = vmatpush1.msra.mxu0 %v3377
        %4152 = vmatprep.subr.mxu0 %v3897
        %4153 = vmatpush1.msra.mxu0 %v3793
        %4154 = vmatprep.subr.mxu0 0.0
        %4155 = vmatpush1.msra.mxu0 0.0
        %4156 = vmatprep.subr.mxu0 0.0
        %4157 = vmatpush1.msra.mxu0 0.0
        %4158 = vmatprep.subr.mxu0 0.0
        %4159 = vmatpush1.msra.mxu0 0.0
        %4160 = vmatprep.subr.mxu0 0.0
        %4161 = vmatpush1.msra.mxu0 0.0
        %4162 = vmatprep.subr.mxu0 0.0
        %4163 = vmatpush1.msra.mxu0 0.0
        %4164 = vmatprep.subr.mxu0 0.0
        %4165 = vmatpush1.msra.mxu0 0.0
        %4166 = vmatprep.subr.mxu0 0.0
        %4167 = vmatpush1.msra.mxu0 0.0
        %4168 = vmatprep.subr.mxu0 0.0
        %4169 = vmatpush1.msra.mxu0 0.0
        %4170 = vmatprep.subr.mxu0 0.0
        %4171 = vmatpush1.msra.mxu0 0.0
        %4172 = vmatprep.subr.mxu0 0.0
        %4173 = vmatpush1.msra.mxu0 0.0
        %4174 = vmatprep.subr.mxu0 0.0
        %4175 = vmatpush1.msra.mxu0 0.0
        %4176 = vmatprep.subr.mxu0 0.0
        %4177 = vmatpush1.msra.mxu0 0.0
        %4178 = vmatprep.subr.mxu0 0.0
        %4179 = vmatpush1.msra.mxu0 0.0
        %4180 = vmatprep.subr.mxu0 0.0
        %4181 = vmatpush1.msra.mxu0 0.0
        %4182 = vmatprep.subr.mxu0 0.0
        %4183 = vmatpush1.msra.mxu0 0.0
        %4184 = vmatprep.subr.mxu0 0.0
        %4185 = vmatpush1.msra.mxu0 0.0
        %4186 = vmatprep.subr.mxu0 0.0
        %4187 = vmatpush1.msra.mxu0 0.0
        %4188 = vmatprep.subr.mxu0 0.0
        %4189 = vmatpush1.msra.mxu0 0.0
        %4190 = vmatprep.subr.mxu0 0.0
        %4191 = vmatpush1.msra.mxu0 0.0
        %4192 = vmatprep.subr.mxu0 0.0
        %4193 = vmatpush1.msra.mxu0 0.0
        %4194 = vmatprep.subr.mxu0 0.0
        %4195 = vmatpush1.msra.mxu0 0.0
        %4196 = vmatprep.subr.mxu0 0.0
        %4197 = vmatpush1.msra.mxu0 0.0
        %4198 = vmatprep.subr.mxu0 0.0
        %4199 = vmatpush1.msra.mxu0 0.0
        %4200 = vmatprep.subr.mxu0 0.0
        %4201 = vmatpush1.msra.mxu0 0.0
        %4202 = vmatprep.subr.mxu0 0.0
        %4203 = vmatpush1.msra.mxu0 0.0
        %4204 = vmatprep.subr.mxu0 0.0
        %4205 = vmatpush1.msra.mxu0 0.0
        %4206 = vmatprep.subr.mxu0 0.0
        %4207 = vmatpush1.msra.mxu0 0.0
        %4208 = vmatprep.subr.mxu0 0.0
        %4209 = vmatpush1.msra.mxu0 0.0
        %4210 = vmatprep.mubr.f32.mxu0 0.0
        %4211 = vmatmul.mubr.f32.gmra.mrb[0].mxu0 %v4135
        %v4212 = vpop.f32.mrb[0].mxu0
        %v4213 = vadd.f32 %v4117, %v4212
        %v4214 = vpop.f32.mrb[0].mxu0
        %v4215 = vadd.f32 %v4117, %v4214
        %4216 = vmatprep.mubr.f32.mxu0 0.0
        %4217 = vmatmul.mubr.f32.gmra.mrb[0].mxu0 %v4138
        %v4218 = vpop.f32.mrb[0].mxu0
        %v4219 = vadd.f32 %v4122, %v4218
        %v4220 = vpop.f32.mrb[0].mxu0
        %v4221 = vadd.f32 %v4122, %v4220
        %4222 = vmatprep.mubr.f32.mxu0 0.0
        %4223 = vmatmul.mubr.f32.gmra.mrb[0].mxu0 %v4141
        %v4224 = vpop.f32.mrb[0].mxu0
        %v4225 = vadd.f32 %v4127, %v4224
        %v4226 = vpop.f32.mrb[0].mxu0
        %v4227 = vadd.f32 %v4127, %v4226
        %4228 = vmatprep.mubr.f32.mxu0 0.0
        %4229 = vmatmul.mubr.f32.gmra.mrb[0].mxu0 %v4144
        %v4230 = vpop.f32.mrb[0].mxu0
        %v4231 = vadd.f32 %v4132, %v4230
        %v4232 = vpop.f32.mrb[0].mxu0
        %v4233 = vadd.f32 %v4132, %v4232
        %4234 = vdwg.mxu0
        %4235 = vmatprep.subr.mxu0 %v2857
        %4236 = vmatpush1.msra.mxu0 %v2753
        %4237 = vmatprep.subr.mxu0 %v3273
        %4238 = vmatpush1.msra.mxu0 %v3169
        %4239 = vmatprep.subr.mxu0 %v3689
        %4240 = vmatpush1.msra.mxu0 %v3585
        %4241 = vmatprep.subr.mxu0 %v4105
        %4242 = vmatpush1.msra.mxu0 %v4001
        %4243 = vmatprep.subr.mxu0 0.0
        %4244 = vmatpush1.msra.mxu0 0.0
        %4245 = vmatprep.subr.mxu0 0.0
        %4246 = vmatpush1.msra.mxu0 0.0
        %4247 = vmatprep.subr.mxu0 0.0
        %4248 = vmatpush1.msra.mxu0 0.0
        %4249 = vmatprep.subr.mxu0 0.0
        %4250 = vmatpush1.msra.mxu0 0.0
        %4251 = vmatprep.subr.mxu0 0.0
        %4252 = vmatpush1.msra.mxu0 0.0
        %4253 = vmatprep.subr.mxu0 0.0
        %4254 = vmatpush1.msra.mxu0 0.0
        %4255 = vmatprep.subr.mxu0 0.0
        %4256 = vmatpush1.msra.mxu0 0.0
        %4257 = vmatprep.subr.mxu0 0.0
        %4258 = vmatpush1.msra.mxu0 0.0
        %4259 = vmatprep.subr.mxu0 0.0
        %4260 = vmatpush1.msra.mxu0 0.0
        %4261 = vmatprep.subr.mxu0 0.0
        %4262 = vmatpush1.msra.mxu0 0.0
        %4263 = vmatprep.subr.mxu0 0.0
        %4264 = vmatpush1.msra.mxu0 0.0
        %4265 = vmatprep.subr.mxu0 0.0
        %4266 = vmatpush1.msra.mxu0 0.0
        %4267 = vmatprep.subr.mxu0 0.0
        %4268 = vmatpush1.msra.mxu0 0.0
        %4269 = vmatprep.subr.mxu0 0.0
        %4270 = vmatpush1.msra.mxu0 0.0
        %4271 = vmatprep.subr.mxu0 0.0
        %4272 = vmatpush1.msra.mxu0 0.0
        %4273 = vmatprep.subr.mxu0 0.0
        %4274 = vmatpush1.msra.mxu0 0.0
        %4275 = vmatprep.subr.mxu0 0.0
        %4276 = vmatpush1.msra.mxu0 0.0
        %4277 = vmatprep.subr.mxu0 0.0
        %4278 = vmatpush1.msra.mxu0 0.0
        %4279 = vmatprep.subr.mxu0 0.0
        %4280 = vmatpush1.msra.mxu0 0.0
        %4281 = vmatprep.subr.mxu0 0.0
        %4282 = vmatpush1.msra.mxu0 0.0
        %4283 = vmatprep.subr.mxu0 0.0
        %4284 = vmatpush1.msra.mxu0 0.0
        %4285 = vmatprep.subr.mxu0 0.0
        %4286 = vmatpush1.msra.mxu0 0.0
        %4287 = vmatprep.subr.mxu0 0.0
        %4288 = vmatpush1.msra.mxu0 0.0
        %4289 = vmatprep.subr.mxu0 0.0
        %4290 = vmatpush1.msra.mxu0 0.0
        %4291 = vmatprep.subr.mxu0 0.0
        %4292 = vmatpush1.msra.mxu0 0.0
        %4293 = vmatprep.subr.mxu0 0.0
        %4294 = vmatpush1.msra.mxu0 0.0
        %4295 = vmatprep.subr.mxu0 0.0
        %4296 = vmatpush1.msra.mxu0 0.0
        %4297 = vmatprep.subr.mxu0 0.0
        %4298 = vmatpush1.msra.mxu0 0.0
        %4299 = vmatprep.mubr.f32.mxu0 0.0
        %4300 = vmatmul.mubr.f32.gmra.mrb[0].mxu0 %v4135
        %v4301 = vpop.f32.mrb[0].mxu0
        %v4302 = vadd.f32 %v4117, %v4301
        %v4303 = vpop.f32.mrb[0].mxu0
        %v4304 = vadd.f32 %v4117, %v4303
        %4305 = vmatprep.mubr.f32.mxu0 0.0
        %4306 = vmatmul.mubr.f32.gmra.mrb[0].mxu0 %v4138
        %v4307 = vpop.f32.mrb[0].mxu0
        %v4308 = vadd.f32 %v4122, %v4307
        %v4309 = vpop.f32.mrb[0].mxu0
        %v4310 = vadd.f32 %v4122, %v4309
        %4311 = vmatprep.mubr.f32.mxu0 0.0
        %4312 = vmatmul.mubr.f32.gmra.mrb[0].mxu0 %v4141
        %v4313 = vpop.f32.mrb[0].mxu0
        %v4314 = vadd.f32 %v4127, %v4313
        %v4315 = vpop.f32.mrb[0].mxu0
        %v4316 = vadd.f32 %v4127, %v4315
        %4317 = vmatprep.mubr.f32.mxu0 0.0
        %4318 = vmatmul.mubr.f32.gmra.mrb[0].mxu0 %v4144
        %v4319 = vpop.f32.mrb[0].mxu0
        %v4320 = vadd.f32 %v4132, %v4319
        %v4321 = vpop.f32.mrb[0].mxu0
        %v4322 = vadd.f32 %v4132, %v4321
        %4323 = vdwg.mxu0
        %v4324 = vand.u32 2147483647, %v4213
        %vm4325 = vcmp.le.f32.partialorder %v4324, 0.7853982
        %vm4326 = vcmp.lt.s32.totalorder %v4213, 0
        %v4327 = vand.u32 %v4213, 2139095040
        %v4328 = vshrl.u32 %v4327, 23
        %v4329 = vsub.s32 %v4328, 127
        %v4330 = vand.u32 2147483647, %v4213
        %v4331 = vand.u32 %v4330, 8388607
        %v4332 = vor.u32 %v4331, 8388608
        %v4333 = vsub.s32 0, %v4332
        %v4334 = vadd.s32 %v4329, 1
        %vm4335 = vcmp.gt.s32.totalorder %v4334, 0
        %v4336 = vsel %vm4335, %v4334, 0
        %v4337 = vshrl.u32 %v4336, 5
        %v4338 = vand.u32 %v4336, 31
        %v4339 = vsub.s32 32, %v4338
        %v4340 = vshrl.u32 683565275, %v4339
        %v4341 = vshll.u32 683565275, %v4338
        %v4342 = vshrl.u32 2475754826, %v4339
        %v4343 = vor.u32 %v4341, %v4342
        %v4344 = vshll.u32 2475754826, %v4338
        %v4345 = vshrl.u32 2131351028, %v4339
        %v4346 = vor.u32 %v4344, %v4345
        %v4347 = vshll.u32 2131351028, %v4338
        %v4348 = vshrl.u32 2102212464, %v4339
        %v4349 = vor.u32 %v4347, %v4348
        %v4350 = vshll.u32 2102212464, %v4338
        %v4351 = vshrl.u32 920167782, %v4339
        %v4352 = vor.u32 %v4350, %v4351
        %v4353 = vshll.u32 920167782, %v4338
        %v4354 = vshrl.u32 1326507024, %v4339
        %v4355 = vor.u32 %v4353, %v4354
        %vm4356 = vcmp.lt.s32.totalorder %v4337, 1
        %vm4357 = vcmp.lt.s32.totalorder %v4337, 2
        %vm4358 = vcmp.lt.s32.totalorder %v4337, 3
        %vm4359 = vcmp.lt.s32.totalorder %v4337, 4
        %v4360 = vsel %vm4356, %v4340, %v4343
        %v4361 = vsel %vm4359, %v4349, 2102212464
        %v4362 = vsel %vm4358, %v4346, %v4361
        %v4363 = vsel %vm4357, %v4360, %v4362
        %v4364 = vsel %vm4356, %v4343, %v4346
        %v4365 = vsel %vm4359, %v4352, 920167782
        %v4366 = vsel %vm4358, %v4349, %v4365
        %v4367 = vsel %vm4357, %v4364, %v4366
        %v4368 = vsel %vm4356, %v4346, %v4349
        %v4369 = vsel %vm4359, %v4355, 1326507024
        %v4370 = vsel %vm4358, %v4352, %v4369
        %v4371 = vsel %vm4357, %v4368, %v4370
        %v4372 = vshll.u32 %v4332, 8
        %v4373 = vmul.u32.u64.compose %v4372, %v4371
        %v4374 = vextract.low.u32 %v4373
        %v4375 = vextract.high.u32 %v4373
        %v4376 = vmul.u32.u64.compose %v4372, %v4367
        %v4377 = vextract.low.u32 %v4376
        %v4378 = vextract.high.u32 %v4376
        %v4379 = vmul.u32 %v4372, %v4363
        %v4380 = vadd.s32 %v4375, %v4377
        %vm4381 = vc.u32 %v4375, %v4377
        %v4382 = vadd.s32 %v4378, 1
        %v4383 = vsel %vm4381, %v4382, %v4378
        %v4384 = vadd.s32 %v4379, %v4383
        %v4385 = vadd.s32 %v4384, 536870912
        %v4386 = vshrl.u32 %v4385, 30
        %v4387 = vshll.u32 %v4386, 30
        %v4388 = vsub.s32 %v4384, %v4387
        %vm4389 = vcmp.lt.s32.totalorder %v4388, 0
        %v4390 = vsub.s32 0, %v4388
        %v4391 = vsel %vm4389, %v4390, %v4388
        %v4392 = vclz %v4391
        %v4393 = vsub.s32 %v4392, 2
        %vm4394 = vcmp.gt.s32.totalorder 0, %v4393
        %v4395 = vsel %vm4394, 0, %v4393
        %v4396 = vsub.s32 32, %v4395
        %v4397 = vshll.u32 %v4388, %v4395
        %v4398 = vshrl.u32 %v4380, %v4396
        %v4399 = vor.u32 %v4397, %v4398
        %v4400 = vsub.s32 4294967266, %v4395
        %v4401 = vadd.s32 %v4400, 127
        %v4402 = vshll.u32 %v4401, 23
        %v4403 = vor.u32 4788187, %v4402
        %v4404 = vand.u32 2147483647, %v4403
        %v4406 = vcvt.s32.f32 %v4399
        %v4407 = vmul.f32 %v4406, %v4404
        %v4408 = vxor.u32 %v4407, 2147483648
        %v4409 = vsel %vm4326, %v4408, %v4407
        %v4410 = vsub.s32 4, %v4386
        %v4411 = vsel %vm4326, %v4410, %v4386
        %v4412 = vsel %vm4325, %v4213, %v4409
        %v4413 = vsel %vm4325, 0, %v4411
        %v4414 = vcosq.f32.pop %v4412
        %v4415 = vsinq.f32.pop %v4412
        %vm4416 = vweird.f32 %v4213
        %v4417 = vadd.s32 %v4413, 3
        %v4418 = vand.u32 %v4417, 3
        %vm4419 = vcmp.lt.s32.totalorder %v4418, 2
        %vm4420 = vcmp.eq.s32.totalorder %v4418, 0
        %v4421 = vxor.u32 %v4415, 2147483648
        %v4422 = vsel %vm4420, %v4414, %v4421
        %vm4423 = vcmp.eq.s32.totalorder %v4418, 2
        %v4424 = vxor.u32 %v4414, 2147483648
        %v4425 = vsel %vm4423, %v4424, %v4415
        %v4426 = vsel %vm4419, %v4422, %v4425
        %v4427 = vsel %vm4416, nan, %v4426
        %v4428 = vand.u32 2147483647, %v4215
        %vm4429 = vcmp.le.f32.partialorder %v4428, 0.7853982
        %vm4430 = vcmp.lt.s32.totalorder %v4215, 0
        %v4431 = vand.u32 %v4215, 2139095040
        %v4432 = vshrl.u32 %v4431, 23
        %v4433 = vsub.s32 %v4432, 127
        %v4434 = vand.u32 2147483647, %v4215
        %v4435 = vand.u32 %v4434, 8388607
        %v4436 = vor.u32 %v4435, 8388608
        %v4437 = vsub.s32 0, %v4436
        %v4438 = vadd.s32 %v4433, 1
        %vm4439 = vcmp.gt.s32.totalorder %v4438, 0
        %v4440 = vsel %vm4439, %v4438, 0
        %v4441 = vshrl.u32 %v4440, 5
        %v4442 = vand.u32 %v4440, 31
        %v4443 = vsub.s32 32, %v4442
        %v4444 = vshrl.u32 683565275, %v4443
        %v4445 = vshll.u32 683565275, %v4442
        %v4446 = vshrl.u32 2475754826, %v4443
        %v4447 = vor.u32 %v4445, %v4446
        %v4448 = vshll.u32 2475754826, %v4442
        %v4449 = vshrl.u32 2131351028, %v4443
        %v4450 = vor.u32 %v4448, %v4449
        %v4451 = vshll.u32 2131351028, %v4442
        %v4452 = vshrl.u32 2102212464, %v4443
        %v4453 = vor.u32 %v4451, %v4452
        %v4454 = vshll.u32 2102212464, %v4442
        %v4455 = vshrl.u32 920167782, %v4443
        %v4456 = vor.u32 %v4454, %v4455
        %v4457 = vshll.u32 920167782, %v4442
        %v4458 = vshrl.u32 1326507024, %v4443
        %v4459 = vor.u32 %v4457, %v4458
        %vm4460 = vcmp.lt.s32.totalorder %v4441, 1
        %vm4461 = vcmp.lt.s32.totalorder %v4441, 2
        %vm4462 = vcmp.lt.s32.totalorder %v4441, 3
        %vm4463 = vcmp.lt.s32.totalorder %v4441, 4
        %v4464 = vsel %vm4460, %v4444, %v4447
        %v4465 = vsel %vm4463, %v4453, 2102212464
        %v4466 = vsel %vm4462, %v4450, %v4465
        %v4467 = vsel %vm4461, %v4464, %v4466
        %v4468 = vsel %vm4460, %v4447, %v4450
        %v4469 = vsel %vm4463, %v4456, 920167782
        %v4470 = vsel %vm4462, %v4453, %v4469
        %v4471 = vsel %vm4461, %v4468, %v4470
        %v4472 = vsel %vm4460, %v4450, %v4453
        %v4473 = vsel %vm4463, %v4459, 1326507024
        %v4474 = vsel %vm4462, %v4456, %v4473
        %v4475 = vsel %vm4461, %v4472, %v4474
        %v4476 = vshll.u32 %v4436, 8
        %v4477 = vmul.u32.u64.compose %v4476, %v4475
        %v4478 = vextract.low.u32 %v4477
        %v4479 = vextract.high.u32 %v4477
        %v4480 = vmul.u32.u64.compose %v4476, %v4471
        %v4481 = vextract.low.u32 %v4480
        %v4482 = vextract.high.u32 %v4480
        %v4483 = vmul.u32 %v4476, %v4467
        %v4484 = vadd.s32 %v4479, %v4481
        %vm4485 = vc.u32 %v4479, %v4481
        %v4486 = vadd.s32 %v4482, 1
        %v4487 = vsel %vm4485, %v4486, %v4482
        %v4488 = vadd.s32 %v4483, %v4487
        %v4489 = vadd.s32 %v4488, 536870912
        %v4490 = vshrl.u32 %v4489, 30
        %v4491 = vshll.u32 %v4490, 30
        %v4492 = vsub.s32 %v4488, %v4491
        %vm4493 = vcmp.lt.s32.totalorder %v4492, 0
        %v4494 = vsub.s32 0, %v4492
        %v4495 = vsel %vm4493, %v4494, %v4492
        %v4496 = vclz %v4495
        %v4497 = vsub.s32 %v4496, 2
        %vm4498 = vcmp.gt.s32.totalorder 0, %v4497
        %v4499 = vsel %vm4498, 0, %v4497
        %v4500 = vsub.s32 32, %v4499
        %v4501 = vshll.u32 %v4492, %v4499
        %v4502 = vshrl.u32 %v4484, %v4500
        %v4503 = vor.u32 %v4501, %v4502
        %v4504 = vsub.s32 4294967266, %v4499
        %v4505 = vadd.s32 %v4504, 127
        %v4506 = vshll.u32 %v4505, 23
        %v4507 = vor.u32 4788187, %v4506
        %v4508 = vand.u32 2147483647, %v4507
        %v4510 = vcvt.s32.f32 %v4503
        %v4511 = vmul.f32 %v4510, %v4508
        %v4512 = vxor.u32 %v4511, 2147483648
        %v4513 = vsel %vm4430, %v4512, %v4511
        %v4514 = vsub.s32 4, %v4490
        %v4515 = vsel %vm4430, %v4514, %v4490
        %v4516 = vsel %vm4429, %v4215, %v4513
        %v4517 = vsel %vm4429, 0, %v4515
        %v4518 = vcosq.f32.pop %v4516
        %v4519 = vsinq.f32.pop %v4516
        %vm4520 = vweird.f32 %v4215
        %v4521 = vadd.s32 %v4517, 3
        %v4522 = vand.u32 %v4521, 3
        %vm4523 = vcmp.lt.s32.totalorder %v4522, 2
        %vm4524 = vcmp.eq.s32.totalorder %v4522, 0
        %v4525 = vxor.u32 %v4519, 2147483648
        %v4526 = vsel %vm4524, %v4518, %v4525
        %vm4527 = vcmp.eq.s32.totalorder %v4522, 2
        %v4528 = vxor.u32 %v4518, 2147483648
        %v4529 = vsel %vm4527, %v4528, %v4519
        %v4530 = vsel %vm4523, %v4526, %v4529
        %v4531 = vsel %vm4520, nan, %v4530
        %v4532 = vand.u32 2147483647, %v4302
        %vm4533 = vcmp.le.f32.partialorder %v4532, 0.7853982
        %vm4534 = vcmp.lt.s32.totalorder %v4302, 0
        %v4535 = vand.u32 %v4302, 2139095040
        %v4536 = vshrl.u32 %v4535, 23
        %v4537 = vsub.s32 %v4536, 127
        %v4538 = vand.u32 2147483647, %v4302
        %v4539 = vand.u32 %v4538, 8388607
        %v4540 = vor.u32 %v4539, 8388608
        %v4541 = vsub.s32 0, %v4540
        %v4542 = vadd.s32 %v4537, 1
        %vm4543 = vcmp.gt.s32.totalorder %v4542, 0
        %v4544 = vsel %vm4543, %v4542, 0
        %v4545 = vshrl.u32 %v4544, 5
        %v4546 = vand.u32 %v4544, 31
        %v4547 = vsub.s32 32, %v4546
        %v4548 = vshrl.u32 683565275, %v4547
        %v4549 = vshll.u32 683565275, %v4546
        %v4550 = vshrl.u32 2475754826, %v4547
        %v4551 = vor.u32 %v4549, %v4550
        %v4552 = vshll.u32 2475754826, %v4546
        %v4553 = vshrl.u32 2131351028, %v4547
        %v4554 = vor.u32 %v4552, %v4553
        %v4555 = vshll.u32 2131351028, %v4546
        %v4556 = vshrl.u32 2102212464, %v4547
        %v4557 = vor.u32 %v4555, %v4556
        %v4558 = vshll.u32 2102212464, %v4546
        %v4559 = vshrl.u32 920167782, %v4547
        %v4560 = vor.u32 %v4558, %v4559
        %v4561 = vshll.u32 920167782, %v4546
        %v4562 = vshrl.u32 1326507024, %v4547
        %v4563 = vor.u32 %v4561, %v4562
        %vm4564 = vcmp.lt.s32.totalorder %v4545, 1
        %vm4565 = vcmp.lt.s32.totalorder %v4545, 2
        %vm4566 = vcmp.lt.s32.totalorder %v4545, 3
        %vm4567 = vcmp.lt.s32.totalorder %v4545, 4
        %v4568 = vsel %vm4564, %v4548, %v4551
        %v4569 = vsel %vm4567, %v4557, 2102212464
        %v4570 = vsel %vm4566, %v4554, %v4569
        %v4571 = vsel %vm4565, %v4568, %v4570
        %v4572 = vsel %vm4564, %v4551, %v4554
        %v4573 = vsel %vm4567, %v4560, 920167782
        %v4574 = vsel %vm4566, %v4557, %v4573
        %v4575 = vsel %vm4565, %v4572, %v4574
        %v4576 = vsel %vm4564, %v4554, %v4557
        %v4577 = vsel %vm4567, %v4563, 1326507024
        %v4578 = vsel %vm4566, %v4560, %v4577
        %v4579 = vsel %vm4565, %v4576, %v4578
        %v4580 = vshll.u32 %v4540, 8
        %v4581 = vmul.u32.u64.compose %v4580, %v4579
        %v4582 = vextract.low.u32 %v4581
        %v4583 = vextract.high.u32 %v4581
        %v4584 = vmul.u32.u64.compose %v4580, %v4575
        %v4585 = vextract.low.u32 %v4584
        %v4586 = vextract.high.u32 %v4584
        %v4587 = vmul.u32 %v4580, %v4571
        %v4588 = vadd.s32 %v4583, %v4585
        %vm4589 = vc.u32 %v4583, %v4585
        %v4590 = vadd.s32 %v4586, 1
        %v4591 = vsel %vm4589, %v4590, %v4586
        %v4592 = vadd.s32 %v4587, %v4591
        %v4593 = vadd.s32 %v4592, 536870912
        %v4594 = vshrl.u32 %v4593, 30
        %v4595 = vshll.u32 %v4594, 30
        %v4596 = vsub.s32 %v4592, %v4595
        %vm4597 = vcmp.lt.s32.totalorder %v4596, 0
        %v4598 = vsub.s32 0, %v4596
        %v4599 = vsel %vm4597, %v4598, %v4596
        %v4600 = vclz %v4599
        %v4601 = vsub.s32 %v4600, 2
        %vm4602 = vcmp.gt.s32.totalorder 0, %v4601
        %v4603 = vsel %vm4602, 0, %v4601
        %v4604 = vsub.s32 32, %v4603
        %v4605 = vshll.u32 %v4596, %v4603
        %v4606 = vshrl.u32 %v4588, %v4604
        %v4607 = vor.u32 %v4605, %v4606
        %v4608 = vsub.s32 4294967266, %v4603
        %v4609 = vadd.s32 %v4608, 127
        %v4610 = vshll.u32 %v4609, 23
        %v4611 = vor.u32 4788187, %v4610
        %v4612 = vand.u32 2147483647, %v4611
        %v4614 = vcvt.s32.f32 %v4607
        %v4615 = vmul.f32 %v4614, %v4612
        %v4616 = vxor.u32 %v4615, 2147483648
        %v4617 = vsel %vm4534, %v4616, %v4615
        %v4618 = vsub.s32 4, %v4594
        %v4619 = vsel %vm4534, %v4618, %v4594
        %v4620 = vsel %vm4533, %v4302, %v4617
        %v4621 = vsel %vm4533, 0, %v4619
        %v4622 = vcosq.f32.pop %v4620
        %v4623 = vsinq.f32.pop %v4620
        %vm4624 = vweird.f32 %v4302
        %v4625 = vadd.s32 %v4621, 3
        %v4626 = vand.u32 %v4625, 3
        %vm4627 = vcmp.lt.s32.totalorder %v4626, 2
        %vm4628 = vcmp.eq.s32.totalorder %v4626, 0
        %v4629 = vxor.u32 %v4623, 2147483648
        %v4630 = vsel %vm4628, %v4622, %v4629
        %vm4631 = vcmp.eq.s32.totalorder %v4626, 2
        %v4632 = vxor.u32 %v4622, 2147483648
        %v4633 = vsel %vm4631, %v4632, %v4623
        %v4634 = vsel %vm4627, %v4630, %v4633
        %v4635 = vsel %vm4624, nan, %v4634
        %v4636 = vand.u32 2147483647, %v4304
        %vm4637 = vcmp.le.f32.partialorder %v4636, 0.7853982
        %vm4638 = vcmp.lt.s32.totalorder %v4304, 0
        %v4639 = vand.u32 %v4304, 2139095040
        %v4640 = vshrl.u32 %v4639, 23
        %v4641 = vsub.s32 %v4640, 127
        %v4642 = vand.u32 2147483647, %v4304
        %v4643 = vand.u32 %v4642, 8388607
        %v4644 = vor.u32 %v4643, 8388608
        %v4645 = vsub.s32 0, %v4644
        %v4646 = vadd.s32 %v4641, 1
        %vm4647 = vcmp.gt.s32.totalorder %v4646, 0
        %v4648 = vsel %vm4647, %v4646, 0
        %v4649 = vshrl.u32 %v4648, 5
        %v4650 = vand.u32 %v4648, 31
        %v4651 = vsub.s32 32, %v4650
        %v4652 = vshrl.u32 683565275, %v4651
        %v4653 = vshll.u32 683565275, %v4650
        %v4654 = vshrl.u32 2475754826, %v4651
        %v4655 = vor.u32 %v4653, %v4654
        %v4656 = vshll.u32 2475754826, %v4650
        %v4657 = vshrl.u32 2131351028, %v4651
        %v4658 = vor.u32 %v4656, %v4657
        %v4659 = vshll.u32 2131351028, %v4650
        %v4660 = vshrl.u32 2102212464, %v4651
        %v4661 = vor.u32 %v4659, %v4660
        %v4662 = vshll.u32 2102212464, %v4650
        %v4663 = vshrl.u32 920167782, %v4651
        %v4664 = vor.u32 %v4662, %v4663
        %v4665 = vshll.u32 920167782, %v4650
        %v4666 = vshrl.u32 1326507024, %v4651
        %v4667 = vor.u32 %v4665, %v4666
        %vm4668 = vcmp.lt.s32.totalorder %v4649, 1
        %vm4669 = vcmp.lt.s32.totalorder %v4649, 2
        %vm4670 = vcmp.lt.s32.totalorder %v4649, 3
        %vm4671 = vcmp.lt.s32.totalorder %v4649, 4
        %v4672 = vsel %vm4668, %v4652, %v4655
        %v4673 = vsel %vm4671, %v4661, 2102212464
        %v4674 = vsel %vm4670, %v4658, %v4673
        %v4675 = vsel %vm4669, %v4672, %v4674
        %v4676 = vsel %vm4668, %v4655, %v4658
        %v4677 = vsel %vm4671, %v4664, 920167782
        %v4678 = vsel %vm4670, %v4661, %v4677
        %v4679 = vsel %vm4669, %v4676, %v4678
        %v4680 = vsel %vm4668, %v4658, %v4661
        %v4681 = vsel %vm4671, %v4667, 1326507024
        %v4682 = vsel %vm4670, %v4664, %v4681
        %v4683 = vsel %vm4669, %v4680, %v4682
        %v4684 = vshll.u32 %v4644, 8
        %v4685 = vmul.u32.u64.compose %v4684, %v4683
        %v4686 = vextract.low.u32 %v4685
        %v4687 = vextract.high.u32 %v4685
        %v4688 = vmul.u32.u64.compose %v4684, %v4679
        %v4689 = vextract.low.u32 %v4688
        %v4690 = vextract.high.u32 %v4688
        %v4691 = vmul.u32 %v4684, %v4675
        %v4692 = vadd.s32 %v4687, %v4689
        %vm4693 = vc.u32 %v4687, %v4689
        %v4694 = vadd.s32 %v4690, 1
        %v4695 = vsel %vm4693, %v4694, %v4690
        %v4696 = vadd.s32 %v4691, %v4695
        %v4697 = vadd.s32 %v4696, 536870912
        %v4698 = vshrl.u32 %v4697, 30
        %v4699 = vshll.u32 %v4698, 30
        %v4700 = vsub.s32 %v4696, %v4699
        %vm4701 = vcmp.lt.s32.totalorder %v4700, 0
        %v4702 = vsub.s32 0, %v4700
        %v4703 = vsel %vm4701, %v4702, %v4700
        %v4704 = vclz %v4703
        %v4705 = vsub.s32 %v4704, 2
        %vm4706 = vcmp.gt.s32.totalorder 0, %v4705
        %v4707 = vsel %vm4706, 0, %v4705
        %v4708 = vsub.s32 32, %v4707
        %v4709 = vshll.u32 %v4700, %v4707
        %v4710 = vshrl.u32 %v4692, %v4708
        %v4711 = vor.u32 %v4709, %v4710
        %v4712 = vsub.s32 4294967266, %v4707
        %v4713 = vadd.s32 %v4712, 127
        %v4714 = vshll.u32 %v4713, 23
        %v4715 = vor.u32 4788187, %v4714
        %v4716 = vand.u32 2147483647, %v4715
        %v4718 = vcvt.s32.f32 %v4711
        %v4719 = vmul.f32 %v4718, %v4716
        %v4720 = vxor.u32 %v4719, 2147483648
        %v4721 = vsel %vm4638, %v4720, %v4719
        %v4722 = vsub.s32 4, %v4698
        %v4723 = vsel %vm4638, %v4722, %v4698
        %v4724 = vsel %vm4637, %v4304, %v4721
        %v4725 = vsel %vm4637, 0, %v4723
        %v4726 = vcosq.f32.pop %v4724
        %v4727 = vsinq.f32.pop %v4724
        %vm4728 = vweird.f32 %v4304
        %v4729 = vadd.s32 %v4725, 3
        %v4730 = vand.u32 %v4729, 3
        %vm4731 = vcmp.lt.s32.totalorder %v4730, 2
        %vm4732 = vcmp.eq.s32.totalorder %v4730, 0
        %v4733 = vxor.u32 %v4727, 2147483648
        %v4734 = vsel %vm4732, %v4726, %v4733
        %vm4735 = vcmp.eq.s32.totalorder %v4730, 2
        %v4736 = vxor.u32 %v4726, 2147483648
        %v4737 = vsel %vm4735, %v4736, %v4727
        %v4738 = vsel %vm4731, %v4734, %v4737
        %v4739 = vsel %vm4728, nan, %v4738
        %v4740 = vand.u32 2147483647, %v4219
        %vm4741 = vcmp.le.f32.partialorder %v4740, 0.7853982
        %vm4742 = vcmp.lt.s32.totalorder %v4219, 0
        %v4743 = vand.u32 %v4219, 2139095040
        %v4744 = vshrl.u32 %v4743, 23
        %v4745 = vsub.s32 %v4744, 127
        %v4746 = vand.u32 2147483647, %v4219
        %v4747 = vand.u32 %v4746, 8388607
        %v4748 = vor.u32 %v4747, 8388608
        %v4749 = vsub.s32 0, %v4748
        %v4750 = vadd.s32 %v4745, 1
        %vm4751 = vcmp.gt.s32.totalorder %v4750, 0
        %v4752 = vsel %vm4751, %v4750, 0
        %v4753 = vshrl.u32 %v4752, 5
        %v4754 = vand.u32 %v4752, 31
        %v4755 = vsub.s32 32, %v4754
        %v4756 = vshrl.u32 683565275, %v4755
        %v4757 = vshll.u32 683565275, %v4754
        %v4758 = vshrl.u32 2475754826, %v4755
        %v4759 = vor.u32 %v4757, %v4758
        %v4760 = vshll.u32 2475754826, %v4754
        %v4761 = vshrl.u32 2131351028, %v4755
        %v4762 = vor.u32 %v4760, %v4761
        %v4763 = vshll.u32 2131351028, %v4754
        %v4764 = vshrl.u32 2102212464, %v4755
        %v4765 = vor.u32 %v4763, %v4764
        %v4766 = vshll.u32 2102212464, %v4754
        %v4767 = vshrl.u32 920167782, %v4755
        %v4768 = vor.u32 %v4766, %v4767
        %v4769 = vshll.u32 920167782, %v4754
        %v4770 = vshrl.u32 1326507024, %v4755
        %v4771 = vor.u32 %v4769, %v4770
        %vm4772 = vcmp.lt.s32.totalorder %v4753, 1
        %vm4773 = vcmp.lt.s32.totalorder %v4753, 2
        %vm4774 = vcmp.lt.s32.totalorder %v4753, 3
        %vm4775 = vcmp.lt.s32.totalorder %v4753, 4
        %v4776 = vsel %vm4772, %v4756, %v4759
        %v4777 = vsel %vm4775, %v4765, 2102212464
        %v4778 = vsel %vm4774, %v4762, %v4777
        %v4779 = vsel %vm4773, %v4776, %v4778
        %v4780 = vsel %vm4772, %v4759, %v4762
        %v4781 = vsel %vm4775, %v4768, 920167782
        %v4782 = vsel %vm4774, %v4765, %v4781
        %v4783 = vsel %vm4773, %v4780, %v4782
        %v4784 = vsel %vm4772, %v4762, %v4765
        %v4785 = vsel %vm4775, %v4771, 1326507024
        %v4786 = vsel %vm4774, %v4768, %v4785
        %v4787 = vsel %vm4773, %v4784, %v4786
        %v4788 = vshll.u32 %v4748, 8
        %v4789 = vmul.u32.u64.compose %v4788, %v4787
        %v4790 = vextract.low.u32 %v4789
        %v4791 = vextract.high.u32 %v4789
        %v4792 = vmul.u32.u64.compose %v4788, %v4783
        %v4793 = vextract.low.u32 %v4792
        %v4794 = vextract.high.u32 %v4792
        %v4795 = vmul.u32 %v4788, %v4779
        %v4796 = vadd.s32 %v4791, %v4793
        %vm4797 = vc.u32 %v4791, %v4793
        %v4798 = vadd.s32 %v4794, 1
        %v4799 = vsel %vm4797, %v4798, %v4794
        %v4800 = vadd.s32 %v4795, %v4799
        %v4801 = vadd.s32 %v4800, 536870912
        %v4802 = vshrl.u32 %v4801, 30
        %v4803 = vshll.u32 %v4802, 30
        %v4804 = vsub.s32 %v4800, %v4803
        %vm4805 = vcmp.lt.s32.totalorder %v4804, 0
        %v4806 = vsub.s32 0, %v4804
        %v4807 = vsel %vm4805, %v4806, %v4804
        %v4808 = vclz %v4807
        %v4809 = vsub.s32 %v4808, 2
        %vm4810 = vcmp.gt.s32.totalorder 0, %v4809
        %v4811 = vsel %vm4810, 0, %v4809
        %v4812 = vsub.s32 32, %v4811
        %v4813 = vshll.u32 %v4804, %v4811
        %v4814 = vshrl.u32 %v4796, %v4812
        %v4815 = vor.u32 %v4813, %v4814
        %v4816 = vsub.s32 4294967266, %v4811
        %v4817 = vadd.s32 %v4816, 127
        %v4818 = vshll.u32 %v4817, 23
        %v4819 = vor.u32 4788187, %v4818
        %v4820 = vand.u32 2147483647, %v4819
        %v4822 = vcvt.s32.f32 %v4815
        %v4823 = vmul.f32 %v4822, %v4820
        %v4824 = vxor.u32 %v4823, 2147483648
        %v4825 = vsel %vm4742, %v4824, %v4823
        %v4826 = vsub.s32 4, %v4802
        %v4827 = vsel %vm4742, %v4826, %v4802
        %v4828 = vsel %vm4741, %v4219, %v4825
        %v4829 = vsel %vm4741, 0, %v4827
        %v4830 = vcosq.f32.pop %v4828
        %v4831 = vsinq.f32.pop %v4828
        %vm4832 = vweird.f32 %v4219
        %v4833 = vadd.s32 %v4829, 3
        %v4834 = vand.u32 %v4833, 3
        %vm4835 = vcmp.lt.s32.totalorder %v4834, 2
        %vm4836 = vcmp.eq.s32.totalorder %v4834, 0
        %v4837 = vxor.u32 %v4831, 2147483648
        %v4838 = vsel %vm4836, %v4830, %v4837
        %vm4839 = vcmp.eq.s32.totalorder %v4834, 2
        %v4840 = vxor.u32 %v4830, 2147483648
        %v4841 = vsel %vm4839, %v4840, %v4831
        %v4842 = vsel %vm4835, %v4838, %v4841
        %v4843 = vsel %vm4832, nan, %v4842
        %v4844 = vand.u32 2147483647, %v4221
        %vm4845 = vcmp.le.f32.partialorder %v4844, 0.7853982
        %vm4846 = vcmp.lt.s32.totalorder %v4221, 0
        %v4847 = vand.u32 %v4221, 2139095040
        %v4848 = vshrl.u32 %v4847, 23
        %v4849 = vsub.s32 %v4848, 127
        %v4850 = vand.u32 2147483647, %v4221
        %v4851 = vand.u32 %v4850, 8388607
        %v4852 = vor.u32 %v4851, 8388608
        %v4853 = vsub.s32 0, %v4852
        %v4854 = vadd.s32 %v4849, 1
        %vm4855 = vcmp.gt.s32.totalorder %v4854, 0
        %v4856 = vsel %vm4855, %v4854, 0
        %v4857 = vshrl.u32 %v4856, 5
        %v4858 = vand.u32 %v4856, 31
        %v4859 = vsub.s32 32, %v4858
        %v4860 = vshrl.u32 683565275, %v4859
        %v4861 = vshll.u32 683565275, %v4858
        %v4862 = vshrl.u32 2475754826, %v4859
        %v4863 = vor.u32 %v4861, %v4862
        %v4864 = vshll.u32 2475754826, %v4858
        %v4865 = vshrl.u32 2131351028, %v4859
        %v4866 = vor.u32 %v4864, %v4865
        %v4867 = vshll.u32 2131351028, %v4858
        %v4868 = vshrl.u32 2102212464, %v4859
        %v4869 = vor.u32 %v4867, %v4868
        %v4870 = vshll.u32 2102212464, %v4858
        %v4871 = vshrl.u32 920167782, %v4859
        %v4872 = vor.u32 %v4870, %v4871
        %v4873 = vshll.u32 920167782, %v4858
        %v4874 = vshrl.u32 1326507024, %v4859
        %v4875 = vor.u32 %v4873, %v4874
        %vm4876 = vcmp.lt.s32.totalorder %v4857, 1
        %vm4877 = vcmp.lt.s32.totalorder %v4857, 2
        %vm4878 = vcmp.lt.s32.totalorder %v4857, 3
        %vm4879 = vcmp.lt.s32.totalorder %v4857, 4
        %v4880 = vsel %vm4876, %v4860, %v4863
        %v4881 = vsel %vm4879, %v4869, 2102212464
        %v4882 = vsel %vm4878, %v4866, %v4881
        %v4883 = vsel %vm4877, %v4880, %v4882
        %v4884 = vsel %vm4876, %v4863, %v4866
        %v4885 = vsel %vm4879, %v4872, 920167782
        %v4886 = vsel %vm4878, %v4869, %v4885
        %v4887 = vsel %vm4877, %v4884, %v4886
        %v4888 = vsel %vm4876, %v4866, %v4869
        %v4889 = vsel %vm4879, %v4875, 1326507024
        %v4890 = vsel %vm4878, %v4872, %v4889
        %v4891 = vsel %vm4877, %v4888, %v4890
        %v4892 = vshll.u32 %v4852, 8
        %v4893 = vmul.u32.u64.compose %v4892, %v4891
        %v4894 = vextract.low.u32 %v4893
        %v4895 = vextract.high.u32 %v4893
        %v4896 = vmul.u32.u64.compose %v4892, %v4887
        %v4897 = vextract.low.u32 %v4896
        %v4898 = vextract.high.u32 %v4896
        %v4899 = vmul.u32 %v4892, %v4883
        %v4900 = vadd.s32 %v4895, %v4897
        %vm4901 = vc.u32 %v4895, %v4897
        %v4902 = vadd.s32 %v4898, 1
        %v4903 = vsel %vm4901, %v4902, %v4898
        %v4904 = vadd.s32 %v4899, %v4903
        %v4905 = vadd.s32 %v4904, 536870912
        %v4906 = vshrl.u32 %v4905, 30
        %v4907 = vshll.u32 %v4906, 30
        %v4908 = vsub.s32 %v4904, %v4907
        %vm4909 = vcmp.lt.s32.totalorder %v4908, 0
        %v4910 = vsub.s32 0, %v4908
        %v4911 = vsel %vm4909, %v4910, %v4908
        %v4912 = vclz %v4911
        %v4913 = vsub.s32 %v4912, 2
        %vm4914 = vcmp.gt.s32.totalorder 0, %v4913
        %v4915 = vsel %vm4914, 0, %v4913
        %v4916 = vsub.s32 32, %v4915
        %v4917 = vshll.u32 %v4908, %v4915
        %v4918 = vshrl.u32 %v4900, %v4916
        %v4919 = vor.u32 %v4917, %v4918
        %v4920 = vsub.s32 4294967266, %v4915
        %v4921 = vadd.s32 %v4920, 127
        %v4922 = vshll.u32 %v4921, 23
        %v4923 = vor.u32 4788187, %v4922
        %v4924 = vand.u32 2147483647, %v4923
        %v4926 = vcvt.s32.f32 %v4919
        %v4927 = vmul.f32 %v4926, %v4924
        %v4928 = vxor.u32 %v4927, 2147483648
        %v4929 = vsel %vm4846, %v4928, %v4927
        %v4930 = vsub.s32 4, %v4906
        %v4931 = vsel %vm4846, %v4930, %v4906
        %v4932 = vsel %vm4845, %v4221, %v4929
        %v4933 = vsel %vm4845, 0, %v4931
        %v4934 = vcosq.f32.pop %v4932
        %v4935 = vsinq.f32.pop %v4932
        %vm4936 = vweird.f32 %v4221
        %v4937 = vadd.s32 %v4933, 3
        %v4938 = vand.u32 %v4937, 3
        %vm4939 = vcmp.lt.s32.totalorder %v4938, 2
        %vm4940 = vcmp.eq.s32.totalorder %v4938, 0
        %v4941 = vxor.u32 %v4935, 2147483648
        %v4942 = vsel %vm4940, %v4934, %v4941
        %vm4943 = vcmp.eq.s32.totalorder %v4938, 2
        %v4944 = vxor.u32 %v4934, 2147483648
        %v4945 = vsel %vm4943, %v4944, %v4935
        %v4946 = vsel %vm4939, %v4942, %v4945
        %v4947 = vsel %vm4936, nan, %v4946
        %v4948 = vand.u32 2147483647, %v4308
        %vm4949 = vcmp.le.f32.partialorder %v4948, 0.7853982
        %vm4950 = vcmp.lt.s32.totalorder %v4308, 0
        %v4951 = vand.u32 %v4308, 2139095040
        %v4952 = vshrl.u32 %v4951, 23
        %v4953 = vsub.s32 %v4952, 127
        %v4954 = vand.u32 2147483647, %v4308
        %v4955 = vand.u32 %v4954, 8388607
        %v4956 = vor.u32 %v4955, 8388608
        %v4957 = vsub.s32 0, %v4956
        %v4958 = vadd.s32 %v4953, 1
        %vm4959 = vcmp.gt.s32.totalorder %v4958, 0
        %v4960 = vsel %vm4959, %v4958, 0
        %v4961 = vshrl.u32 %v4960, 5
        %v4962 = vand.u32 %v4960, 31
        %v4963 = vsub.s32 32, %v4962
        %v4964 = vshrl.u32 683565275, %v4963
        %v4965 = vshll.u32 683565275, %v4962
        %v4966 = vshrl.u32 2475754826, %v4963
        %v4967 = vor.u32 %v4965, %v4966
        %v4968 = vshll.u32 2475754826, %v4962
        %v4969 = vshrl.u32 2131351028, %v4963
        %v4970 = vor.u32 %v4968, %v4969
        %v4971 = vshll.u32 2131351028, %v4962
        %v4972 = vshrl.u32 2102212464, %v4963
        %v4973 = vor.u32 %v4971, %v4972
        %v4974 = vshll.u32 2102212464, %v4962
        %v4975 = vshrl.u32 920167782, %v4963
        %v4976 = vor.u32 %v4974, %v4975
        %v4977 = vshll.u32 920167782, %v4962
        %v4978 = vshrl.u32 1326507024, %v4963
        %v4979 = vor.u32 %v4977, %v4978
        %vm4980 = vcmp.lt.s32.totalorder %v4961, 1
        %vm4981 = vcmp.lt.s32.totalorder %v4961, 2
        %vm4982 = vcmp.lt.s32.totalorder %v4961, 3
        %vm4983 = vcmp.lt.s32.totalorder %v4961, 4
        %v4984 = vsel %vm4980, %v4964, %v4967
        %v4985 = vsel %vm4983, %v4973, 2102212464
        %v4986 = vsel %vm4982, %v4970, %v4985
        %v4987 = vsel %vm4981, %v4984, %v4986
        %v4988 = vsel %vm4980, %v4967, %v4970
        %v4989 = vsel %vm4983, %v4976, 920167782
        %v4990 = vsel %vm4982, %v4973, %v4989
        %v4991 = vsel %vm4981, %v4988, %v4990
        %v4992 = vsel %vm4980, %v4970, %v4973
        %v4993 = vsel %vm4983, %v4979, 1326507024
        %v4994 = vsel %vm4982, %v4976, %v4993
        %v4995 = vsel %vm4981, %v4992, %v4994
        %v4996 = vshll.u32 %v4956, 8
        %v4997 = vmul.u32.u64.compose %v4996, %v4995
        %v4998 = vextract.low.u32 %v4997
        %v4999 = vextract.high.u32 %v4997
        %v5000 = vmul.u32.u64.compose %v4996, %v4991
        %v5001 = vextract.low.u32 %v5000
        %v5002 = vextract.high.u32 %v5000
        %v5003 = vmul.u32 %v4996, %v4987
        %v5004 = vadd.s32 %v4999, %v5001
        %vm5005 = vc.u32 %v4999, %v5001
        %v5006 = vadd.s32 %v5002, 1
        %v5007 = vsel %vm5005, %v5006, %v5002
        %v5008 = vadd.s32 %v5003, %v5007
        %v5009 = vadd.s32 %v5008, 536870912
        %v5010 = vshrl.u32 %v5009, 30
        %v5011 = vshll.u32 %v5010, 30
        %v5012 = vsub.s32 %v5008, %v5011
        %vm5013 = vcmp.lt.s32.totalorder %v5012, 0
        %v5014 = vsub.s32 0, %v5012
        %v5015 = vsel %vm5013, %v5014, %v5012
        %v5016 = vclz %v5015
        %v5017 = vsub.s32 %v5016, 2
        %vm5018 = vcmp.gt.s32.totalorder 0, %v5017
        %v5019 = vsel %vm5018, 0, %v5017
        %v5020 = vsub.s32 32, %v5019
        %v5021 = vshll.u32 %v5012, %v5019
        %v5022 = vshrl.u32 %v5004, %v5020
        %v5023 = vor.u32 %v5021, %v5022
        %v5024 = vsub.s32 4294967266, %v5019
        %v5025 = vadd.s32 %v5024, 127
        %v5026 = vshll.u32 %v5025, 23
        %v5027 = vor.u32 4788187, %v5026
        %v5028 = vand.u32 2147483647, %v5027
        %v5030 = vcvt.s32.f32 %v5023
        %v5031 = vmul.f32 %v5030, %v5028
        %v5032 = vxor.u32 %v5031, 2147483648
        %v5033 = vsel %vm4950, %v5032, %v5031
        %v5034 = vsub.s32 4, %v5010
        %v5035 = vsel %vm4950, %v5034, %v5010
        %v5036 = vsel %vm4949, %v4308, %v5033
        %v5037 = vsel %vm4949, 0, %v5035
        %v5038 = vcosq.f32.pop %v5036
        %v5039 = vsinq.f32.pop %v5036
        %vm5040 = vweird.f32 %v4308
        %v5041 = vadd.s32 %v5037, 3
        %v5042 = vand.u32 %v5041, 3
        %vm5043 = vcmp.lt.s32.totalorder %v5042, 2
        %vm5044 = vcmp.eq.s32.totalorder %v5042, 0
        %v5045 = vxor.u32 %v5039, 2147483648
        %v5046 = vsel %vm5044, %v5038, %v5045
        %vm5047 = vcmp.eq.s32.totalorder %v5042, 2
        %v5048 = vxor.u32 %v5038, 2147483648
        %v5049 = vsel %vm5047, %v5048, %v5039
        %v5050 = vsel %vm5043, %v5046, %v5049
        %v5051 = vsel %vm5040, nan, %v5050
        %v5052 = vand.u32 2147483647, %v4310
        %vm5053 = vcmp.le.f32.partialorder %v5052, 0.7853982
        %vm5054 = vcmp.lt.s32.totalorder %v4310, 0
        %v5055 = vand.u32 %v4310, 2139095040
        %v5056 = vshrl.u32 %v5055, 23
        %v5057 = vsub.s32 %v5056, 127
        %v5058 = vand.u32 2147483647, %v4310
        %v5059 = vand.u32 %v5058, 8388607
        %v5060 = vor.u32 %v5059, 8388608
        %v5061 = vsub.s32 0, %v5060
        %v5062 = vadd.s32 %v5057, 1
        %vm5063 = vcmp.gt.s32.totalorder %v5062, 0
        %v5064 = vsel %vm5063, %v5062, 0
        %v5065 = vshrl.u32 %v5064, 5
        %v5066 = vand.u32 %v5064, 31
        %v5067 = vsub.s32 32, %v5066
        %v5068 = vshrl.u32 683565275, %v5067
        %v5069 = vshll.u32 683565275, %v5066
        %v5070 = vshrl.u32 2475754826, %v5067
        %v5071 = vor.u32 %v5069, %v5070
        %v5072 = vshll.u32 2475754826, %v5066
        %v5073 = vshrl.u32 2131351028, %v5067
        %v5074 = vor.u32 %v5072, %v5073
        %v5075 = vshll.u32 2131351028, %v5066
        %v5076 = vshrl.u32 2102212464, %v5067
        %v5077 = vor.u32 %v5075, %v5076
        %v5078 = vshll.u32 2102212464, %v5066
        %v5079 = vshrl.u32 920167782, %v5067
        %v5080 = vor.u32 %v5078, %v5079
        %v5081 = vshll.u32 920167782, %v5066
        %v5082 = vshrl.u32 1326507024, %v5067
        %v5083 = vor.u32 %v5081, %v5082
        %vm5084 = vcmp.lt.s32.totalorder %v5065, 1
        %vm5085 = vcmp.lt.s32.totalorder %v5065, 2
        %vm5086 = vcmp.lt.s32.totalorder %v5065, 3
        %vm5087 = vcmp.lt.s32.totalorder %v5065, 4
        %v5088 = vsel %vm5084, %v5068, %v5071
        %v5089 = vsel %vm5087, %v5077, 2102212464
        %v5090 = vsel %vm5086, %v5074, %v5089
        %v5091 = vsel %vm5085, %v5088, %v5090
        %v5092 = vsel %vm5084, %v5071, %v5074
        %v5093 = vsel %vm5087, %v5080, 920167782
        %v5094 = vsel %vm5086, %v5077, %v5093
        %v5095 = vsel %vm5085, %v5092, %v5094
        %v5096 = vsel %vm5084, %v5074, %v5077
        %v5097 = vsel %vm5087, %v5083, 1326507024
        %v5098 = vsel %vm5086, %v5080, %v5097
        %v5099 = vsel %vm5085, %v5096, %v5098
        %v5100 = vshll.u32 %v5060, 8
        %v5101 = vmul.u32.u64.compose %v5100, %v5099
        %v5102 = vextract.low.u32 %v5101
        %v5103 = vextract.high.u32 %v5101
        %v5104 = vmul.u32.u64.compose %v5100, %v5095
        %v5105 = vextract.low.u32 %v5104
        %v5106 = vextract.high.u32 %v5104
        %v5107 = vmul.u32 %v5100, %v5091
        %v5108 = vadd.s32 %v5103, %v5105
        %vm5109 = vc.u32 %v5103, %v5105
        %v5110 = vadd.s32 %v5106, 1
        %v5111 = vsel %vm5109, %v5110, %v5106
        %v5112 = vadd.s32 %v5107, %v5111
        %v5113 = vadd.s32 %v5112, 536870912
        %v5114 = vshrl.u32 %v5113, 30
        %v5115 = vshll.u32 %v5114, 30
        %v5116 = vsub.s32 %v5112, %v5115
        %vm5117 = vcmp.lt.s32.totalorder %v5116, 0
        %v5118 = vsub.s32 0, %v5116
        %v5119 = vsel %vm5117, %v5118, %v5116
        %v5120 = vclz %v5119
        %v5121 = vsub.s32 %v5120, 2
        %vm5122 = vcmp.gt.s32.totalorder 0, %v5121
        %v5123 = vsel %vm5122, 0, %v5121
        %v5124 = vsub.s32 32, %v5123
        %v5125 = vshll.u32 %v5116, %v5123
        %v5126 = vshrl.u32 %v5108, %v5124
        %v5127 = vor.u32 %v5125, %v5126
        %v5128 = vsub.s32 4294967266, %v5123
        %v5129 = vadd.s32 %v5128, 127
        %v5130 = vshll.u32 %v5129, 23
        %v5131 = vor.u32 4788187, %v5130
        %v5132 = vand.u32 2147483647, %v5131
        %v5134 = vcvt.s32.f32 %v5127
        %v5135 = vmul.f32 %v5134, %v5132
        %v5136 = vxor.u32 %v5135, 2147483648
        %v5137 = vsel %vm5054, %v5136, %v5135
        %v5138 = vsub.s32 4, %v5114
        %v5139 = vsel %vm5054, %v5138, %v5114
        %v5140 = vsel %vm5053, %v4310, %v5137
        %v5141 = vsel %vm5053, 0, %v5139
        %v5142 = vcosq.f32.pop %v5140
        %v5143 = vsinq.f32.pop %v5140
        %vm5144 = vweird.f32 %v4310
        %v5145 = vadd.s32 %v5141, 3
        %v5146 = vand.u32 %v5145, 3
        %vm5147 = vcmp.lt.s32.totalorder %v5146, 2
        %vm5148 = vcmp.eq.s32.totalorder %v5146, 0
        %v5149 = vxor.u32 %v5143, 2147483648
        %v5150 = vsel %vm5148, %v5142, %v5149
        %vm5151 = vcmp.eq.s32.totalorder %v5146, 2
        %v5152 = vxor.u32 %v5142, 2147483648
        %v5153 = vsel %vm5151, %v5152, %v5143
        %v5154 = vsel %vm5147, %v5150, %v5153
        %v5155 = vsel %vm5144, nan, %v5154
        %v5156 = vand.u32 2147483647, %v4225
        %vm5157 = vcmp.le.f32.partialorder %v5156, 0.7853982
        %vm5158 = vcmp.lt.s32.totalorder %v4225, 0
        %v5159 = vand.u32 %v4225, 2139095040
        %v5160 = vshrl.u32 %v5159, 23
        %v5161 = vsub.s32 %v5160, 127
        %v5162 = vand.u32 2147483647, %v4225
        %v5163 = vand.u32 %v5162, 8388607
        %v5164 = vor.u32 %v5163, 8388608
        %v5165 = vsub.s32 0, %v5164
        %v5166 = vadd.s32 %v5161, 1
        %vm5167 = vcmp.gt.s32.totalorder %v5166, 0
        %v5168 = vsel %vm5167, %v5166, 0
        %v5169 = vshrl.u32 %v5168, 5
        %v5170 = vand.u32 %v5168, 31
        %v5171 = vsub.s32 32, %v5170
        %v5172 = vshrl.u32 683565275, %v5171
        %v5173 = vshll.u32 683565275, %v5170
        %v5174 = vshrl.u32 2475754826, %v5171
        %v5175 = vor.u32 %v5173, %v5174
        %v5176 = vshll.u32 2475754826, %v5170
        %v5177 = vshrl.u32 2131351028, %v5171
        %v5178 = vor.u32 %v5176, %v5177
        %v5179 = vshll.u32 2131351028, %v5170
        %v5180 = vshrl.u32 2102212464, %v5171
        %v5181 = vor.u32 %v5179, %v5180
        %v5182 = vshll.u32 2102212464, %v5170
        %v5183 = vshrl.u32 920167782, %v5171
        %v5184 = vor.u32 %v5182, %v5183
        %v5185 = vshll.u32 920167782, %v5170
        %v5186 = vshrl.u32 1326507024, %v5171
        %v5187 = vor.u32 %v5185, %v5186
        %vm5188 = vcmp.lt.s32.totalorder %v5169, 1
        %vm5189 = vcmp.lt.s32.totalorder %v5169, 2
        %vm5190 = vcmp.lt.s32.totalorder %v5169, 3
        %vm5191 = vcmp.lt.s32.totalorder %v5169, 4
        %v5192 = vsel %vm5188, %v5172, %v5175
        %v5193 = vsel %vm5191, %v5181, 2102212464
        %v5194 = vsel %vm5190, %v5178, %v5193
        %v5195 = vsel %vm5189, %v5192, %v5194
        %v5196 = vsel %vm5188, %v5175, %v5178
        %v5197 = vsel %vm5191, %v5184, 920167782
        %v5198 = vsel %vm5190, %v5181, %v5197
        %v5199 = vsel %vm5189, %v5196, %v5198
        %v5200 = vsel %vm5188, %v5178, %v5181
        %v5201 = vsel %vm5191, %v5187, 1326507024
        %v5202 = vsel %vm5190, %v5184, %v5201
        %v5203 = vsel %vm5189, %v5200, %v5202
        %v5204 = vshll.u32 %v5164, 8
        %v5205 = vmul.u32.u64.compose %v5204, %v5203
        %v5206 = vextract.low.u32 %v5205
        %v5207 = vextract.high.u32 %v5205
        %v5208 = vmul.u32.u64.compose %v5204, %v5199
        %v5209 = vextract.low.u32 %v5208
        %v5210 = vextract.high.u32 %v5208
        %v5211 = vmul.u32 %v5204, %v5195
        %v5212 = vadd.s32 %v5207, %v5209
        %vm5213 = vc.u32 %v5207, %v5209
        %v5214 = vadd.s32 %v5210, 1
        %v5215 = vsel %vm5213, %v5214, %v5210
        %v5216 = vadd.s32 %v5211, %v5215
        %v5217 = vadd.s32 %v5216, 536870912
        %v5218 = vshrl.u32 %v5217, 30
        %v5219 = vshll.u32 %v5218, 30
        %v5220 = vsub.s32 %v5216, %v5219
        %vm5221 = vcmp.lt.s32.totalorder %v5220, 0
        %v5222 = vsub.s32 0, %v5220
        %v5223 = vsel %vm5221, %v5222, %v5220
        %v5224 = vclz %v5223
        %v5225 = vsub.s32 %v5224, 2
        %vm5226 = vcmp.gt.s32.totalorder 0, %v5225
        %v5227 = vsel %vm5226, 0, %v5225
        %v5228 = vsub.s32 32, %v5227
        %v5229 = vshll.u32 %v5220, %v5227
        %v5230 = vshrl.u32 %v5212, %v5228
        %v5231 = vor.u32 %v5229, %v5230
        %v5232 = vsub.s32 4294967266, %v5227
        %v5233 = vadd.s32 %v5232, 127
        %v5234 = vshll.u32 %v5233, 23
        %v5235 = vor.u32 4788187, %v5234
        %v5236 = vand.u32 2147483647, %v5235
        %v5238 = vcvt.s32.f32 %v5231
        %v5239 = vmul.f32 %v5238, %v5236
        %v5240 = vxor.u32 %v5239, 2147483648
        %v5241 = vsel %vm5158, %v5240, %v5239
        %v5242 = vsub.s32 4, %v5218
        %v5243 = vsel %vm5158, %v5242, %v5218
        %v5244 = vsel %vm5157, %v4225, %v5241
        %v5245 = vsel %vm5157, 0, %v5243
        %v5246 = vcosq.f32.pop %v5244
        %v5247 = vsinq.f32.pop %v5244
        %vm5248 = vweird.f32 %v4225
        %v5249 = vadd.s32 %v5245, 3
        %v5250 = vand.u32 %v5249, 3
        %vm5251 = vcmp.lt.s32.totalorder %v5250, 2
        %vm5252 = vcmp.eq.s32.totalorder %v5250, 0
        %v5253 = vxor.u32 %v5247, 2147483648
        %v5254 = vsel %vm5252, %v5246, %v5253
        %vm5255 = vcmp.eq.s32.totalorder %v5250, 2
        %v5256 = vxor.u32 %v5246, 2147483648
        %v5257 = vsel %vm5255, %v5256, %v5247
        %v5258 = vsel %vm5251, %v5254, %v5257
        %v5259 = vsel %vm5248, nan, %v5258
        %v5260 = vand.u32 2147483647, %v4227
        %vm5261 = vcmp.le.f32.partialorder %v5260, 0.7853982
        %vm5262 = vcmp.lt.s32.totalorder %v4227, 0
        %v5263 = vand.u32 %v4227, 2139095040
        %v5264 = vshrl.u32 %v5263, 23
        %v5265 = vsub.s32 %v5264, 127
        %v5266 = vand.u32 2147483647, %v4227
        %v5267 = vand.u32 %v5266, 8388607
        %v5268 = vor.u32 %v5267, 8388608
        %v5269 = vsub.s32 0, %v5268
        %v5270 = vadd.s32 %v5265, 1
        %vm5271 = vcmp.gt.s32.totalorder %v5270, 0
        %v5272 = vsel %vm5271, %v5270, 0
        %v5273 = vshrl.u32 %v5272, 5
        %v5274 = vand.u32 %v5272, 31
        %v5275 = vsub.s32 32, %v5274
        %v5276 = vshrl.u32 683565275, %v5275
        %v5277 = vshll.u32 683565275, %v5274
        %v5278 = vshrl.u32 2475754826, %v5275
        %v5279 = vor.u32 %v5277, %v5278
        %v5280 = vshll.u32 2475754826, %v5274
        %v5281 = vshrl.u32 2131351028, %v5275
        %v5282 = vor.u32 %v5280, %v5281
        %v5283 = vshll.u32 2131351028, %v5274
        %v5284 = vshrl.u32 2102212464, %v5275
        %v5285 = vor.u32 %v5283, %v5284
        %v5286 = vshll.u32 2102212464, %v5274
        %v5287 = vshrl.u32 920167782, %v5275
        %v5288 = vor.u32 %v5286, %v5287
        %v5289 = vshll.u32 920167782, %v5274
        %v5290 = vshrl.u32 1326507024, %v5275
        %v5291 = vor.u32 %v5289, %v5290
        %vm5292 = vcmp.lt.s32.totalorder %v5273, 1
        %vm5293 = vcmp.lt.s32.totalorder %v5273, 2
        %vm5294 = vcmp.lt.s32.totalorder %v5273, 3
        %vm5295 = vcmp.lt.s32.totalorder %v5273, 4
        %v5296 = vsel %vm5292, %v5276, %v5279
        %v5297 = vsel %vm5295, %v5285, 2102212464
        %v5298 = vsel %vm5294, %v5282, %v5297
        %v5299 = vsel %vm5293, %v5296, %v5298
        %v5300 = vsel %vm5292, %v5279, %v5282
        %v5301 = vsel %vm5295, %v5288, 920167782
        %v5302 = vsel %vm5294, %v5285, %v5301
        %v5303 = vsel %vm5293, %v5300, %v5302
        %v5304 = vsel %vm5292, %v5282, %v5285
        %v5305 = vsel %vm5295, %v5291, 1326507024
        %v5306 = vsel %vm5294, %v5288, %v5305
        %v5307 = vsel %vm5293, %v5304, %v5306
        %v5308 = vshll.u32 %v5268, 8
        %v5309 = vmul.u32.u64.compose %v5308, %v5307
        %v5310 = vextract.low.u32 %v5309
        %v5311 = vextract.high.u32 %v5309
        %v5312 = vmul.u32.u64.compose %v5308, %v5303
        %v5313 = vextract.low.u32 %v5312
        %v5314 = vextract.high.u32 %v5312
        %v5315 = vmul.u32 %v5308, %v5299
        %v5316 = vadd.s32 %v5311, %v5313
        %vm5317 = vc.u32 %v5311, %v5313
        %v5318 = vadd.s32 %v5314, 1
        %v5319 = vsel %vm5317, %v5318, %v5314
        %v5320 = vadd.s32 %v5315, %v5319
        %v5321 = vadd.s32 %v5320, 536870912
        %v5322 = vshrl.u32 %v5321, 30
        %v5323 = vshll.u32 %v5322, 30
        %v5324 = vsub.s32 %v5320, %v5323
        %vm5325 = vcmp.lt.s32.totalorder %v5324, 0
        %v5326 = vsub.s32 0, %v5324
        %v5327 = vsel %vm5325, %v5326, %v5324
        %v5328 = vclz %v5327
        %v5329 = vsub.s32 %v5328, 2
        %vm5330 = vcmp.gt.s32.totalorder 0, %v5329
        %v5331 = vsel %vm5330, 0, %v5329
        %v5332 = vsub.s32 32, %v5331
        %v5333 = vshll.u32 %v5324, %v5331
        %v5334 = vshrl.u32 %v5316, %v5332
        %v5335 = vor.u32 %v5333, %v5334
        %v5336 = vsub.s32 4294967266, %v5331
        %v5337 = vadd.s32 %v5336, 127
        %v5338 = vshll.u32 %v5337, 23
        %v5339 = vor.u32 4788187, %v5338
        %v5340 = vand.u32 2147483647, %v5339
        %v5342 = vcvt.s32.f32 %v5335
        %v5343 = vmul.f32 %v5342, %v5340
        %v5344 = vxor.u32 %v5343, 2147483648
        %v5345 = vsel %vm5262, %v5344, %v5343
        %v5346 = vsub.s32 4, %v5322
        %v5347 = vsel %vm5262, %v5346, %v5322
        %v5348 = vsel %vm5261, %v4227, %v5345
        %v5349 = vsel %vm5261, 0, %v5347
        %v5350 = vcosq.f32.pop %v5348
        %v5351 = vsinq.f32.pop %v5348
        %vm5352 = vweird.f32 %v4227
        %v5353 = vadd.s32 %v5349, 3
        %v5354 = vand.u32 %v5353, 3
        %vm5355 = vcmp.lt.s32.totalorder %v5354, 2
        %vm5356 = vcmp.eq.s32.totalorder %v5354, 0
        %v5357 = vxor.u32 %v5351, 2147483648
        %v5358 = vsel %vm5356, %v5350, %v5357
        %vm5359 = vcmp.eq.s32.totalorder %v5354, 2
        %v5360 = vxor.u32 %v5350, 2147483648
        %v5361 = vsel %vm5359, %v5360, %v5351
        %v5362 = vsel %vm5355, %v5358, %v5361
        %v5363 = vsel %vm5352, nan, %v5362
        %v5364 = vand.u32 2147483647, %v4314
        %vm5365 = vcmp.le.f32.partialorder %v5364, 0.7853982
        %vm5366 = vcmp.lt.s32.totalorder %v4314, 0
        %v5367 = vand.u32 %v4314, 2139095040
        %v5368 = vshrl.u32 %v5367, 23
        %v5369 = vsub.s32 %v5368, 127
        %v5370 = vand.u32 2147483647, %v4314
        %v5371 = vand.u32 %v5370, 8388607
        %v5372 = vor.u32 %v5371, 8388608
        %v5373 = vsub.s32 0, %v5372
        %v5374 = vadd.s32 %v5369, 1
        %vm5375 = vcmp.gt.s32.totalorder %v5374, 0
        %v5376 = vsel %vm5375, %v5374, 0
        %v5377 = vshrl.u32 %v5376, 5
        %v5378 = vand.u32 %v5376, 31
        %v5379 = vsub.s32 32, %v5378
        %v5380 = vshrl.u32 683565275, %v5379
        %v5381 = vshll.u32 683565275, %v5378
        %v5382 = vshrl.u32 2475754826, %v5379
        %v5383 = vor.u32 %v5381, %v5382
        %v5384 = vshll.u32 2475754826, %v5378
        %v5385 = vshrl.u32 2131351028, %v5379
        %v5386 = vor.u32 %v5384, %v5385
        %v5387 = vshll.u32 2131351028, %v5378
        %v5388 = vshrl.u32 2102212464, %v5379
        %v5389 = vor.u32 %v5387, %v5388
        %v5390 = vshll.u32 2102212464, %v5378
        %v5391 = vshrl.u32 920167782, %v5379
        %v5392 = vor.u32 %v5390, %v5391
        %v5393 = vshll.u32 920167782, %v5378
        %v5394 = vshrl.u32 1326507024, %v5379
        %v5395 = vor.u32 %v5393, %v5394
        %vm5396 = vcmp.lt.s32.totalorder %v5377, 1
        %vm5397 = vcmp.lt.s32.totalorder %v5377, 2
        %vm5398 = vcmp.lt.s32.totalorder %v5377, 3
        %vm5399 = vcmp.lt.s32.totalorder %v5377, 4
        %v5400 = vsel %vm5396, %v5380, %v5383
        %v5401 = vsel %vm5399, %v5389, 2102212464
        %v5402 = vsel %vm5398, %v5386, %v5401
        %v5403 = vsel %vm5397, %v5400, %v5402
        %v5404 = vsel %vm5396, %v5383, %v5386
        %v5405 = vsel %vm5399, %v5392, 920167782
        %v5406 = vsel %vm5398, %v5389, %v5405
        %v5407 = vsel %vm5397, %v5404, %v5406
        %v5408 = vsel %vm5396, %v5386, %v5389
        %v5409 = vsel %vm5399, %v5395, 1326507024
        %v5410 = vsel %vm5398, %v5392, %v5409
        %v5411 = vsel %vm5397, %v5408, %v5410
        %v5412 = vshll.u32 %v5372, 8
        %v5413 = vmul.u32.u64.compose %v5412, %v5411
        %v5414 = vextract.low.u32 %v5413
        %v5415 = vextract.high.u32 %v5413
        %v5416 = vmul.u32.u64.compose %v5412, %v5407
        %v5417 = vextract.low.u32 %v5416
        %v5418 = vextract.high.u32 %v5416
        %v5419 = vmul.u32 %v5412, %v5403
        %v5420 = vadd.s32 %v5415, %v5417
        %vm5421 = vc.u32 %v5415, %v5417
        %v5422 = vadd.s32 %v5418, 1
        %v5423 = vsel %vm5421, %v5422, %v5418
        %v5424 = vadd.s32 %v5419, %v5423
        %v5425 = vadd.s32 %v5424, 536870912
        %v5426 = vshrl.u32 %v5425, 30
        %v5427 = vshll.u32 %v5426, 30
        %v5428 = vsub.s32 %v5424, %v5427
        %vm5429 = vcmp.lt.s32.totalorder %v5428, 0
        %v5430 = vsub.s32 0, %v5428
        %v5431 = vsel %vm5429, %v5430, %v5428
        %v5432 = vclz %v5431
        %v5433 = vsub.s32 %v5432, 2
        %vm5434 = vcmp.gt.s32.totalorder 0, %v5433
        %v5435 = vsel %vm5434, 0, %v5433
        %v5436 = vsub.s32 32, %v5435
        %v5437 = vshll.u32 %v5428, %v5435
        %v5438 = vshrl.u32 %v5420, %v5436
        %v5439 = vor.u32 %v5437, %v5438
        %v5440 = vsub.s32 4294967266, %v5435
        %v5441 = vadd.s32 %v5440, 127
        %v5442 = vshll.u32 %v5441, 23
        %v5443 = vor.u32 4788187, %v5442
        %v5444 = vand.u32 2147483647, %v5443
        %v5446 = vcvt.s32.f32 %v5439
        %v5447 = vmul.f32 %v5446, %v5444
        %v5448 = vxor.u32 %v5447, 2147483648
        %v5449 = vsel %vm5366, %v5448, %v5447
        %v5450 = vsub.s32 4, %v5426
        %v5451 = vsel %vm5366, %v5450, %v5426
        %v5452 = vsel %vm5365, %v4314, %v5449
        %v5453 = vsel %vm5365, 0, %v5451
        %v5454 = vcosq.f32.pop %v5452
        %v5455 = vsinq.f32.pop %v5452
        %vm5456 = vweird.f32 %v4314
        %v5457 = vadd.s32 %v5453, 3
        %v5458 = vand.u32 %v5457, 3
        %vm5459 = vcmp.lt.s32.totalorder %v5458, 2
        %vm5460 = vcmp.eq.s32.totalorder %v5458, 0
        %v5461 = vxor.u32 %v5455, 2147483648
        %v5462 = vsel %vm5460, %v5454, %v5461
        %vm5463 = vcmp.eq.s32.totalorder %v5458, 2
        %v5464 = vxor.u32 %v5454, 2147483648
        %v5465 = vsel %vm5463, %v5464, %v5455
        %v5466 = vsel %vm5459, %v5462, %v5465
        %v5467 = vsel %vm5456, nan, %v5466
        %v5468 = vand.u32 2147483647, %v4316
        %vm5469 = vcmp.le.f32.partialorder %v5468, 0.7853982
        %vm5470 = vcmp.lt.s32.totalorder %v4316, 0
        %v5471 = vand.u32 %v4316, 2139095040
        %v5472 = vshrl.u32 %v5471, 23
        %v5473 = vsub.s32 %v5472, 127
        %v5474 = vand.u32 2147483647, %v4316
        %v5475 = vand.u32 %v5474, 8388607
        %v5476 = vor.u32 %v5475, 8388608
        %v5477 = vsub.s32 0, %v5476
        %v5478 = vadd.s32 %v5473, 1
        %vm5479 = vcmp.gt.s32.totalorder %v5478, 0
        %v5480 = vsel %vm5479, %v5478, 0
        %v5481 = vshrl.u32 %v5480, 5
        %v5482 = vand.u32 %v5480, 31
        %v5483 = vsub.s32 32, %v5482
        %v5484 = vshrl.u32 683565275, %v5483
        %v5485 = vshll.u32 683565275, %v5482
        %v5486 = vshrl.u32 2475754826, %v5483
        %v5487 = vor.u32 %v5485, %v5486
        %v5488 = vshll.u32 2475754826, %v5482
        %v5489 = vshrl.u32 2131351028, %v5483
        %v5490 = vor.u32 %v5488, %v5489
        %v5491 = vshll.u32 2131351028, %v5482
        %v5492 = vshrl.u32 2102212464, %v5483
        %v5493 = vor.u32 %v5491, %v5492
        %v5494 = vshll.u32 2102212464, %v5482
        %v5495 = vshrl.u32 920167782, %v5483
        %v5496 = vor.u32 %v5494, %v5495
        %v5497 = vshll.u32 920167782, %v5482
        %v5498 = vshrl.u32 1326507024, %v5483
        %v5499 = vor.u32 %v5497, %v5498
        %vm5500 = vcmp.lt.s32.totalorder %v5481, 1
        %vm5501 = vcmp.lt.s32.totalorder %v5481, 2
        %vm5502 = vcmp.lt.s32.totalorder %v5481, 3
        %vm5503 = vcmp.lt.s32.totalorder %v5481, 4
        %v5504 = vsel %vm5500, %v5484, %v5487
        %v5505 = vsel %vm5503, %v5493, 2102212464
        %v5506 = vsel %vm5502, %v5490, %v5505
        %v5507 = vsel %vm5501, %v5504, %v5506
        %v5508 = vsel %vm5500, %v5487, %v5490
        %v5509 = vsel %vm5503, %v5496, 920167782
        %v5510 = vsel %vm5502, %v5493, %v5509
        %v5511 = vsel %vm5501, %v5508, %v5510
        %v5512 = vsel %vm5500, %v5490, %v5493
        %v5513 = vsel %vm5503, %v5499, 1326507024
        %v5514 = vsel %vm5502, %v5496, %v5513
        %v5515 = vsel %vm5501, %v5512, %v5514
        %v5516 = vshll.u32 %v5476, 8
        %v5517 = vmul.u32.u64.compose %v5516, %v5515
        %v5518 = vextract.low.u32 %v5517
        %v5519 = vextract.high.u32 %v5517
        %v5520 = vmul.u32.u64.compose %v5516, %v5511
        %v5521 = vextract.low.u32 %v5520
        %v5522 = vextract.high.u32 %v5520
        %v5523 = vmul.u32 %v5516, %v5507
        %v5524 = vadd.s32 %v5519, %v5521
        %vm5525 = vc.u32 %v5519, %v5521
        %v5526 = vadd.s32 %v5522, 1
        %v5527 = vsel %vm5525, %v5526, %v5522
        %v5528 = vadd.s32 %v5523, %v5527
        %v5529 = vadd.s32 %v5528, 536870912
        %v5530 = vshrl.u32 %v5529, 30
        %v5531 = vshll.u32 %v5530, 30
        %v5532 = vsub.s32 %v5528, %v5531
        %vm5533 = vcmp.lt.s32.totalorder %v5532, 0
        %v5534 = vsub.s32 0, %v5532
        %v5535 = vsel %vm5533, %v5534, %v5532
        %v5536 = vclz %v5535
        %v5537 = vsub.s32 %v5536, 2
        %vm5538 = vcmp.gt.s32.totalorder 0, %v5537
        %v5539 = vsel %vm5538, 0, %v5537
        %v5540 = vsub.s32 32, %v5539
        %v5541 = vshll.u32 %v5532, %v5539
        %v5542 = vshrl.u32 %v5524, %v5540
        %v5543 = vor.u32 %v5541, %v5542
        %v5544 = vsub.s32 4294967266, %v5539
        %v5545 = vadd.s32 %v5544, 127
        %v5546 = vshll.u32 %v5545, 23
        %v5547 = vor.u32 4788187, %v5546
        %v5548 = vand.u32 2147483647, %v5547
        %v5550 = vcvt.s32.f32 %v5543
        %v5551 = vmul.f32 %v5550, %v5548
        %v5552 = vxor.u32 %v5551, 2147483648
        %v5553 = vsel %vm5470, %v5552, %v5551
        %v5554 = vsub.s32 4, %v5530
        %v5555 = vsel %vm5470, %v5554, %v5530
        %v5556 = vsel %vm5469, %v4316, %v5553
        %v5557 = vsel %vm5469, 0, %v5555
        %v5558 = vcosq.f32.pop %v5556
        %v5559 = vsinq.f32.pop %v5556
        %vm5560 = vweird.f32 %v4316
        %v5561 = vadd.s32 %v5557, 3
        %v5562 = vand.u32 %v5561, 3
        %vm5563 = vcmp.lt.s32.totalorder %v5562, 2
        %vm5564 = vcmp.eq.s32.totalorder %v5562, 0
        %v5565 = vxor.u32 %v5559, 2147483648
        %v5566 = vsel %vm5564, %v5558, %v5565
        %vm5567 = vcmp.eq.s32.totalorder %v5562, 2
        %v5568 = vxor.u32 %v5558, 2147483648
        %v5569 = vsel %vm5567, %v5568, %v5559
        %v5570 = vsel %vm5563, %v5566, %v5569
        %v5571 = vsel %vm5560, nan, %v5570
        %v5572 = vand.u32 2147483647, %v4231
        %vm5573 = vcmp.le.f32.partialorder %v5572, 0.7853982
        %vm5574 = vcmp.lt.s32.totalorder %v4231, 0
        %v5575 = vand.u32 %v4231, 2139095040
        %v5576 = vshrl.u32 %v5575, 23
        %v5577 = vsub.s32 %v5576, 127
        %v5578 = vand.u32 2147483647, %v4231
        %v5579 = vand.u32 %v5578, 8388607
        %v5580 = vor.u32 %v5579, 8388608
        %v5581 = vsub.s32 0, %v5580
        %v5582 = vadd.s32 %v5577, 1
        %vm5583 = vcmp.gt.s32.totalorder %v5582, 0
        %v5584 = vsel %vm5583, %v5582, 0
        %v5585 = vshrl.u32 %v5584, 5
        %v5586 = vand.u32 %v5584, 31
        %v5587 = vsub.s32 32, %v5586
        %v5588 = vshrl.u32 683565275, %v5587
        %v5589 = vshll.u32 683565275, %v5586
        %v5590 = vshrl.u32 2475754826, %v5587
        %v5591 = vor.u32 %v5589, %v5590
        %v5592 = vshll.u32 2475754826, %v5586
        %v5593 = vshrl.u32 2131351028, %v5587
        %v5594 = vor.u32 %v5592, %v5593
        %v5595 = vshll.u32 2131351028, %v5586
        %v5596 = vshrl.u32 2102212464, %v5587
        %v5597 = vor.u32 %v5595, %v5596
        %v5598 = vshll.u32 2102212464, %v5586
        %v5599 = vshrl.u32 920167782, %v5587
        %v5600 = vor.u32 %v5598, %v5599
        %v5601 = vshll.u32 920167782, %v5586
        %v5602 = vshrl.u32 1326507024, %v5587
        %v5603 = vor.u32 %v5601, %v5602
        %vm5604 = vcmp.lt.s32.totalorder %v5585, 1
        %vm5605 = vcmp.lt.s32.totalorder %v5585, 2
        %vm5606 = vcmp.lt.s32.totalorder %v5585, 3
        %vm5607 = vcmp.lt.s32.totalorder %v5585, 4
        %v5608 = vsel %vm5604, %v5588, %v5591
        %v5609 = vsel %vm5607, %v5597, 2102212464
        %v5610 = vsel %vm5606, %v5594, %v5609
        %v5611 = vsel %vm5605, %v5608, %v5610
        %v5612 = vsel %vm5604, %v5591, %v5594
        %v5613 = vsel %vm5607, %v5600, 920167782
        %v5614 = vsel %vm5606, %v5597, %v5613
        %v5615 = vsel %vm5605, %v5612, %v5614
        %v5616 = vsel %vm5604, %v5594, %v5597
        %v5617 = vsel %vm5607, %v5603, 1326507024
        %v5618 = vsel %vm5606, %v5600, %v5617
        %v5619 = vsel %vm5605, %v5616, %v5618
        %v5620 = vshll.u32 %v5580, 8
        %v5621 = vmul.u32.u64.compose %v5620, %v5619
        %v5622 = vextract.low.u32 %v5621
        %v5623 = vextract.high.u32 %v5621
        %v5624 = vmul.u32.u64.compose %v5620, %v5615
        %v5625 = vextract.low.u32 %v5624
        %v5626 = vextract.high.u32 %v5624
        %v5627 = vmul.u32 %v5620, %v5611
        %v5628 = vadd.s32 %v5623, %v5625
        %vm5629 = vc.u32 %v5623, %v5625
        %v5630 = vadd.s32 %v5626, 1
        %v5631 = vsel %vm5629, %v5630, %v5626
        %v5632 = vadd.s32 %v5627, %v5631
        %v5633 = vadd.s32 %v5632, 536870912
        %v5634 = vshrl.u32 %v5633, 30
        %v5635 = vshll.u32 %v5634, 30
        %v5636 = vsub.s32 %v5632, %v5635
        %vm5637 = vcmp.lt.s32.totalorder %v5636, 0
        %v5638 = vsub.s32 0, %v5636
        %v5639 = vsel %vm5637, %v5638, %v5636
        %v5640 = vclz %v5639
        %v5641 = vsub.s32 %v5640, 2
        %vm5642 = vcmp.gt.s32.totalorder 0, %v5641
        %v5643 = vsel %vm5642, 0, %v5641
        %v5644 = vsub.s32 32, %v5643
        %v5645 = vshll.u32 %v5636, %v5643
        %v5646 = vshrl.u32 %v5628, %v5644
        %v5647 = vor.u32 %v5645, %v5646
        %v5648 = vsub.s32 4294967266, %v5643
        %v5649 = vadd.s32 %v5648, 127
        %v5650 = vshll.u32 %v5649, 23
        %v5651 = vor.u32 4788187, %v5650
        %v5652 = vand.u32 2147483647, %v5651
        %v5654 = vcvt.s32.f32 %v5647
        %v5655 = vmul.f32 %v5654, %v5652
        %v5656 = vxor.u32 %v5655, 2147483648
        %v5657 = vsel %vm5574, %v5656, %v5655
        %v5658 = vsub.s32 4, %v5634
        %v5659 = vsel %vm5574, %v5658, %v5634
        %v5660 = vsel %vm5573, %v4231, %v5657
        %v5661 = vsel %vm5573, 0, %v5659
        %v5662 = vcosq.f32.pop %v5660
        %v5663 = vsinq.f32.pop %v5660
        %vm5664 = vweird.f32 %v4231
        %v5665 = vadd.s32 %v5661, 3
        %v5666 = vand.u32 %v5665, 3
        %vm5667 = vcmp.lt.s32.totalorder %v5666, 2
        %vm5668 = vcmp.eq.s32.totalorder %v5666, 0
        %v5669 = vxor.u32 %v5663, 2147483648
        %v5670 = vsel %vm5668, %v5662, %v5669
        %vm5671 = vcmp.eq.s32.totalorder %v5666, 2
        %v5672 = vxor.u32 %v5662, 2147483648
        %v5673 = vsel %vm5671, %v5672, %v5663
        %v5674 = vsel %vm5667, %v5670, %v5673
        %v5675 = vsel %vm5664, nan, %v5674
        %v5676 = vand.u32 2147483647, %v4233
        %vm5677 = vcmp.le.f32.partialorder %v5676, 0.7853982
        %vm5678 = vcmp.lt.s32.totalorder %v4233, 0
        %v5679 = vand.u32 %v4233, 2139095040
        %v5680 = vshrl.u32 %v5679, 23
        %v5681 = vsub.s32 %v5680, 127
        %v5682 = vand.u32 2147483647, %v4233
        %v5683 = vand.u32 %v5682, 8388607
        %v5684 = vor.u32 %v5683, 8388608
        %v5685 = vsub.s32 0, %v5684
        %v5686 = vadd.s32 %v5681, 1
        %vm5687 = vcmp.gt.s32.totalorder %v5686, 0
        %v5688 = vsel %vm5687, %v5686, 0
        %v5689 = vshrl.u32 %v5688, 5
        %v5690 = vand.u32 %v5688, 31
        %v5691 = vsub.s32 32, %v5690
        %v5692 = vshrl.u32 683565275, %v5691
        %v5693 = vshll.u32 683565275, %v5690
        %v5694 = vshrl.u32 2475754826, %v5691
        %v5695 = vor.u32 %v5693, %v5694
        %v5696 = vshll.u32 2475754826, %v5690
        %v5697 = vshrl.u32 2131351028, %v5691
        %v5698 = vor.u32 %v5696, %v5697
        %v5699 = vshll.u32 2131351028, %v5690
        %v5700 = vshrl.u32 2102212464, %v5691
        %v5701 = vor.u32 %v5699, %v5700
        %v5702 = vshll.u32 2102212464, %v5690
        %v5703 = vshrl.u32 920167782, %v5691
        %v5704 = vor.u32 %v5702, %v5703
        %v5705 = vshll.u32 920167782, %v5690
        %v5706 = vshrl.u32 1326507024, %v5691
        %v5707 = vor.u32 %v5705, %v5706
        %vm5708 = vcmp.lt.s32.totalorder %v5689, 1
        %vm5709 = vcmp.lt.s32.totalorder %v5689, 2
        %vm5710 = vcmp.lt.s32.totalorder %v5689, 3
        %vm5711 = vcmp.lt.s32.totalorder %v5689, 4
        %v5712 = vsel %vm5708, %v5692, %v5695
        %v5713 = vsel %vm5711, %v5701, 2102212464
        %v5714 = vsel %vm5710, %v5698, %v5713
        %v5715 = vsel %vm5709, %v5712, %v5714
        %v5716 = vsel %vm5708, %v5695, %v5698
        %v5717 = vsel %vm5711, %v5704, 920167782
        %v5718 = vsel %vm5710, %v5701, %v5717
        %v5719 = vsel %vm5709, %v5716, %v5718
        %v5720 = vsel %vm5708, %v5698, %v5701
        %v5721 = vsel %vm5711, %v5707, 1326507024
        %v5722 = vsel %vm5710, %v5704, %v5721
        %v5723 = vsel %vm5709, %v5720, %v5722
        %v5724 = vshll.u32 %v5684, 8
        %v5725 = vmul.u32.u64.compose %v5724, %v5723
        %v5726 = vextract.low.u32 %v5725
        %v5727 = vextract.high.u32 %v5725
        %v5728 = vmul.u32.u64.compose %v5724, %v5719
        %v5729 = vextract.low.u32 %v5728
        %v5730 = vextract.high.u32 %v5728
        %v5731 = vmul.u32 %v5724, %v5715
        %v5732 = vadd.s32 %v5727, %v5729
        %vm5733 = vc.u32 %v5727, %v5729
        %v5734 = vadd.s32 %v5730, 1
        %v5735 = vsel %vm5733, %v5734, %v5730
        %v5736 = vadd.s32 %v5731, %v5735
        %v5737 = vadd.s32 %v5736, 536870912
        %v5738 = vshrl.u32 %v5737, 30
        %v5739 = vshll.u32 %v5738, 30
        %v5740 = vsub.s32 %v5736, %v5739
        %vm5741 = vcmp.lt.s32.totalorder %v5740, 0
        %v5742 = vsub.s32 0, %v5740
        %v5743 = vsel %vm5741, %v5742, %v5740
        %v5744 = vclz %v5743
        %v5745 = vsub.s32 %v5744, 2
        %vm5746 = vcmp.gt.s32.totalorder 0, %v5745
        %v5747 = vsel %vm5746, 0, %v5745
        %v5748 = vsub.s32 32, %v5747
        %v5749 = vshll.u32 %v5740, %v5747
        %v5750 = vshrl.u32 %v5732, %v5748
        %v5751 = vor.u32 %v5749, %v5750
        %v5752 = vsub.s32 4294967266, %v5747
        %v5753 = vadd.s32 %v5752, 127
        %v5754 = vshll.u32 %v5753, 23
        %v5755 = vor.u32 4788187, %v5754
        %v5756 = vand.u32 2147483647, %v5755
        %v5758 = vcvt.s32.f32 %v5751
        %v5759 = vmul.f32 %v5758, %v5756
        %v5760 = vxor.u32 %v5759, 2147483648
        %v5761 = vsel %vm5678, %v5760, %v5759
        %v5762 = vsub.s32 4, %v5738
        %v5763 = vsel %vm5678, %v5762, %v5738
        %v5764 = vsel %vm5677, %v4233, %v5761
        %v5765 = vsel %vm5677, 0, %v5763
        %v5766 = vcosq.f32.pop %v5764
        %v5767 = vsinq.f32.pop %v5764
        %vm5768 = vweird.f32 %v4233
        %v5769 = vadd.s32 %v5765, 3
        %v5770 = vand.u32 %v5769, 3
        %vm5771 = vcmp.lt.s32.totalorder %v5770, 2
        %vm5772 = vcmp.eq.s32.totalorder %v5770, 0
        %v5773 = vxor.u32 %v5767, 2147483648
        %v5774 = vsel %vm5772, %v5766, %v5773
        %vm5775 = vcmp.eq.s32.totalorder %v5770, 2
        %v5776 = vxor.u32 %v5766, 2147483648
        %v5777 = vsel %vm5775, %v5776, %v5767
        %v5778 = vsel %vm5771, %v5774, %v5777
        %v5779 = vsel %vm5768, nan, %v5778
        %v5780 = vand.u32 2147483647, %v4320
        %vm5781 = vcmp.le.f32.partialorder %v5780, 0.7853982
        %vm5782 = vcmp.lt.s32.totalorder %v4320, 0
        %v5783 = vand.u32 %v4320, 2139095040
        %v5784 = vshrl.u32 %v5783, 23
        %v5785 = vsub.s32 %v5784, 127
        %v5786 = vand.u32 2147483647, %v4320
        %v5787 = vand.u32 %v5786, 8388607
        %v5788 = vor.u32 %v5787, 8388608
        %v5789 = vsub.s32 0, %v5788
        %v5790 = vadd.s32 %v5785, 1
        %vm5791 = vcmp.gt.s32.totalorder %v5790, 0
        %v5792 = vsel %vm5791, %v5790, 0
        %v5793 = vshrl.u32 %v5792, 5
        %v5794 = vand.u32 %v5792, 31
        %v5795 = vsub.s32 32, %v5794
        %v5796 = vshrl.u32 683565275, %v5795
        %v5797 = vshll.u32 683565275, %v5794
        %v5798 = vshrl.u32 2475754826, %v5795
        %v5799 = vor.u32 %v5797, %v5798
        %v5800 = vshll.u32 2475754826, %v5794
        %v5801 = vshrl.u32 2131351028, %v5795
        %v5802 = vor.u32 %v5800, %v5801
        %v5803 = vshll.u32 2131351028, %v5794
        %v5804 = vshrl.u32 2102212464, %v5795
        %v5805 = vor.u32 %v5803, %v5804
        %v5806 = vshll.u32 2102212464, %v5794
        %v5807 = vshrl.u32 920167782, %v5795
        %v5808 = vor.u32 %v5806, %v5807
        %v5809 = vshll.u32 920167782, %v5794
        %v5810 = vshrl.u32 1326507024, %v5795
        %v5811 = vor.u32 %v5809, %v5810
        %vm5812 = vcmp.lt.s32.totalorder %v5793, 1
        %vm5813 = vcmp.lt.s32.totalorder %v5793, 2
        %vm5814 = vcmp.lt.s32.totalorder %v5793, 3
        %vm5815 = vcmp.lt.s32.totalorder %v5793, 4
        %v5816 = vsel %vm5812, %v5796, %v5799
        %v5817 = vsel %vm5815, %v5805, 2102212464
        %v5818 = vsel %vm5814, %v5802, %v5817
        %v5819 = vsel %vm5813, %v5816, %v5818
        %v5820 = vsel %vm5812, %v5799, %v5802
        %v5821 = vsel %vm5815, %v5808, 920167782
        %v5822 = vsel %vm5814, %v5805, %v5821
        %v5823 = vsel %vm5813, %v5820, %v5822
        %v5824 = vsel %vm5812, %v5802, %v5805
        %v5825 = vsel %vm5815, %v5811, 1326507024
        %v5826 = vsel %vm5814, %v5808, %v5825
        %v5827 = vsel %vm5813, %v5824, %v5826
        %v5828 = vshll.u32 %v5788, 8
        %v5829 = vmul.u32.u64.compose %v5828, %v5827
        %v5830 = vextract.low.u32 %v5829
        %v5831 = vextract.high.u32 %v5829
        %v5832 = vmul.u32.u64.compose %v5828, %v5823
        %v5833 = vextract.low.u32 %v5832
        %v5834 = vextract.high.u32 %v5832
        %v5835 = vmul.u32 %v5828, %v5819
        %v5836 = vadd.s32 %v5831, %v5833
        %vm5837 = vc.u32 %v5831, %v5833
        %v5838 = vadd.s32 %v5834, 1
        %v5839 = vsel %vm5837, %v5838, %v5834
        %v5840 = vadd.s32 %v5835, %v5839
        %v5841 = vadd.s32 %v5840, 536870912
        %v5842 = vshrl.u32 %v5841, 30
        %v5843 = vshll.u32 %v5842, 30
        %v5844 = vsub.s32 %v5840, %v5843
        %vm5845 = vcmp.lt.s32.totalorder %v5844, 0
        %v5846 = vsub.s32 0, %v5844
        %v5847 = vsel %vm5845, %v5846, %v5844
        %v5848 = vclz %v5847
        %v5849 = vsub.s32 %v5848, 2
        %vm5850 = vcmp.gt.s32.totalorder 0, %v5849
        %v5851 = vsel %vm5850, 0, %v5849
        %v5852 = vsub.s32 32, %v5851
        %v5853 = vshll.u32 %v5844, %v5851
        %v5854 = vshrl.u32 %v5836, %v5852
        %v5855 = vor.u32 %v5853, %v5854
        %v5856 = vsub.s32 4294967266, %v5851
        %v5857 = vadd.s32 %v5856, 127
        %v5858 = vshll.u32 %v5857, 23
        %v5859 = vor.u32 4788187, %v5858
        %v5860 = vand.u32 2147483647, %v5859
        %v5862 = vcvt.s32.f32 %v5855
        %v5863 = vmul.f32 %v5862, %v5860
        %v5864 = vxor.u32 %v5863, 2147483648
        %v5865 = vsel %vm5782, %v5864, %v5863
        %v5866 = vsub.s32 4, %v5842
        %v5867 = vsel %vm5782, %v5866, %v5842
        %v5868 = vsel %vm5781, %v4320, %v5865
        %v5869 = vsel %vm5781, 0, %v5867
        %v5870 = vcosq.f32.pop %v5868
        %v5871 = vsinq.f32.pop %v5868
        %vm5872 = vweird.f32 %v4320
        %v5873 = vadd.s32 %v5869, 3
        %v5874 = vand.u32 %v5873, 3
        %vm5875 = vcmp.lt.s32.totalorder %v5874, 2
        %vm5876 = vcmp.eq.s32.totalorder %v5874, 0
        %v5877 = vxor.u32 %v5871, 2147483648
        %v5878 = vsel %vm5876, %v5870, %v5877
        %vm5879 = vcmp.eq.s32.totalorder %v5874, 2
        %v5880 = vxor.u32 %v5870, 2147483648
        %v5881 = vsel %vm5879, %v5880, %v5871
        %v5882 = vsel %vm5875, %v5878, %v5881
        %v5883 = vsel %vm5872, nan, %v5882
        %v5884 = vand.u32 2147483647, %v4322
        %vm5885 = vcmp.le.f32.partialorder %v5884, 0.7853982
        %vm5886 = vcmp.lt.s32.totalorder %v4322, 0
        %v5887 = vand.u32 %v4322, 2139095040
        %v5888 = vshrl.u32 %v5887, 23
        %v5889 = vsub.s32 %v5888, 127
        %v5890 = vand.u32 2147483647, %v4322
        %v5891 = vand.u32 %v5890, 8388607
        %v5892 = vor.u32 %v5891, 8388608
        %v5893 = vsub.s32 0, %v5892
        %v5894 = vadd.s32 %v5889, 1
        %vm5895 = vcmp.gt.s32.totalorder %v5894, 0
        %v5896 = vsel %vm5895, %v5894, 0
        %v5897 = vshrl.u32 %v5896, 5
        %v5898 = vand.u32 %v5896, 31
        %v5899 = vsub.s32 32, %v5898
        %v5900 = vshrl.u32 683565275, %v5899
        %v5901 = vshll.u32 683565275, %v5898
        %v5902 = vshrl.u32 2475754826, %v5899
        %v5903 = vor.u32 %v5901, %v5902
        %v5904 = vshll.u32 2475754826, %v5898
        %v5905 = vshrl.u32 2131351028, %v5899
        %v5906 = vor.u32 %v5904, %v5905
        %v5907 = vshll.u32 2131351028, %v5898
        %v5908 = vshrl.u32 2102212464, %v5899
        %v5909 = vor.u32 %v5907, %v5908
        %v5910 = vshll.u32 2102212464, %v5898
        %v5911 = vshrl.u32 920167782, %v5899
        %v5912 = vor.u32 %v5910, %v5911
        %v5913 = vshll.u32 920167782, %v5898
        %v5914 = vshrl.u32 1326507024, %v5899
        %v5915 = vor.u32 %v5913, %v5914
        %vm5916 = vcmp.lt.s32.totalorder %v5897, 1
        %vm5917 = vcmp.lt.s32.totalorder %v5897, 2
        %vm5918 = vcmp.lt.s32.totalorder %v5897, 3
        %vm5919 = vcmp.lt.s32.totalorder %v5897, 4
        %v5920 = vsel %vm5916, %v5900, %v5903
        %v5921 = vsel %vm5919, %v5909, 2102212464
        %v5922 = vsel %vm5918, %v5906, %v5921
        %v5923 = vsel %vm5917, %v5920, %v5922
        %v5924 = vsel %vm5916, %v5903, %v5906
        %v5925 = vsel %vm5919, %v5912, 920167782
        %v5926 = vsel %vm5918, %v5909, %v5925
        %v5927 = vsel %vm5917, %v5924, %v5926
        %v5928 = vsel %vm5916, %v5906, %v5909
        %v5929 = vsel %vm5919, %v5915, 1326507024
        %v5930 = vsel %vm5918, %v5912, %v5929
        %v5931 = vsel %vm5917, %v5928, %v5930
        %v5932 = vshll.u32 %v5892, 8
        %v5933 = vmul.u32.u64.compose %v5932, %v5931
        %v5934 = vextract.low.u32 %v5933
        %v5935 = vextract.high.u32 %v5933
        %v5936 = vmul.u32.u64.compose %v5932, %v5927
        %v5937 = vextract.low.u32 %v5936
        %v5938 = vextract.high.u32 %v5936
        %v5939 = vmul.u32 %v5932, %v5923
        %v5940 = vadd.s32 %v5935, %v5937
        %vm5941 = vc.u32 %v5935, %v5937
        %v5942 = vadd.s32 %v5938, 1
        %v5943 = vsel %vm5941, %v5942, %v5938
        %v5944 = vadd.s32 %v5939, %v5943
        %v5945 = vadd.s32 %v5944, 536870912
        %v5946 = vshrl.u32 %v5945, 30
        %v5947 = vshll.u32 %v5946, 30
        %v5948 = vsub.s32 %v5944, %v5947
        %vm5949 = vcmp.lt.s32.totalorder %v5948, 0
        %v5950 = vsub.s32 0, %v5948
        %v5951 = vsel %vm5949, %v5950, %v5948
        %v5952 = vclz %v5951
        %v5953 = vsub.s32 %v5952, 2
        %vm5954 = vcmp.gt.s32.totalorder 0, %v5953
        %v5955 = vsel %vm5954, 0, %v5953
        %v5956 = vsub.s32 32, %v5955
        %v5957 = vshll.u32 %v5948, %v5955
        %v5958 = vshrl.u32 %v5940, %v5956
        %v5959 = vor.u32 %v5957, %v5958
        %v5960 = vsub.s32 4294967266, %v5955
        %v5961 = vadd.s32 %v5960, 127
        %v5962 = vshll.u32 %v5961, 23
        %v5963 = vor.u32 4788187, %v5962
        %v5964 = vand.u32 2147483647, %v5963
        %v5966 = vcvt.s32.f32 %v5959
        %v5967 = vmul.f32 %v5966, %v5964
        %v5968 = vxor.u32 %v5967, 2147483648
        %v5969 = vsel %vm5886, %v5968, %v5967
        %v5970 = vsub.s32 4, %v5946
        %v5971 = vsel %vm5886, %v5970, %v5946
        %v5972 = vsel %vm5885, %v4322, %v5969
        %v5973 = vsel %vm5885, 0, %v5971
        %v5974 = vcosq.f32.pop %v5972
        %v5975 = vsinq.f32.pop %v5972
        %vm5976 = vweird.f32 %v4322
        %v5977 = vadd.s32 %v5973, 3
        %v5978 = vand.u32 %v5977, 3
        %vm5979 = vcmp.lt.s32.totalorder %v5978, 2
        %vm5980 = vcmp.eq.s32.totalorder %v5978, 0
        %v5981 = vxor.u32 %v5975, 2147483648
        %v5982 = vsel %vm5980, %v5974, %v5981
        %vm5983 = vcmp.eq.s32.totalorder %v5978, 2
        %v5984 = vxor.u32 %v5974, 2147483648
        %v5985 = vsel %vm5983, %v5984, %v5975
        %v5986 = vsel %vm5979, %v5982, %v5985
        %v5987 = vsel %vm5976, nan, %v5986
        %v5988 = vld [vmem:[%s7] sm:$0x1]
        %v5989 = vld [vmem:[#allocation2] sm:$0x1]
        %5991 = vset.pattern.permute.xlu0 0
        %5992 = vperm.xlu0 %5991, %v5989
        %v5993 = vpop.permute.xlu0 %5992
        %v5995 = vlaneseq
        %v5996 = vshrl.u32 %v5995, 7
        %v5997 = vsub.s32 0, %v5996
        %v5998 = vrot.slane %v5993, %v5997
        %v6000 = vsel %vm2251, %v5988, 0
        %6002 = vmatprep.subr.mxu0 %v4531
        %6003 = vmatpush1.msra.mxu0 %v4427
        %6004 = vmatprep.subr.mxu0 %v4947
        %6005 = vmatpush1.msra.mxu0 %v4843
        %6006 = vmatprep.subr.mxu0 %v5363
        %6007 = vmatpush1.msra.mxu0 %v5259
        %6008 = vmatprep.subr.mxu0 %v5779
        %6009 = vmatpush1.msra.mxu0 %v5675
        %6010 = vmatprep.subr.mxu0 0.0
        %6011 = vmatpush1.msra.mxu0 0.0
        %6012 = vmatprep.subr.mxu0 0.0
        %6013 = vmatpush1.msra.mxu0 0.0
        %6014 = vmatprep.subr.mxu0 0.0
        %6015 = vmatpush1.msra.mxu0 0.0
        %6016 = vmatprep.subr.mxu0 0.0
        %6017 = vmatpush1.msra.mxu0 0.0
        %6018 = vmatprep.subr.mxu0 0.0
        %6019 = vmatpush1.msra.mxu0 0.0
        %6020 = vmatprep.subr.mxu0 0.0
        %6021 = vmatpush1.msra.mxu0 0.0
        %6022 = vmatprep.subr.mxu0 0.0
        %6023 = vmatpush1.msra.mxu0 0.0
        %6024 = vmatprep.subr.mxu0 0.0
        %6025 = vmatpush1.msra.mxu0 0.0
        %6026 = vmatprep.subr.mxu0 0.0
        %6027 = vmatpush1.msra.mxu0 0.0
        %6028 = vmatprep.subr.mxu0 0.0
        %6029 = vmatpush1.msra.mxu0 0.0
        %6030 = vmatprep.subr.mxu0 0.0
        %6031 = vmatpush1.msra.mxu0 0.0
        %6032 = vmatprep.subr.mxu0 0.0
        %6033 = vmatpush1.msra.mxu0 0.0
        %6034 = vmatprep.subr.mxu0 0.0
        %6035 = vmatpush1.msra.mxu0 0.0
        %6036 = vmatprep.subr.mxu0 0.0
        %6037 = vmatpush1.msra.mxu0 0.0
        %6038 = vmatprep.subr.mxu0 0.0
        %6039 = vmatpush1.msra.mxu0 0.0
        %6040 = vmatprep.subr.mxu0 0.0
        %6041 = vmatpush1.msra.mxu0 0.0
        %6042 = vmatprep.subr.mxu0 0.0
        %6043 = vmatpush1.msra.mxu0 0.0
        %6044 = vmatprep.subr.mxu0 0.0
        %6045 = vmatpush1.msra.mxu0 0.0
        %6046 = vmatprep.subr.mxu0 0.0
        %6047 = vmatpush1.msra.mxu0 0.0
        %6048 = vmatprep.subr.mxu0 0.0
        %6049 = vmatpush1.msra.mxu0 0.0
        %6050 = vmatprep.subr.mxu0 0.0
        %6051 = vmatpush1.msra.mxu0 0.0
        %6052 = vmatprep.subr.mxu0 0.0
        %6053 = vmatpush1.msra.mxu0 0.0
        %6054 = vmatprep.subr.mxu0 0.0
        %6055 = vmatpush1.msra.mxu0 0.0
        %6056 = vmatprep.subr.mxu0 0.0
        %6057 = vmatpush1.msra.mxu0 0.0
        %6058 = vmatprep.subr.mxu0 0.0
        %6059 = vmatpush1.msra.mxu0 0.0
        %6060 = vmatprep.subr.mxu0 0.0
        %6061 = vmatpush1.msra.mxu0 0.0
        %6062 = vmatprep.subr.mxu0 0.0
        %6063 = vmatpush1.msra.mxu0 0.0
        %6064 = vmatprep.subr.mxu0 0.0
        %6065 = vmatpush1.msra.mxu0 0.0
        %6066 = vmatprep.mubr.f32.mxu0 0.0
        %6067 = vmatmul.mubr.f32.gmra.mrb[0].mxu0 %v6000
        %v6068 = vpop.f32.mrb[0].mxu0
        %v6069 = vadd.f32 %v5998, %v6068
        %v6070 = vpop.f32.mrb[0].mxu0
        %v6071 = vadd.f32 %v5998, %v6070
        %6072 = vdwg.mxu0
        %6073 = vmatprep.subr.mxu0 %v4739
        %6074 = vmatpush1.msra.mxu0 %v4635
        %6075 = vmatprep.subr.mxu0 %v5155
        %6076 = vmatpush1.msra.mxu0 %v5051
        %6077 = vmatprep.subr.mxu0 %v5571
        %6078 = vmatpush1.msra.mxu0 %v5467
        %6079 = vmatprep.subr.mxu0 %v5987
        %6080 = vmatpush1.msra.mxu0 %v5883
        %6081 = vmatprep.subr.mxu0 0.0
        %6082 = vmatpush1.msra.mxu0 0.0
        %6083 = vmatprep.subr.mxu0 0.0
        %6084 = vmatpush1.msra.mxu0 0.0
        %6085 = vmatprep.subr.mxu0 0.0
        %6086 = vmatpush1.msra.mxu0 0.0
        %6087 = vmatprep.subr.mxu0 0.0
        %6088 = vmatpush1.msra.mxu0 0.0
        %6089 = vmatprep.subr.mxu0 0.0
        %6090 = vmatpush1.msra.mxu0 0.0
        %6091 = vmatprep.subr.mxu0 0.0
        %6092 = vmatpush1.msra.mxu0 0.0
        %6093 = vmatprep.subr.mxu0 0.0
        %6094 = vmatpush1.msra.mxu0 0.0
        %6095 = vmatprep.subr.mxu0 0.0
        %6096 = vmatpush1.msra.mxu0 0.0
        %6097 = vmatprep.subr.mxu0 0.0
        %6098 = vmatpush1.msra.mxu0 0.0
        %6099 = vmatprep.subr.mxu0 0.0
        %6100 = vmatpush1.msra.mxu0 0.0
        %6101 = vmatprep.subr.mxu0 0.0
        %6102 = vmatpush1.msra.mxu0 0.0
        %6103 = vmatprep.subr.mxu0 0.0
        %6104 = vmatpush1.msra.mxu0 0.0
        %6105 = vmatprep.subr.mxu0 0.0
        %6106 = vmatpush1.msra.mxu0 0.0
        %6107 = vmatprep.subr.mxu0 0.0
        %6108 = vmatpush1.msra.mxu0 0.0
        %6109 = vmatprep.subr.mxu0 0.0
        %6110 = vmatpush1.msra.mxu0 0.0
        %6111 = vmatprep.subr.mxu0 0.0
        %6112 = vmatpush1.msra.mxu0 0.0
        %6113 = vmatprep.subr.mxu0 0.0
        %6114 = vmatpush1.msra.mxu0 0.0
        %6115 = vmatprep.subr.mxu0 0.0
        %6116 = vmatpush1.msra.mxu0 0.0
        %6117 = vmatprep.subr.mxu0 0.0
        %6118 = vmatpush1.msra.mxu0 0.0
        %6119 = vmatprep.subr.mxu0 0.0
        %6120 = vmatpush1.msra.mxu0 0.0
        %6121 = vmatprep.subr.mxu0 0.0
        %6122 = vmatpush1.msra.mxu0 0.0
        %6123 = vmatprep.subr.mxu0 0.0
        %6124 = vmatpush1.msra.mxu0 0.0
        %6125 = vmatprep.subr.mxu0 0.0
        %6126 = vmatpush1.msra.mxu0 0.0
        %6127 = vmatprep.subr.mxu0 0.0
        %6128 = vmatpush1.msra.mxu0 0.0
        %6129 = vmatprep.subr.mxu0 0.0
        %6130 = vmatpush1.msra.mxu0 0.0
        %6131 = vmatprep.subr.mxu0 0.0
        %6132 = vmatpush1.msra.mxu0 0.0
        %6133 = vmatprep.subr.mxu0 0.0
        %6134 = vmatpush1.msra.mxu0 0.0
        %6135 = vmatprep.subr.mxu0 0.0
        %6136 = vmatpush1.msra.mxu0 0.0
        %6137 = vmatprep.mubr.f32.mxu0 0.0
        %6138 = vmatmul.mubr.f32.gmra.mrb[0].mxu0 %v6000
        %v6139 = vpop.f32.mrb[0].mxu0
        %v6140 = vadd.f32 %v5998, %v6139
        %v6141 = vpop.f32.mrb[0].mxu0
        %v6142 = vadd.f32 %v5998, %v6141
        %6143 = vdwg.mxu0
        %v6144 = vand.u32 2147483647, %v6069
        %vm6145 = vcmp.le.f32.partialorder %v6144, 0.7853982
        %vm6146 = vcmp.lt.s32.totalorder %v6069, 0
        %v6147 = vand.u32 %v6069, 2139095040
        %v6148 = vshrl.u32 %v6147, 23
        %v6149 = vsub.s32 %v6148, 127
        %v6150 = vand.u32 2147483647, %v6069
        %v6151 = vand.u32 %v6150, 8388607
        %v6152 = vor.u32 %v6151, 8388608
        %v6153 = vsub.s32 0, %v6152
        %v6154 = vadd.s32 %v6149, 1
        %vm6155 = vcmp.gt.s32.totalorder %v6154, 0
        %v6156 = vsel %vm6155, %v6154, 0
        %v6157 = vshrl.u32 %v6156, 5
        %v6158 = vand.u32 %v6156, 31
        %v6159 = vsub.s32 32, %v6158
        %v6160 = vshrl.u32 683565275, %v6159
        %v6161 = vshll.u32 683565275, %v6158
        %v6162 = vshrl.u32 2475754826, %v6159
        %v6163 = vor.u32 %v6161, %v6162
        %v6164 = vshll.u32 2475754826, %v6158
        %v6165 = vshrl.u32 2131351028, %v6159
        %v6166 = vor.u32 %v6164, %v6165
        %v6167 = vshll.u32 2131351028, %v6158
        %v6168 = vshrl.u32 2102212464, %v6159
        %v6169 = vor.u32 %v6167, %v6168
        %v6170 = vshll.u32 2102212464, %v6158
        %v6171 = vshrl.u32 920167782, %v6159
        %v6172 = vor.u32 %v6170, %v6171
        %v6173 = vshll.u32 920167782, %v6158
        %v6174 = vshrl.u32 1326507024, %v6159
        %v6175 = vor.u32 %v6173, %v6174
        %vm6176 = vcmp.lt.s32.totalorder %v6157, 1
        %vm6177 = vcmp.lt.s32.totalorder %v6157, 2
        %vm6178 = vcmp.lt.s32.totalorder %v6157, 3
        %vm6179 = vcmp.lt.s32.totalorder %v6157, 4
        %v6180 = vsel %vm6176, %v6160, %v6163
        %v6181 = vsel %vm6179, %v6169, 2102212464
        %v6182 = vsel %vm6178, %v6166, %v6181
        %v6183 = vsel %vm6177, %v6180, %v6182
        %v6184 = vsel %vm6176, %v6163, %v6166
        %v6185 = vsel %vm6179, %v6172, 920167782
        %v6186 = vsel %vm6178, %v6169, %v6185
        %v6187 = vsel %vm6177, %v6184, %v6186
        %v6188 = vsel %vm6176, %v6166, %v6169
        %v6189 = vsel %vm6179, %v6175, 1326507024
        %v6190 = vsel %vm6178, %v6172, %v6189
        %v6191 = vsel %vm6177, %v6188, %v6190
        %v6192 = vshll.u32 %v6152, 8
        %v6193 = vmul.u32.u64.compose %v6192, %v6191
        %v6194 = vextract.low.u32 %v6193
        %v6195 = vextract.high.u32 %v6193
        %v6196 = vmul.u32.u64.compose %v6192, %v6187
        %v6197 = vextract.low.u32 %v6196
        %v6198 = vextract.high.u32 %v6196
        %v6199 = vmul.u32 %v6192, %v6183
        %v6200 = vadd.s32 %v6195, %v6197
        %vm6201 = vc.u32 %v6195, %v6197
        %v6202 = vadd.s32 %v6198, 1
        %v6203 = vsel %vm6201, %v6202, %v6198
        %v6204 = vadd.s32 %v6199, %v6203
        %v6205 = vadd.s32 %v6204, 536870912
        %v6206 = vshrl.u32 %v6205, 30
        %v6207 = vshll.u32 %v6206, 30
        %v6208 = vsub.s32 %v6204, %v6207
        %vm6209 = vcmp.lt.s32.totalorder %v6208, 0
        %v6210 = vsub.s32 0, %v6208
        %v6211 = vsel %vm6209, %v6210, %v6208
        %v6212 = vclz %v6211
        %v6213 = vsub.s32 %v6212, 2
        %vm6214 = vcmp.gt.s32.totalorder 0, %v6213
        %v6215 = vsel %vm6214, 0, %v6213
        %v6216 = vsub.s32 32, %v6215
        %v6217 = vshll.u32 %v6208, %v6215
        %v6218 = vshrl.u32 %v6200, %v6216
        %v6219 = vor.u32 %v6217, %v6218
        %v6220 = vsub.s32 4294967266, %v6215
        %v6221 = vadd.s32 %v6220, 127
        %v6222 = vshll.u32 %v6221, 23
        %v6223 = vor.u32 4788187, %v6222
        %v6224 = vand.u32 2147483647, %v6223
        %v6226 = vcvt.s32.f32 %v6219
        %v6227 = vmul.f32 %v6226, %v6224
        %v6228 = vxor.u32 %v6227, 2147483648
        %v6229 = vsel %vm6146, %v6228, %v6227
        %v6230 = vsub.s32 4, %v6206
        %v6231 = vsel %vm6146, %v6230, %v6206
        %v6232 = vsel %vm6145, %v6069, %v6229
        %v6233 = vsel %vm6145, 0, %v6231
        %v6234 = vcosq.f32.pop %v6232
        %v6235 = vsinq.f32.pop %v6232
        %vm6236 = vweird.f32 %v6069
        %v6237 = vadd.s32 %v6233, 3
        %v6238 = vand.u32 %v6237, 3
        %vm6239 = vcmp.lt.s32.totalorder %v6238, 2
        %vm6240 = vcmp.eq.s32.totalorder %v6238, 0
        %v6241 = vxor.u32 %v6235, 2147483648
        %v6242 = vsel %vm6240, %v6234, %v6241
        %vm6243 = vcmp.eq.s32.totalorder %v6238, 2
        %v6244 = vxor.u32 %v6234, 2147483648
        %v6245 = vsel %vm6243, %v6244, %v6235
        %v6246 = vsel %vm6239, %v6242, %v6245
        %v6247 = vsel %vm6236, nan, %v6246
        %v6248 = vand.u32 2147483647, %v6071
        %vm6249 = vcmp.le.f32.partialorder %v6248, 0.7853982
        %vm6250 = vcmp.lt.s32.totalorder %v6071, 0
        %v6251 = vand.u32 %v6071, 2139095040
        %v6252 = vshrl.u32 %v6251, 23
        %v6253 = vsub.s32 %v6252, 127
        %v6254 = vand.u32 2147483647, %v6071
        %v6255 = vand.u32 %v6254, 8388607
        %v6256 = vor.u32 %v6255, 8388608
        %v6257 = vsub.s32 0, %v6256
        %v6258 = vadd.s32 %v6253, 1
        %vm6259 = vcmp.gt.s32.totalorder %v6258, 0
        %v6260 = vsel %vm6259, %v6258, 0
        %v6261 = vshrl.u32 %v6260, 5
        %v6262 = vand.u32 %v6260, 31
        %v6263 = vsub.s32 32, %v6262
        %v6264 = vshrl.u32 683565275, %v6263
        %v6265 = vshll.u32 683565275, %v6262
        %v6266 = vshrl.u32 2475754826, %v6263
        %v6267 = vor.u32 %v6265, %v6266
        %v6268 = vshll.u32 2475754826, %v6262
        %v6269 = vshrl.u32 2131351028, %v6263
        %v6270 = vor.u32 %v6268, %v6269
        %v6271 = vshll.u32 2131351028, %v6262
        %v6272 = vshrl.u32 2102212464, %v6263
        %v6273 = vor.u32 %v6271, %v6272
        %v6274 = vshll.u32 2102212464, %v6262
        %v6275 = vshrl.u32 920167782, %v6263
        %v6276 = vor.u32 %v6274, %v6275
        %v6277 = vshll.u32 920167782, %v6262
        %v6278 = vshrl.u32 1326507024, %v6263
        %v6279 = vor.u32 %v6277, %v6278
        %vm6280 = vcmp.lt.s32.totalorder %v6261, 1
        %vm6281 = vcmp.lt.s32.totalorder %v6261, 2
        %vm6282 = vcmp.lt.s32.totalorder %v6261, 3
        %vm6283 = vcmp.lt.s32.totalorder %v6261, 4
        %v6284 = vsel %vm6280, %v6264, %v6267
        %v6285 = vsel %vm6283, %v6273, 2102212464
        %v6286 = vsel %vm6282, %v6270, %v6285
        %v6287 = vsel %vm6281, %v6284, %v6286
        %v6288 = vsel %vm6280, %v6267, %v6270
        %v6289 = vsel %vm6283, %v6276, 920167782
        %v6290 = vsel %vm6282, %v6273, %v6289
        %v6291 = vsel %vm6281, %v6288, %v6290
        %v6292 = vsel %vm6280, %v6270, %v6273
        %v6293 = vsel %vm6283, %v6279, 1326507024
        %v6294 = vsel %vm6282, %v6276, %v6293
        %v6295 = vsel %vm6281, %v6292, %v6294
        %v6296 = vshll.u32 %v6256, 8
        %v6297 = vmul.u32.u64.compose %v6296, %v6295
        %v6298 = vextract.low.u32 %v6297
        %v6299 = vextract.high.u32 %v6297
        %v6300 = vmul.u32.u64.compose %v6296, %v6291
        %v6301 = vextract.low.u32 %v6300
        %v6302 = vextract.high.u32 %v6300
        %v6303 = vmul.u32 %v6296, %v6287
        %v6304 = vadd.s32 %v6299, %v6301
        %vm6305 = vc.u32 %v6299, %v6301
        %v6306 = vadd.s32 %v6302, 1
        %v6307 = vsel %vm6305, %v6306, %v6302
        %v6308 = vadd.s32 %v6303, %v6307
        %v6309 = vadd.s32 %v6308, 536870912
        %v6310 = vshrl.u32 %v6309, 30
        %v6311 = vshll.u32 %v6310, 30
        %v6312 = vsub.s32 %v6308, %v6311
        %vm6313 = vcmp.lt.s32.totalorder %v6312, 0
        %v6314 = vsub.s32 0, %v6312
        %v6315 = vsel %vm6313, %v6314, %v6312
        %v6316 = vclz %v6315
        %v6317 = vsub.s32 %v6316, 2
        %vm6318 = vcmp.gt.s32.totalorder 0, %v6317
        %v6319 = vsel %vm6318, 0, %v6317
        %v6320 = vsub.s32 32, %v6319
        %v6321 = vshll.u32 %v6312, %v6319
        %v6322 = vshrl.u32 %v6304, %v6320
        %v6323 = vor.u32 %v6321, %v6322
        %v6324 = vsub.s32 4294967266, %v6319
        %v6325 = vadd.s32 %v6324, 127
        %v6326 = vshll.u32 %v6325, 23
        %v6327 = vor.u32 4788187, %v6326
        %v6328 = vand.u32 2147483647, %v6327
        %v6330 = vcvt.s32.f32 %v6323
        %v6331 = vmul.f32 %v6330, %v6328
        %v6332 = vxor.u32 %v6331, 2147483648
        %v6333 = vsel %vm6250, %v6332, %v6331
        %v6334 = vsub.s32 4, %v6310
        %v6335 = vsel %vm6250, %v6334, %v6310
        %v6336 = vsel %vm6249, %v6071, %v6333
        %v6337 = vsel %vm6249, 0, %v6335
        %v6338 = vcosq.f32.pop %v6336
        %v6339 = vsinq.f32.pop %v6336
        %vm6340 = vweird.f32 %v6071
        %v6341 = vadd.s32 %v6337, 3
        %v6342 = vand.u32 %v6341, 3
        %vm6343 = vcmp.lt.s32.totalorder %v6342, 2
        %vm6344 = vcmp.eq.s32.totalorder %v6342, 0
        %v6345 = vxor.u32 %v6339, 2147483648
        %v6346 = vsel %vm6344, %v6338, %v6345
        %vm6347 = vcmp.eq.s32.totalorder %v6342, 2
        %v6348 = vxor.u32 %v6338, 2147483648
        %v6349 = vsel %vm6347, %v6348, %v6339
        %v6350 = vsel %vm6343, %v6346, %v6349
        %v6351 = vsel %vm6340, nan, %v6350
        %v6352 = vand.u32 2147483647, %v6140
        %vm6353 = vcmp.le.f32.partialorder %v6352, 0.7853982
        %vm6354 = vcmp.lt.s32.totalorder %v6140, 0
        %v6355 = vand.u32 %v6140, 2139095040
        %v6356 = vshrl.u32 %v6355, 23
        %v6357 = vsub.s32 %v6356, 127
        %v6358 = vand.u32 2147483647, %v6140
        %v6359 = vand.u32 %v6358, 8388607
        %v6360 = vor.u32 %v6359, 8388608
        %v6361 = vsub.s32 0, %v6360
        %v6362 = vadd.s32 %v6357, 1
        %vm6363 = vcmp.gt.s32.totalorder %v6362, 0
        %v6364 = vsel %vm6363, %v6362, 0
        %v6365 = vshrl.u32 %v6364, 5
        %v6366 = vand.u32 %v6364, 31
        %v6367 = vsub.s32 32, %v6366
        %v6368 = vshrl.u32 683565275, %v6367
        %v6369 = vshll.u32 683565275, %v6366
        %v6370 = vshrl.u32 2475754826, %v6367
        %v6371 = vor.u32 %v6369, %v6370
        %v6372 = vshll.u32 2475754826, %v6366
        %v6373 = vshrl.u32 2131351028, %v6367
        %v6374 = vor.u32 %v6372, %v6373
        %v6375 = vshll.u32 2131351028, %v6366
        %v6376 = vshrl.u32 2102212464, %v6367
        %v6377 = vor.u32 %v6375, %v6376
        %v6378 = vshll.u32 2102212464, %v6366
        %v6379 = vshrl.u32 920167782, %v6367
        %v6380 = vor.u32 %v6378, %v6379
        %v6381 = vshll.u32 920167782, %v6366
        %v6382 = vshrl.u32 1326507024, %v6367
        %v6383 = vor.u32 %v6381, %v6382
        %vm6384 = vcmp.lt.s32.totalorder %v6365, 1
        %vm6385 = vcmp.lt.s32.totalorder %v6365, 2
        %vm6386 = vcmp.lt.s32.totalorder %v6365, 3
        %vm6387 = vcmp.lt.s32.totalorder %v6365, 4
        %v6388 = vsel %vm6384, %v6368, %v6371
        %v6389 = vsel %vm6387, %v6377, 2102212464
        %v6390 = vsel %vm6386, %v6374, %v6389
        %v6391 = vsel %vm6385, %v6388, %v6390
        %v6392 = vsel %vm6384, %v6371, %v6374
        %v6393 = vsel %vm6387, %v6380, 920167782
        %v6394 = vsel %vm6386, %v6377, %v6393
        %v6395 = vsel %vm6385, %v6392, %v6394
        %v6396 = vsel %vm6384, %v6374, %v6377
        %v6397 = vsel %vm6387, %v6383, 1326507024
        %v6398 = vsel %vm6386, %v6380, %v6397
        %v6399 = vsel %vm6385, %v6396, %v6398
        %v6400 = vshll.u32 %v6360, 8
        %v6401 = vmul.u32.u64.compose %v6400, %v6399
        %v6402 = vextract.low.u32 %v6401
        %v6403 = vextract.high.u32 %v6401
        %v6404 = vmul.u32.u64.compose %v6400, %v6395
        %v6405 = vextract.low.u32 %v6404
        %v6406 = vextract.high.u32 %v6404
        %v6407 = vmul.u32 %v6400, %v6391
        %v6408 = vadd.s32 %v6403, %v6405
        %vm6409 = vc.u32 %v6403, %v6405
        %v6410 = vadd.s32 %v6406, 1
        %v6411 = vsel %vm6409, %v6410, %v6406
        %v6412 = vadd.s32 %v6407, %v6411
        %v6413 = vadd.s32 %v6412, 536870912
        %v6414 = vshrl.u32 %v6413, 30
        %v6415 = vshll.u32 %v6414, 30
        %v6416 = vsub.s32 %v6412, %v6415
        %vm6417 = vcmp.lt.s32.totalorder %v6416, 0
        %v6418 = vsub.s32 0, %v6416
        %v6419 = vsel %vm6417, %v6418, %v6416
        %v6420 = vclz %v6419
        %v6421 = vsub.s32 %v6420, 2
        %vm6422 = vcmp.gt.s32.totalorder 0, %v6421
        %v6423 = vsel %vm6422, 0, %v6421
        %v6424 = vsub.s32 32, %v6423
        %v6425 = vshll.u32 %v6416, %v6423
        %v6426 = vshrl.u32 %v6408, %v6424
        %v6427 = vor.u32 %v6425, %v6426
        %v6428 = vsub.s32 4294967266, %v6423
        %v6429 = vadd.s32 %v6428, 127
        %v6430 = vshll.u32 %v6429, 23
        %v6431 = vor.u32 4788187, %v6430
        %v6432 = vand.u32 2147483647, %v6431
        %v6434 = vcvt.s32.f32 %v6427
        %v6435 = vmul.f32 %v6434, %v6432
        %v6436 = vxor.u32 %v6435, 2147483648
        %v6437 = vsel %vm6354, %v6436, %v6435
        %v6438 = vsub.s32 4, %v6414
        %v6439 = vsel %vm6354, %v6438, %v6414
        %v6440 = vsel %vm6353, %v6140, %v6437
        %v6441 = vsel %vm6353, 0, %v6439
        %v6442 = vcosq.f32.pop %v6440
        %v6443 = vsinq.f32.pop %v6440
        %vm6444 = vweird.f32 %v6140
        %v6445 = vadd.s32 %v6441, 3
        %v6446 = vand.u32 %v6445, 3
        %vm6447 = vcmp.lt.s32.totalorder %v6446, 2
        %vm6448 = vcmp.eq.s32.totalorder %v6446, 0
        %v6449 = vxor.u32 %v6443, 2147483648
        %v6450 = vsel %vm6448, %v6442, %v6449
        %vm6451 = vcmp.eq.s32.totalorder %v6446, 2
        %v6452 = vxor.u32 %v6442, 2147483648
        %v6453 = vsel %vm6451, %v6452, %v6443
        %v6454 = vsel %vm6447, %v6450, %v6453
        %v6455 = vsel %vm6444, nan, %v6454
        %v6456 = vand.u32 2147483647, %v6142
        %vm6457 = vcmp.le.f32.partialorder %v6456, 0.7853982
        %vm6458 = vcmp.lt.s32.totalorder %v6142, 0
        %v6459 = vand.u32 %v6142, 2139095040
        %v6460 = vshrl.u32 %v6459, 23
        %v6461 = vsub.s32 %v6460, 127
        %v6462 = vand.u32 2147483647, %v6142
        %v6463 = vand.u32 %v6462, 8388607
        %v6464 = vor.u32 %v6463, 8388608
        %v6465 = vsub.s32 0, %v6464
        %v6466 = vadd.s32 %v6461, 1
        %vm6467 = vcmp.gt.s32.totalorder %v6466, 0
        %v6468 = vsel %vm6467, %v6466, 0
        %v6469 = vshrl.u32 %v6468, 5
        %v6470 = vand.u32 %v6468, 31
        %v6471 = vsub.s32 32, %v6470
        %v6472 = vshrl.u32 683565275, %v6471
        %v6473 = vshll.u32 683565275, %v6470
        %v6474 = vshrl.u32 2475754826, %v6471
        %v6475 = vor.u32 %v6473, %v6474
        %v6476 = vshll.u32 2475754826, %v6470
        %v6477 = vshrl.u32 2131351028, %v6471
        %v6478 = vor.u32 %v6476, %v6477
        %v6479 = vshll.u32 2131351028, %v6470
        %v6480 = vshrl.u32 2102212464, %v6471
        %v6481 = vor.u32 %v6479, %v6480
        %v6482 = vshll.u32 2102212464, %v6470
        %v6483 = vshrl.u32 920167782, %v6471
        %v6484 = vor.u32 %v6482, %v6483
        %v6485 = vshll.u32 920167782, %v6470
        %v6486 = vshrl.u32 1326507024, %v6471
        %v6487 = vor.u32 %v6485, %v6486
        %vm6488 = vcmp.lt.s32.totalorder %v6469, 1
        %vm6489 = vcmp.lt.s32.totalorder %v6469, 2
        %vm6490 = vcmp.lt.s32.totalorder %v6469, 3
        %vm6491 = vcmp.lt.s32.totalorder %v6469, 4
        %v6492 = vsel %vm6488, %v6472, %v6475
        %v6493 = vsel %vm6491, %v6481, 2102212464
        %v6494 = vsel %vm6490, %v6478, %v6493
        %v6495 = vsel %vm6489, %v6492, %v6494
        %v6496 = vsel %vm6488, %v6475, %v6478
        %v6497 = vsel %vm6491, %v6484, 920167782
        %v6498 = vsel %vm6490, %v6481, %v6497
        %v6499 = vsel %vm6489, %v6496, %v6498
        %v6500 = vsel %vm6488, %v6478, %v6481
        %v6501 = vsel %vm6491, %v6487, 1326507024
        %v6502 = vsel %vm6490, %v6484, %v6501
        %v6503 = vsel %vm6489, %v6500, %v6502
        %v6504 = vshll.u32 %v6464, 8
        %v6505 = vmul.u32.u64.compose %v6504, %v6503
        %v6506 = vextract.low.u32 %v6505
        %v6507 = vextract.high.u32 %v6505
        %v6508 = vmul.u32.u64.compose %v6504, %v6499
        %v6509 = vextract.low.u32 %v6508
        %v6510 = vextract.high.u32 %v6508
        %v6511 = vmul.u32 %v6504, %v6495
        %v6512 = vadd.s32 %v6507, %v6509
        %vm6513 = vc.u32 %v6507, %v6509
        %v6514 = vadd.s32 %v6510, 1
        %v6515 = vsel %vm6513, %v6514, %v6510
        %v6516 = vadd.s32 %v6511, %v6515
        %v6517 = vadd.s32 %v6516, 536870912
        %v6518 = vshrl.u32 %v6517, 30
        %v6519 = vshll.u32 %v6518, 30
        %v6520 = vsub.s32 %v6516, %v6519
        %vm6521 = vcmp.lt.s32.totalorder %v6520, 0
        %v6522 = vsub.s32 0, %v6520
        %v6523 = vsel %vm6521, %v6522, %v6520
        %v6524 = vclz %v6523
        %v6525 = vsub.s32 %v6524, 2
        %vm6526 = vcmp.gt.s32.totalorder 0, %v6525
        %v6527 = vsel %vm6526, 0, %v6525
        %v6528 = vsub.s32 32, %v6527
        %v6529 = vshll.u32 %v6520, %v6527
        %v6530 = vshrl.u32 %v6512, %v6528
        %v6531 = vor.u32 %v6529, %v6530
        %v6532 = vsub.s32 4294967266, %v6527
        %v6533 = vadd.s32 %v6532, 127
        %v6534 = vshll.u32 %v6533, 23
        %v6535 = vor.u32 4788187, %v6534
        %v6536 = vand.u32 2147483647, %v6535
        %v6538 = vcvt.s32.f32 %v6531
        %v6539 = vmul.f32 %v6538, %v6536
        %v6540 = vxor.u32 %v6539, 2147483648
        %v6541 = vsel %vm6458, %v6540, %v6539
        %v6542 = vsub.s32 4, %v6518
        %v6543 = vsel %vm6458, %v6542, %v6518
        %v6544 = vsel %vm6457, %v6142, %v6541
        %v6545 = vsel %vm6457, 0, %v6543
        %v6546 = vcosq.f32.pop %v6544
        %v6547 = vsinq.f32.pop %v6544
        %vm6548 = vweird.f32 %v6142
        %v6549 = vadd.s32 %v6545, 3
        %v6550 = vand.u32 %v6549, 3
        %vm6551 = vcmp.lt.s32.totalorder %v6550, 2
        %vm6552 = vcmp.eq.s32.totalorder %v6550, 0
        %v6553 = vxor.u32 %v6547, 2147483648
        %v6554 = vsel %vm6552, %v6546, %v6553
        %vm6555 = vcmp.eq.s32.totalorder %v6550, 2
        %v6556 = vxor.u32 %v6546, 2147483648
        %v6557 = vsel %vm6555, %v6556, %v6547
        %v6558 = vsel %vm6551, %v6554, %v6557
        %v6559 = vsel %vm6548, nan, %v6558
        %v6564 = vcombine.low %v6247, %v6351
        %v6565 = vcombine.low %v6455, %v6559
        %v6567 = vunpack.c.l.s4 1966171168
        %v6568 = vunpack.c.0.s8 %v6567
        %v6569 = vlaneseq
        %v6570 = vshrl.u32 %v6569, 7
        %v6571 = vsub.s32 %v6568, %v6570
        %v6572 = vrot.slane %v6564, %v6571
        %v6574 = vunpack.c.l.s4 1966171168
        %v6575 = vunpack.c.0.s8 %v6574
        %v6576 = vlaneseq
        %v6577 = vshrl.u32 %v6576, 7
        %v6578 = vsub.s32 %v6575, %v6577
        %v6579 = vrot.slane %v6565, %v6578
        %v6580 = vcombine.low %v6572, %v6579
        %v6582 = vunpack.c.l.s4 1966171168
        %v6583 = vunpack.c.0.s8 %v6582
        %v6584 = vlaneseq
        %v6585 = vshrl.u32 %v6584, 7
        %v6586 = vsub.s32 %v6583, %v6585
        %v6587 = vrot.slane %v6580, %v6586
        %v6589 = vlaneseq
        %vm6590 = vcmp.ge.s32.totalorder %v6589, 0
        %vm6591 = vcmp.lt.s32.totalorder %v6589, 512
        %vm6592 = vmand %vm6590, %vm6591
        %6593 = vst.msk [vmem:[%s328] sm:$0xf] %vm6592, %v6587
        %s6594 = sand.u32 %s227, 1
        %s6595 = scalar_lea.sflag [#allocation4], %s6594
        %s6596 = sand.u32 %s227, 1
        %s6597 = smul.addr %s6596, 4
        %s6598 = scalar_lea.vmem [#allocation3], %s6597
        // Predicated region
        $region57: #{tpu_custom_call.1} parent=55 // pred_check
          %p6599 = pneg %p237
        $region58: #{tpu_custom_call.1} parent=55 // pred_check_branch
          %6601 = sbr.rel (%p6599) target = $region60
        $region59: #{tpu_custom_call.1} parent=55 // pred_region
          %s6602 = smul.u32 4, %s25
          %s6604 = ssub.s32 64, 64
          %6605 = vsyncadd %s6595, %s6604
          %s6606 = smul.addr %s6602, 16
          %s6607 = scalar_lea.hbm %s9, %s6606
          %s6609 = sshll.u32 %s6598, 4
          %s6610 = int_to_ptr.vmem [resolvable:$true] %s6609
          %6612 = dma.vmem_to_hbm [thread:$0]  %s6610, 64, %s6607, %s6595
        $region60: #{tpu_custom_call.1} parent=55 // pred_fallthru
          _
      $region56: #{tpu_custom_call.1} parent=5 // pred_fallthru
        _
      %p6613 = scmp.le.s32.totalorder 2, %s20
      // Predicated region
      $region61: #{tpu_custom_call.1} parent=5 // pred_check
        %p6614 = pneg %p6613
      $region62: #{tpu_custom_call.1} parent=5 // pred_check_branch
        %6616 = sbr.rel (%p6614) target = $region64
      $region63: #{tpu_custom_call.1} parent=5 // pred_region
        %s6617 = ssub.s32 %s20, 2
        // Predicated region
        $region65: #{tpu_custom_call.1} parent=63 // pred_check
          %p6618 = pneg %p243
        $region66: #{tpu_custom_call.1} parent=63 // pred_check_branch
          %6620 = sbr.rel (%p6618) target = $region68
        $region67: #{tpu_custom_call.1} parent=63 // pred_region
          %s6621 = sand.u32 %s228, 1
          %s6622 = scalar_lea.sflag [#allocation4], %s6621
          %s6623 = sand.u32 %s228, 1
          %s6624 = smul.addr %s6623, 4
          %s6625 = scalar_lea.vmem [#allocation3], %s6624
          %6626 = dma.done %s6622, 64
        $region68: #{tpu_custom_call.1} parent=63 // pred_fallthru
          _
      $region64: #{tpu_custom_call.1} parent=5 // pred_fallthru
        _
    $region6: #{tpu_custom_call.1} parent=1 // loop_footer
      %s24 = sadd.s32 1, %s20
    $region7: #{tpu_custom_call.1} parent=1 // loop_footer_branch
      %19 = sbr.rel target = $region3
    $region8: #{tpu_custom_call.1} parent=1 // loop_exit
      _
    %6627 = vsyncpa [#allocation4], 1
    %s6628 = scalar_lea.sflag [#allocation4], 1
    %6629 = vsyncpa %s6628, 1

</llo_original>
